<compile_context>
chip_gen: v7x
topology: tpu7x:2x2x1
jax: 0.10.0
libtpu: 0.0.40
codegen_flags: <defaults>
</compile_context>

<pallas_src>
import functools

import jax
import jax.numpy as jnp
from jax.experimental import pallas as pl
from jax.experimental.pallas import tpu as pltpu

_KW = 4        # conv kernel size
_PADW = 1      # conv padding
_SLOPE = 0.2   # LeakyReLU negative slope
_EPS = 1e-5    # BatchNorm eps

# GEMM tile targets — multiples of (8, 128); shrunk automatically for small dims.
_TM, _TN, _TK = 256, 256, 512


def _round_up(x, m):
    return (x + m - 1) // m * m


def _pad2d(a, rows, cols):
    return jnp.pad(a, ((0, rows - a.shape[0]), (0, cols - a.shape[1])))


def _tiles(M, K, Cout):
    tm = min(_TM, _round_up(M, 8))
    tk = min(_TK, _round_up(K, 128))
    tn = min(_TN, _round_up(Cout, 128))
    return tm, tk, tn, _round_up(M, tm), _round_up(K, tk), _round_up(Cout, tn)


# ----------------------------------------------------------------------------
# Kernels
# ----------------------------------------------------------------------------
def _gemm_bias_act_kernel(x_ref, w_ref, b_ref, o_ref, acc_ref, *, apply_leaky):
    # grid = (i over M, j over Cout, k over K); K is the reduction axis.
    k = pl.program_id(2)

    @pl.when(k == 0)
    def _():
        acc_ref[...] = jnp.zeros_like(acc_ref)

    acc_ref[...] += jnp.dot(x_ref[...], w_ref[...],
                            preferred_element_type=jnp.float32)

    @pl.when(k == pl.num_programs(2) - 1)
    def _():
        y = acc_ref[...] + b_ref[...]
        if apply_leaky:
            y = jnp.where(y >= 0.0, y, y * _SLOPE)
        o_ref[...] = y.astype(o_ref.dtype)


def _gemm_stats_kernel(x_ref, w_ref, o_ref, sum_ref, sq_ref, acc_ref):
    # grid = (j over Cout, i over M, k over K) — Cout outermost so the (1, tn)
    # stats blocks stay resident in VMEM across the whole M*K sweep.
    i = pl.program_id(1)
    k = pl.program_id(2)

    @pl.when(k == 0)
    def _():
        acc_ref[...] = jnp.zeros_like(acc_ref)

    @pl.when(jnp.logical_and(i == 0, k == 0))
    def _():
        sum_ref[...] = jnp.zeros_like(sum_ref)
        sq_ref[...] = jnp.zeros_like(sq_ref)

    acc_ref[...] += jnp.dot(x_ref[...], w_ref[...],
                            preferred_element_type=jnp.float32)

    @pl.when(k == pl.num_programs(2) - 1)
    def _():
        y = acc_ref[...]
        o_ref[...] = y.astype(o_ref.dtype)
        sum_ref[...] += jnp.sum(y, axis=0, keepdims=True)
        sq_ref[...] += jnp.sum(y * y, axis=0, keepdims=True)


def _bn_act_kernel(y_ref, sum_ref, sq_ref, g_ref, b_ref, o_ref, *, inv_m):
    # Training-mode (biased) batch statistics over the M = N*OH*OW axis.
    mean = sum_ref[...] * inv_m
    var = sq_ref[...] * inv_m - mean * mean
    inv_std = jax.lax.rsqrt(var + _EPS)            # EUP slot — effectively free
    scale = g_ref[...] * inv_std
    shift = b_ref[...] - mean * scale
    y = y_ref[...] * scale + shift
    o_ref[...] = jnp.where(y >= 0.0, y, y * _SLOPE).astype(o_ref.dtype)


# ----------------------------------------------------------------------------
# Per-layer pallas_call wrappers
# ----------------------------------------------------------------------------
def _conv_gemm_bias_act(patches, w_t, bias, *, apply_leaky):
    M, K = patches.shape
    Cout = w_t.shape[1]
    tm, tk, tn, Mp, Kp, Np = _tiles(M, K, Cout)
    xp = _pad2d(patches, Mp, Kp).astype(jnp.bfloat16)
    wp = _pad2d(w_t, Kp, Np).astype(jnp.bfloat16)
    bp = _pad2d(bias.reshape(1, Cout).astype(jnp.float32), 1, Np)
    cost = pl.CostEstimate(flops=2 * Mp * Kp * Np, transcendentals=0,
                           bytes_accessed=xp.size * 2 + wp.size * 2 + Mp * Np * 4)

    y = pl.pallas_call(
        functools.partial(_gemm_bias_act_kernel, apply_leaky=apply_leaky),
        out_shape=jax.ShapeDtypeStruct((Mp, Np), jnp.float32),
        grid_spec=pltpu.PrefetchScalarGridSpec(
            num_scalar_prefetch=0,
            grid=(Mp // tm, Np // tn, Kp // tk),
            in_specs=[
                pl.BlockSpec((tm, tk), lambda i, j, k: (i, k)),
                pl.BlockSpec((tk, tn), lambda i, j, k: (k, j)),
                pl.BlockSpec((1, tn), lambda i, j, k: (0, j)),
            ],
            out_specs=pl.BlockSpec((tm, tn), lambda i, j, k: (i, j)),
            scratch_shapes=[pltpu.VMEM((tm, tn), jnp.float32)],
        ),
        compiler_params=pltpu.CompilerParams(
            dimension_semantics=("parallel", "parallel", "arbitrary")),
        cost_estimate=cost,
    )(xp, wp, bp)
    return y[:M, :Cout]


def _conv_gemm_bn_act(patches, w_t, gamma, beta):
    M, K = patches.shape
    Cout = w_t.shape[1]
    tm, tk, tn, Mp, Kp, Np = _tiles(M, K, Cout)
    xp = _pad2d(patches, Mp, Kp).astype(jnp.bfloat16)
    wp = _pad2d(w_t, Kp, Np).astype(jnp.bfloat16)
    cost = pl.CostEstimate(flops=2 * Mp * Kp * Np, transcendentals=0,
                           bytes_accessed=xp.size * 2 + wp.size * 2 + Mp * Np * 4)

    # Pass 1: tiled GEMM + per-channel sum / sum-of-squares.  Padded M rows /
    # K cols are exact zeros and the conv has no bias, so the stats are exact.
    y, ysum, ysq = pl.pallas_call(
        _gemm_stats_kernel,
        out_shape=(jax.ShapeDtypeStruct((Mp, Np), jnp.float32),
                   jax.ShapeDtypeStruct((1, Np), jnp.float32),
                   jax.ShapeDtypeStruct((1, Np), jnp.float32)),
        grid_spec=pltpu.PrefetchScalarGridSpec(
            num_scalar_prefetch=0,
            grid=(Np // tn, Mp // tm, Kp // tk),
            in_specs=[
                pl.BlockSpec((tm, tk), lambda j, i, k: (i, k)),
                pl.BlockSpec((tk, tn), lambda j, i, k: (k, j)),
            ],
            out_specs=[
                pl.BlockSpec((tm, tn), lambda j, i, k: (i, j)),
                pl.BlockSpec((1, tn), lambda j, i, k: (0, j)),
                pl.BlockSpec((1, tn), lambda j, i, k: (0, j)),
            ],
            scratch_shapes=[pltpu.VMEM((tm, tn), jnp.float32)],
        ),
        compiler_params=pltpu.CompilerParams(
            dimension_semantics=("parallel", "arbitrary", "arbitrary")),
        cost_estimate=cost,
    )(xp, wp)

    gp = _pad2d(gamma.reshape(1, Cout).astype(jnp.float32), 1, Np)
    bp = _pad2d(beta.reshape(1, Cout).astype(jnp.float32), 1, Np)

    # Pass 2: memory-bound normalize + affine + LeakyReLU.
    out = pl.pallas_call(
        functools.partial(_bn_act_kernel, inv_m=1.0 / M),
        out_shape=jax.ShapeDtypeStruct((Mp, Np), jnp.float32),
        grid_spec=pltpu.PrefetchScalarGridSpec(
            num_scalar_prefetch=0,
            grid=(Mp // tm, Np // tn),
            in_specs=[
                pl.BlockSpec((tm, tn), lambda i, j: (i, j)),
                pl.BlockSpec((1, tn), lambda i, j: (0, j)),
                pl.BlockSpec((1, tn), lambda i, j: (0, j)),
                pl.BlockSpec((1, tn), lambda i, j: (0, j)),
                pl.BlockSpec((1, tn), lambda i, j: (0, j)),
            ],
            out_specs=pl.BlockSpec((tm, tn), lambda i, j: (i, j)),
        ),
        compiler_params=pltpu.CompilerParams(
            dimension_semantics=("parallel", "parallel")),
    )(y, ysum, ysq, gp, bp)
    return out[:M, :Cout]


# ----------------------------------------------------------------------------
# Plain-JAX glue: NHWC im2col (zero padding), parameters, forward
# ----------------------------------------------------------------------------
def _im2col_nhwc(x, k, stride, pad):
    # TODO(synk): this materializes the im2col patches in HBM; an implicit GEMM
    # (kh,kw grid axis slicing the padded NHWC activation directly) would cut
    # the input traffic further but is not expressible with a simple index_map.
    N, H, W, C = x.shape
    OH = (H + 2 * pad - k) // stride + 1
    OW = (W + 2 * pad - k) // stride + 1
    xp = jnp.pad(x, ((0, 0), (pad, pad), (pad, pad), (0, 0)))
    cols = []
    for i in range(k):
        for j in range(k):
            cols.append(xp[:, i:i + stride * OH:stride, j:j + stride * OW:stride, :])
    patches = jnp.stack(cols, axis=3)                 # [N, OH, OW, k*k, C]
    return patches.reshape(N * OH * OW, k * k * C), OH, OW


def init_params(key, input_nc, ndf=64, n_layers=3):
    """Deterministic synthetic weights with exactly the shapes nn.Conv2d /
    nn.BatchNorm2d would have (norm_layer=BatchNorm2d => use_bias=False on the
    normalized convs, so no bias tensor is created for them)."""
    layers = []
    keys = jax.random.split(key, 2 * (n_layers + 2))
    ki = 0

    def conv_w(k, cout, cin):
        return 0.02 * jax.random.normal(k, (cout, cin, _KW, _KW), jnp.float32)

    # layer 0: Conv(input_nc, ndf, s2, bias=True) + LeakyReLU
    layers.append(dict(w=conv_w(keys[ki], ndf, input_nc),
                       b=0.01 * jax.random.normal(keys[ki + 1], (ndf,), jnp.float32),
                       stride=2, use_bn=False, apply_leaky=True))
    ki += 2

    nf_mult = 1
    for n in range(1, n_layers):
        nf_mult_prev, nf_mult = nf_mult, min(2 ** n, 8)
        cout, cin = ndf * nf_mult, ndf * nf_mult_prev
        layers.append(dict(w=conv_w(keys[ki], cout, cin),
                           gamma=jnp.ones((cout,), jnp.float32),
                           beta=jnp.zeros((cout,), jnp.float32),
                           stride=2, use_bn=True, apply_leaky=True))
        ki += 2

    nf_mult_prev, nf_mult = nf_mult, min(2 ** n_layers, 8)
    cout, cin = ndf * nf_mult, ndf * nf_mult_prev
    layers.append(dict(w=conv_w(keys[ki], cout, cin),
                       gamma=jnp.ones((cout,), jnp.float32),
                       beta=jnp.zeros((cout,), jnp.float32),
                       stride=1, use_bn=True, apply_leaky=True))
    ki += 2

    # final: Conv(ndf*nf_mult, 1, s1, bias=True), no norm / activation
    layers.append(dict(w=conv_w(keys[ki], 1, ndf * nf_mult),
                       b=0.01 * jax.random.normal(keys[ki + 1], (1,), jnp.float32),
                       stride=1, use_bn=False, apply_leaky=False))
    return layers


def nlayer_discriminator_forward(params, x):
    """x: [N, C, H, W] f32 -> PatchGAN logits [N, 1, H', W'] f32.
    BatchNorm uses training-mode batch statistics (== nn.BatchNorm2d.train())."""
    N = x.shape[0]
    h = jnp.transpose(x, (0, 2, 3, 1))                 # NCHW -> NHWC, once
    for layer in params:
        w = layer["w"]
        cout, cin = w.shape[0], w.shape[1]
        patches, OH, OW = _im2col_nhwc(h, _KW, layer["stride"], _PADW)
        # Patch K ordering is (kh, kw, Cin); reorder the PyTorch-layout weight.
        w_t = jnp.transpose(w, (2, 3, 1, 0)).reshape(_KW * _KW * cin, cout)
        if layer["use_bn"]:
            y = _conv_gemm_bn_act(patches, w_t, layer["gamma"], layer["beta"])
        else:
            y = _conv_gemm_bias_act(patches, w_t, layer["b"],
                                    apply_leaky=layer["apply_leaky"])
        h = y.reshape(N, OH, OW, cout)                 # stay NHWC
    return jnp.transpose(h, (0, 3, 1, 2))              # back to NCHW


if __name__ == "__main__":
    key = jax.random.PRNGKey(0)
    k_x, k_p = jax.random.split(key)

    # Small config: input_nc=4, ndf=16, n_layers=3.
    # Spatial: 32 -> 16 -> 8 -> 4 -> 3 -> 2.  (A 16x16 input collapses to a
    # zero-sized output at the final 4x4/s1 conv — the previous crash.)
    input_nc, ndf, n_layers = 4, 16, 3
    x = jax.random.normal(k_x, (2, input_nc, 32, 32), jnp.float32)
    params = init_params(k_p, input_nc, ndf=ndf, n_layers=n_layers)

    fwd = jax.jit(functools.partial(nlayer_discriminator_forward, params))
    out = jax.block_until_ready(fwd(x))
    assert out.shape == (2, 1, 2, 2), out.shape
    assert bool(jnp.all(jnp.isfinite(out))), "non-finite output"
    print("KERNEL_OK")
</pallas_src>

<mosaic_0001>
module attributes {stable_mosaic.version = 11 : i64} {
  func.func @_gemm_bias_act_kernel(%arg0: i32, %arg1: i32, %arg2: i32, %arg3: memref<256x128xbf16, #tpu.memory_space<vmem>>, %arg4: memref<128x128xbf16, #tpu.memory_space<vmem>>, %arg5: memref<1x128xf32, #tpu.memory_space<vmem>>, %arg6: memref<256x128xf32, #tpu.memory_space<vmem>>, %arg7: memref<256x128xf32, #tpu.memory_space<vmem>>) attributes {dimension_semantics = [#tpu.dimension_semantics<parallel>, #tpu.dimension_semantics<parallel>, #tpu.dimension_semantics<arbitrary>], iteration_bounds = array<i64: 2, 1, 1>, scalar_prefetch = 0 : i64, scratch_operands = 1 : i64, tpu.core_type = #tpu.core_type<tc>, window_params = [{transform_indices = @transform_0, window_bounds = array<i64: 256, 128>}, {transform_indices = @transform_1, window_bounds = array<i64: 128, 128>}, {transform_indices = @transform_2, window_bounds = array<i64: 1, 128>}, {transform_indices = @transform_3, window_bounds = array<i64: 256, 128>}]} {
    %c0_i32 = arith.constant 0 : i32
    %0 = arith.cmpi eq, %arg2, %c0_i32 : i32
    %1 = arith.extui %0 : i1 to i32
    %c0_i32_0 = arith.constant 0 : i32
    %2 = arith.cmpi ne, %1, %c0_i32_0 : i32
    scf.if %2 {
      %cst_10 = arith.constant 0.000000e+00 : f32
      %12 = vector.broadcast %cst_10 : f32 to vector<256x128xf32>
      %c0_11 = arith.constant 0 : index
      %c0_12 = arith.constant 0 : index
      %13 = vector.load %arg7[%c0_11, %c0_12] : memref<256x128xf32, #tpu.memory_space<vmem>>, vector<256x128xf32>
      tpu.vector_store %arg7[%c0_11, %c0_12], %12 {strides = array<i32>} : memref<256x128xf32, #tpu.memory_space<vmem>>, vector<256x128xf32>,
    } else {
    }
    %c0 = arith.constant 0 : index
    %c0_1 = arith.constant 0 : index
    %3 = vector.load %arg7[%c0, %c0_1] : memref<256x128xf32, #tpu.memory_space<vmem>>, vector<256x128xf32>
    %c0_2 = arith.constant 0 : index
    %c0_3 = arith.constant 0 : index
    %4 = vector.load %arg3[%c0_2, %c0_3] : memref<256x128xbf16, #tpu.memory_space<vmem>>, vector<256x128xbf16>
    %c0_4 = arith.constant 0 : index
    %c0_5 = arith.constant 0 : index
    %5 = vector.load %arg4[%c0_4, %c0_5] : memref<128x128xbf16, #tpu.memory_space<vmem>>, vector<128x128xbf16>
    %cst = arith.constant dense<0.000000e+00> : vector<256x128xf32>
    %6 = tpu.matmul %4, %5, %cst {dimension_numbers = #tpu.dot_dimension_numbers<[1], [0], [0], [1], [0, 0, 1, 1], [], []>} : vector<256x128xbf16>, vector<128x128xbf16>, vector<256x128xf32> -> vector<256x128xf32>
    %7 = arith.addf %3, %6 : vector<256x128xf32>
    %c0_6 = arith.constant 0 : index
    %c0_7 = arith.constant 0 : index
    %8 = vector.load %arg7[%c0_6, %c0_7] : memref<256x128xf32, #tpu.memory_space<vmem>>, vector<256x128xf32>
    tpu.vector_store %arg7[%c0_6, %c0_7], %7 {strides = array<i32>} : memref<256x128xf32, #tpu.memory_space<vmem>>, vector<256x128xf32>,
    %c0_i32_8 = arith.constant 0 : i32
    %9 = arith.cmpi eq, %arg2, %c0_i32_8 : i32
    %10 = arith.extui %9 : i1 to i32
    %c0_i32_9 = arith.constant 0 : i32
    %11 = arith.cmpi ne, %10, %c0_i32_9 : i32
    scf.if %11 {
      %c0_10 = arith.constant 0 : index
      %c0_11 = arith.constant 0 : index
      %12 = vector.load %arg7[%c0_10, %c0_11] : memref<256x128xf32, #tpu.memory_space<vmem>>, vector<256x128xf32>
      %c0_12 = arith.constant 0 : index
      %c0_13 = arith.constant 0 : index
      %13 = vector.load %arg5[%c0_12, %c0_13] : memref<1x128xf32, #tpu.memory_space<vmem>>, vector<1x128xf32>
      %14 = vector.broadcast %13 : vector<1x128xf32> to vector<256x128xf32>
      %15 = arith.addf %12, %14 : vector<256x128xf32>
      %cst_14 = arith.constant 0.000000e+00 : f32
      %16 = vector.broadcast %cst_14 : f32 to vector<256x128xf32>
      %17 = arith.cmpf oge, %15, %16 : vector<256x128xf32>
      %cst_15 = arith.constant 2.000000e-01 : f32
      %18 = vector.broadcast %cst_15 : f32 to vector<256x128xf32>
      %19 = arith.mulf %15, %18 : vector<256x128xf32>
      %20 = arith.select %17, %15, %19 : vector<256x128xi1>, vector<256x128xf32>
      %c0_16 = arith.constant 0 : index
      %c0_17 = arith.constant 0 : index
      %21 = vector.load %arg6[%c0_16, %c0_17] : memref<256x128xf32, #tpu.memory_space<vmem>>, vector<256x128xf32>
      tpu.vector_store %arg6[%c0_16, %c0_17], %20 {strides = array<i32>} : memref<256x128xf32, #tpu.memory_space<vmem>>, vector<256x128xf32>,
    } else {
    }
    return
  }
  func.func @transform_0(%arg0: i32, %arg1: i32, %arg2: i32) -> (i32, i32) {
    %c0_i32 = arith.constant 0 : i32
    return %arg0, %arg2 : i32, i32
  }
  func.func @transform_1(%arg0: i32, %arg1: i32, %arg2: i32) -> (i32, i32) {
    %c0_i32 = arith.constant 0 : i32
    return %arg2, %arg1 : i32, i32
  }
  func.func @transform_2(%arg0: i32, %arg1: i32, %arg2: i32) -> (i32, i32) {
    %c0_i32 = arith.constant 0 : i32
    %c0_i32_0 = arith.constant 0 : i32
    return %c0_i32, %arg1 : i32, i32
  }
  func.func @transform_3(%arg0: i32, %arg1: i32, %arg2: i32) -> (i32, i32) {
    %c0_i32 = arith.constant 0 : i32
    return %arg0, %arg1 : i32, i32
  }
}

module attributes {stable_mosaic.version = 11 : i64} {
  func.func @_gemm_stats_kernel(%arg0: i32, %arg1: i32, %arg2: i32, %arg3: memref<128x256xbf16, #tpu.memory_space<vmem>>, %arg4: memref<256x128xbf16, #tpu.memory_space<vmem>>, %arg5: memref<128x128xf32, #tpu.memory_space<vmem>>, %arg6: memref<1x128xf32, #tpu.memory_space<vmem>>, %arg7: memref<1x128xf32, #tpu.memory_space<vmem>>, %arg8: memref<128x128xf32, #tpu.memory_space<vmem>>) attributes {dimension_semantics = [#tpu.dimension_semantics<parallel>, #tpu.dimension_semantics<arbitrary>, #tpu.dimension_semantics<arbitrary>], iteration_bounds = array<i64: 1, 1, 1>, scalar_prefetch = 0 : i64, scratch_operands = 1 : i64, tpu.core_type = #tpu.core_type<tc>, window_params = [{transform_indices = @transform_0, window_bounds = array<i64: 128, 256>}, {transform_indices = @transform_1, window_bounds = array<i64: 256, 128>}, {transform_indices = @transform_2, window_bounds = array<i64: 128, 128>}, {transform_indices = @transform_3, window_bounds = array<i64: 1, 128>}, {transform_indices = @transform_4, window_bounds = array<i64: 1, 128>}]} {
    %c0_i32 = arith.constant 0 : i32
    %0 = arith.cmpi eq, %arg2, %c0_i32 : i32
    %1 = arith.extui %0 : i1 to i32
    %c0_i32_0 = arith.constant 0 : i32
    %2 = arith.cmpi ne, %1, %c0_i32_0 : i32
    scf.if %2 {
      %cst_13 = arith.constant 0.000000e+00 : f32
      %17 = vector.broadcast %cst_13 : f32 to vector<128x128xf32>
      %c0_14 = arith.constant 0 : index
      %c0_15 = arith.constant 0 : index
      %18 = vector.load %arg8[%c0_14, %c0_15] : memref<128x128xf32, #tpu.memory_space<vmem>>, vector<128x128xf32>
      tpu.vector_store %arg8[%c0_14, %c0_15], %17 {strides = array<i32>} : memref<128x128xf32, #tpu.memory_space<vmem>>, vector<128x128xf32>,
    } else {
    }
    %c0_i32_1 = arith.constant 0 : i32
    %3 = arith.cmpi eq, %arg1, %c0_i32_1 : i32
    %c0_i32_2 = arith.constant 0 : i32
    %4 = arith.cmpi eq, %arg2, %c0_i32_2 : i32
    %5 = arith.andi %3, %4 : i1
    %6 = arith.extui %5 : i1 to i32
    %c0_i32_3 = arith.constant 0 : i32
    %7 = arith.cmpi ne, %6, %c0_i32_3 : i32
    scf.if %7 {
      %cst_13 = arith.constant 0.000000e+00 : f32
      %17 = vector.broadcast %cst_13 : f32 to vector<1x128xf32>
      %c0_14 = arith.constant 0 : index
      %c0_15 = arith.constant 0 : index
      %18 = vector.load %arg6[%c0_14, %c0_15] : memref<1x128xf32, #tpu.memory_space<vmem>>, vector<1x128xf32>
      tpu.vector_store %arg6[%c0_14, %c0_15], %17 {strides = array<i32>} : memref<1x128xf32, #tpu.memory_space<vmem>>, vector<1x128xf32>,
      %cst_16 = arith.constant 0.000000e+00 : f32
      %19 = vector.broadcast %cst_16 : f32 to vector<1x128xf32>
      %c0_17 = arith.constant 0 : index
      %c0_18 = arith.constant 0 : index
      %20 = vector.load %arg7[%c0_17, %c0_18] : memref<1x128xf32, #tpu.memory_space<vmem>>, vector<1x128xf32>
      tpu.vector_store %arg7[%c0_17, %c0_18], %19 {strides = array<i32>} : memref<1x128xf32, #tpu.memory_space<vmem>>, vector<1x128xf32>,
    } else {
    }
    %c0 = arith.constant 0 : index
    %c0_4 = arith.constant 0 : index
    %8 = vector.load %arg8[%c0, %c0_4] : memref<128x128xf32, #tpu.memory_space<vmem>>, vector<128x128xf32>
    %c0_5 = arith.constant 0 : index
    %c0_6 = arith.constant 0 : index
    %9 = vector.load %arg3[%c0_5, %c0_6] : memref<128x256xbf16, #tpu.memory_space<vmem>>, vector<128x256xbf16>
    %c0_7 = arith.constant 0 : index
    %c0_8 = arith.constant 0 : index
    %10 = vector.load %arg4[%c0_7, %c0_8] : memref<256x128xbf16, #tpu.memory_space<vmem>>, vector<256x128xbf16>
    %cst = arith.constant dense<0.000000e+00> : vector<128x128xf32>
    %11 = tpu.matmul %9, %10, %cst {dimension_numbers = #tpu.dot_dimension_numbers<[1], [0], [0], [1], [0, 0, 1, 1], [], []>} : vector<128x256xbf16>, vector<256x128xbf16>, vector<128x128xf32> -> vector<128x128xf32>
    %12 = arith.addf %8, %11 : vector<128x128xf32>
    %c0_9 = arith.constant 0 : index
    %c0_10 = arith.constant 0 : index
    %13 = vector.load %arg8[%c0_9, %c0_10] : memref<128x128xf32, #tpu.memory_space<vmem>>, vector<128x128xf32>
    tpu.vector_store %arg8[%c0_9, %c0_10], %12 {strides = array<i32>} : memref<128x128xf32, #tpu.memory_space<vmem>>, vector<128x128xf32>,
    %c0_i32_11 = arith.constant 0 : i32
    %14 = arith.cmpi eq, %arg2, %c0_i32_11 : i32
    %15 = arith.extui %14 : i1 to i32
    %c0_i32_12 = arith.constant 0 : i32
    %16 = arith.cmpi ne, %15, %c0_i32_12 : i32
    scf.if %16 {
      %c0_13 = arith.constant 0 : index
      %c0_14 = arith.constant 0 : index
      %17 = vector.load %arg8[%c0_13, %c0_14] : memref<128x128xf32, #tpu.memory_space<vmem>>, vector<128x128xf32>
      %c0_15 = arith.constant 0 : index
      %c0_16 = arith.constant 0 : index
      %18 = vector.load %arg5[%c0_15, %c0_16] : memref<128x128xf32, #tpu.memory_space<vmem>>, vector<128x128xf32>
      tpu.vector_store %arg5[%c0_15, %c0_16], %17 {strides = array<i32>} : memref<128x128xf32, #tpu.memory_space<vmem>>, vector<128x128xf32>,
      %c0_17 = arith.constant 0 : index
      %c0_18 = arith.constant 0 : index
      %19 = vector.load %arg6[%c0_17, %c0_18] : memref<1x128xf32, #tpu.memory_space<vmem>>, vector<1x128xf32>
      %cst_19 = arith.constant dense<0.000000e+00> : vector<128xf32>
      %20 = vector.multi_reduction <add>, %17, %cst_19 [0] : vector<128x128xf32> to vector<128xf32>
      %21 = vector.shape_cast %20 : vector<128xf32> to vector<1x128xf32>
      %22 = arith.addf %19, %21 : vector<1x128xf32>
      %c0_20 = arith.constant 0 : index
      %c0_21 = arith.constant 0 : index
      %23 = vector.load %arg6[%c0_20, %c0_21] : memref<1x128xf32, #tpu.memory_space<vmem>>, vector<1x128xf32>
      tpu.vector_store %arg6[%c0_20, %c0_21], %22 {strides = array<i32>} : memref<1x128xf32, #tpu.memory_space<vmem>>, vector<1x128xf32>,
      %c0_22 = arith.constant 0 : index
      %c0_23 = arith.constant 0 : index
      %24 = vector.load %arg7[%c0_22, %c0_23] : memref<1x128xf32, #tpu.memory_space<vmem>>, vector<1x128xf32>
      %25 = arith.mulf %17, %17 : vector<128x128xf32>
      %cst_24 = arith.constant dense<0.000000e+00> : vector<128xf32>
      %26 = vector.multi_reduction <add>, %25, %cst_24 [0] : vector<128x128xf32> to vector<128xf32>
      %27 = vector.shape_cast %26 : vector<128xf32> to vector<1x128xf32>
      %28 = arith.addf %24, %27 : vector<1x128xf32>
      %c0_25 = arith.constant 0 : index
      %c0_26 = arith.constant 0 : index
      %29 = vector.load %arg7[%c0_25, %c0_26] : memref<1x128xf32, #tpu.memory_space<vmem>>, vector<1x128xf32>
      tpu.vector_store %arg7[%c0_25, %c0_26], %28 {strides = array<i32>} : memref<1x128xf32, #tpu.memory_space<vmem>>, vector<1x128xf32>,
    } else {
    }
    return
  }
  func.func @transform_0(%arg0: i32, %arg1: i32, %arg2: i32) -> (i32, i32) {
    %c0_i32 = arith.constant 0 : i32
    return %arg1, %arg2 : i32, i32
  }
  func.func @transform_1(%arg0: i32, %arg1: i32, %arg2: i32) -> (i32, i32) {
    %c0_i32 = arith.constant 0 : i32
    return %arg2, %arg0 : i32, i32
  }
  func.func @transform_2(%arg0: i32, %arg1: i32, %arg2: i32) -> (i32, i32) {
    %c0_i32 = arith.constant 0 : i32
    return %arg1, %arg0 : i32, i32
  }
  func.func @transform_3(%arg0: i32, %arg1: i32, %arg2: i32) -> (i32, i32) {
    %c0_i32 = arith.constant 0 : i32
    %c0_i32_0 = arith.constant 0 : i32
    return %c0_i32, %arg0 : i32, i32
  }
  func.func @transform_4(%arg0: i32, %arg1: i32, %arg2: i32) -> (i32, i32) {
    %c0_i32 = arith.constant 0 : i32
    %c0_i32_0 = arith.constant 0 : i32
    return %c0_i32, %arg0 : i32, i32
  }
}

module attributes {stable_mosaic.version = 11 : i64} {
  func.func @_bn_act_kernel(%arg0: i32, %arg1: i32, %arg2: memref<128x128xf32, #tpu.memory_space<vmem>>, %arg3: memref<1x128xf32, #tpu.memory_space<vmem>>, %arg4: memref<1x128xf32, #tpu.memory_space<vmem>>, %arg5: memref<1x128xf32, #tpu.memory_space<vmem>>, %arg6: memref<1x128xf32, #tpu.memory_space<vmem>>, %arg7: memref<128x128xf32, #tpu.memory_space<vmem>>) attributes {dimension_semantics = [#tpu.dimension_semantics<parallel>, #tpu.dimension_semantics<parallel>], iteration_bounds = array<i64: 1, 1>, scalar_prefetch = 0 : i64, scratch_operands = 0 : i64, tpu.core_type = #tpu.core_type<tc>, window_params = [{transform_indices = @transform_0, window_bounds = array<i64: 128, 128>}, {transform_indices = @transform_1, window_bounds = array<i64: 1, 128>}, {transform_indices = @transform_2, window_bounds = array<i64: 1, 128>}, {transform_indices = @transform_3, window_bounds = array<i64: 1, 128>}, {transform_indices = @transform_4, window_bounds = array<i64: 1, 128>}, {transform_indices = @transform_5, window_bounds = array<i64: 128, 128>}]} {
    %c0 = arith.constant 0 : index
    %c0_0 = arith.constant 0 : index
    %0 = vector.load %arg3[%c0, %c0_0] : memref<1x128xf32, #tpu.memory_space<vmem>>, vector<1x128xf32>
    %cst = arith.constant 7.812500e-03 : f32
    %1 = vector.broadcast %cst : f32 to vector<1x128xf32>
    %2 = arith.mulf %0, %1 : vector<1x128xf32>
    %c0_1 = arith.constant 0 : index
    %c0_2 = arith.constant 0 : index
    %3 = vector.load %arg4[%c0_1, %c0_2] : memref<1x128xf32, #tpu.memory_space<vmem>>, vector<1x128xf32>
    %cst_3 = arith.constant 7.812500e-03 : f32
    %4 = vector.broadcast %cst_3 : f32 to vector<1x128xf32>
    %5 = arith.mulf %3, %4 : vector<1x128xf32>
    %6 = arith.mulf %2, %2 : vector<1x128xf32>
    %7 = arith.subf %5, %6 : vector<1x128xf32>
    %cst_4 = arith.constant 9.99999974E-6 : f32
    %8 = vector.broadcast %cst_4 : f32 to vector<1x128xf32>
    %9 = arith.addf %7, %8 : vector<1x128xf32>
    %10 = math.rsqrt %9 : vector<1x128xf32>
    %c0_5 = arith.constant 0 : index
    %c0_6 = arith.constant 0 : index
    %11 = vector.load %arg5[%c0_5, %c0_6] : memref<1x128xf32, #tpu.memory_space<vmem>>, vector<1x128xf32>
    %12 = arith.mulf %11, %10 : vector<1x128xf32>
    %c0_7 = arith.constant 0 : index
    %c0_8 = arith.constant 0 : index
    %13 = vector.load %arg6[%c0_7, %c0_8] : memref<1x128xf32, #tpu.memory_space<vmem>>, vector<1x128xf32>
    %14 = arith.mulf %2, %12 : vector<1x128xf32>
    %15 = arith.subf %13, %14 : vector<1x128xf32>
    %c0_9 = arith.constant 0 : index
    %c0_10 = arith.constant 0 : index
    %16 = vector.load %arg2[%c0_9, %c0_10] : memref<128x128xf32, #tpu.memory_space<vmem>>, vector<128x128xf32>
    %17 = vector.broadcast %12 : vector<1x128xf32> to vector<128x128xf32>
    %18 = arith.mulf %16, %17 : vector<128x128xf32>
    %19 = vector.broadcast %15 : vector<1x128xf32> to vector<128x128xf32>
    %20 = arith.addf %18, %19 : vector<128x128xf32>
    %cst_11 = arith.constant 0.000000e+00 : f32
    %21 = vector.broadcast %cst_11 : f32 to vector<128x128xf32>
    %22 = arith.cmpf oge, %20, %21 : vector<128x128xf32>
    %cst_12 = arith.constant 2.000000e-01 : f32
    %23 = vector.broadcast %cst_12 : f32 to vector<128x128xf32>
    %24 = arith.mulf %20, %23 : vector<128x128xf32>
    %25 = arith.select %22, %20, %24 : vector<128x128xi1>, vector<128x128xf32>
    %c0_13 = arith.constant 0 : index
    %c0_14 = arith.constant 0 : index
    %26 = vector.load %arg7[%c0_13, %c0_14] : memref<128x128xf32, #tpu.memory_space<vmem>>, vector<128x128xf32>
    tpu.vector_store %arg7[%c0_13, %c0_14], %25 {strides = array<i32>} : memref<128x128xf32, #tpu.memory_space<vmem>>, vector<128x128xf32>,
    return
  }
  func.func @transform_0(%arg0: i32, %arg1: i32) -> (i32, i32) {
    %c0_i32 = arith.constant 0 : i32
    return %arg0, %arg1 : i32, i32
  }
  func.func @transform_1(%arg0: i32, %arg1: i32) -> (i32, i32) {
    %c0_i32 = arith.constant 0 : i32
    %c0_i32_0 = arith.constant 0 : i32
    return %c0_i32, %arg1 : i32, i32
  }
  func.func @transform_2(%arg0: i32, %arg1: i32) -> (i32, i32) {
    %c0_i32 = arith.constant 0 : i32
    %c0_i32_0 = arith.constant 0 : i32
    return %c0_i32, %arg1 : i32, i32
  }
  func.func @transform_3(%arg0: i32, %arg1: i32) -> (i32, i32) {
    %c0_i32 = arith.constant 0 : i32
    %c0_i32_0 = arith.constant 0 : i32
    return %c0_i32, %arg1 : i32, i32
  }
  func.func @transform_4(%arg0: i32, %arg1: i32) -> (i32, i32) {
    %c0_i32 = arith.constant 0 : i32
    %c0_i32_0 = arith.constant 0 : i32
    return %c0_i32, %arg1 : i32, i32
  }
  func.func @transform_5(%arg0: i32, %arg1: i32) -> (i32, i32) {
    %c0_i32 = arith.constant 0 : i32
    return %arg0, %arg1 : i32, i32
  }
}

module attributes {stable_mosaic.version = 11 : i64} {
  func.func @_gemm_stats_kernel(%arg0: i32, %arg1: i32, %arg2: i32, %arg3: memref<32x512xbf16, #tpu.memory_space<vmem>>, %arg4: memref<512x128xbf16, #tpu.memory_space<vmem>>, %arg5: memref<32x128xf32, #tpu.memory_space<vmem>>, %arg6: memref<1x128xf32, #tpu.memory_space<vmem>>, %arg7: memref<1x128xf32, #tpu.memory_space<vmem>>, %arg8: memref<32x128xf32, #tpu.memory_space<vmem>>) attributes {dimension_semantics = [#tpu.dimension_semantics<parallel>, #tpu.dimension_semantics<arbitrary>, #tpu.dimension_semantics<arbitrary>], iteration_bounds = array<i64: 1, 1, 1>, scalar_prefetch = 0 : i64, scratch_operands = 1 : i64, tpu.core_type = #tpu.core_type<tc>, window_params = [{transform_indices = @transform_0, window_bounds = array<i64: 32, 512>}, {transform_indices = @transform_1, window_bounds = array<i64: 512, 128>}, {transform_indices = @transform_2, window_bounds = array<i64: 32, 128>}, {transform_indices = @transform_3, window_bounds = array<i64: 1, 128>}, {transform_indices = @transform_4, window_bounds = array<i64: 1, 128>}]} {
    %c0_i32 = arith.constant 0 : i32
    %0 = arith.cmpi eq, %arg2, %c0_i32 : i32
    %1 = arith.extui %0 : i1 to i32
    %c0_i32_0 = arith.constant 0 : i32
    %2 = arith.cmpi ne, %1, %c0_i32_0 : i32
    scf.if %2 {
      %cst_13 = arith.constant 0.000000e+00 : f32
      %17 = vector.broadcast %cst_13 : f32 to vector<32x128xf32>
      %c0_14 = arith.constant 0 : index
      %c0_15 = arith.constant 0 : index
      %18 = vector.load %arg8[%c0_14, %c0_15] : memref<32x128xf32, #tpu.memory_space<vmem>>, vector<32x128xf32>
      tpu.vector_store %arg8[%c0_14, %c0_15], %17 {strides = array<i32>} : memref<32x128xf32, #tpu.memory_space<vmem>>, vector<32x128xf32>,
    } else {
    }
    %c0_i32_1 = arith.constant 0 : i32
    %3 = arith.cmpi eq, %arg1, %c0_i32_1 : i32
    %c0_i32_2 = arith.constant 0 : i32
    %4 = arith.cmpi eq, %arg2, %c0_i32_2 : i32
    %5 = arith.andi %3, %4 : i1
    %6 = arith.extui %5 : i1 to i32
    %c0_i32_3 = arith.constant 0 : i32
    %7 = arith.cmpi ne, %6, %c0_i32_3 : i32
    scf.if %7 {
      %cst_13 = arith.constant 0.000000e+00 : f32
      %17 = vector.broadcast %cst_13 : f32 to vector<1x128xf32>
      %c0_14 = arith.constant 0 : index
      %c0_15 = arith.constant 0 : index
      %18 = vector.load %arg6[%c0_14, %c0_15] : memref<1x128xf32, #tpu.memory_space<vmem>>, vector<1x128xf32>
      tpu.vector_store %arg6[%c0_14, %c0_15], %17 {strides = array<i32>} : memref<1x128xf32, #tpu.memory_space<vmem>>, vector<1x128xf32>,
      %cst_16 = arith.constant 0.000000e+00 : f32
      %19 = vector.broadcast %cst_16 : f32 to vector<1x128xf32>
      %c0_17 = arith.constant 0 : index
      %c0_18 = arith.constant 0 : index
      %20 = vector.load %arg7[%c0_17, %c0_18] : memref<1x128xf32, #tpu.memory_space<vmem>>, vector<1x128xf32>
      tpu.vector_store %arg7[%c0_17, %c0_18], %19 {strides = array<i32>} : memref<1x128xf32, #tpu.memory_space<vmem>>, vector<1x128xf32>,
    } else {
    }
    %c0 = arith.constant 0 : index
    %c0_4 = arith.constant 0 : index
    %8 = vector.load %arg8[%c0, %c0_4] : memref<32x128xf32, #tpu.memory_space<vmem>>, vector<32x128xf32>
    %c0_5 = arith.constant 0 : index
    %c0_6 = arith.constant 0 : index
    %9 = vector.load %arg3[%c0_5, %c0_6] : memref<32x512xbf16, #tpu.memory_space<vmem>>, vector<32x512xbf16>
    %c0_7 = arith.constant 0 : index
    %c0_8 = arith.constant 0 : index
    %10 = vector.load %arg4[%c0_7, %c0_8] : memref<512x128xbf16, #tpu.memory_space<vmem>>, vector<512x128xbf16>
    %cst = arith.constant dense<0.000000e+00> : vector<32x128xf32>
    %11 = tpu.matmul %9, %10, %cst {dimension_numbers = #tpu.dot_dimension_numbers<[1], [0], [0], [1], [0, 0, 1, 1], [], []>} : vector<32x512xbf16>, vector<512x128xbf16>, vector<32x128xf32> -> vector<32x128xf32>
    %12 = arith.addf %8, %11 : vector<32x128xf32>
    %c0_9 = arith.constant 0 : index
    %c0_10 = arith.constant 0 : index
    %13 = vector.load %arg8[%c0_9, %c0_10] : memref<32x128xf32, #tpu.memory_space<vmem>>, vector<32x128xf32>
    tpu.vector_store %arg8[%c0_9, %c0_10], %12 {strides = array<i32>} : memref<32x128xf32, #tpu.memory_space<vmem>>, vector<32x128xf32>,
    %c0_i32_11 = arith.constant 0 : i32
    %14 = arith.cmpi eq, %arg2, %c0_i32_11 : i32
    %15 = arith.extui %14 : i1 to i32
    %c0_i32_12 = arith.constant 0 : i32
    %16 = arith.cmpi ne, %15, %c0_i32_12 : i32
    scf.if %16 {
      %c0_13 = arith.constant 0 : index
      %c0_14 = arith.constant 0 : index
      %17 = vector.load %arg8[%c0_13, %c0_14] : memref<32x128xf32, #tpu.memory_space<vmem>>, vector<32x128xf32>
      %c0_15 = arith.constant 0 : index
      %c0_16 = arith.constant 0 : index
      %18 = vector.load %arg5[%c0_15, %c0_16] : memref<32x128xf32, #tpu.memory_space<vmem>>, vector<32x128xf32>
      tpu.vector_store %arg5[%c0_15, %c0_16], %17 {strides = array<i32>} : memref<32x128xf32, #tpu.memory_space<vmem>>, vector<32x128xf32>,
      %c0_17 = arith.constant 0 : index
      %c0_18 = arith.constant 0 : index
      %19 = vector.load %arg6[%c0_17, %c0_18] : memref<1x128xf32, #tpu.memory_space<vmem>>, vector<1x128xf32>
      %cst_19 = arith.constant dense<0.000000e+00> : vector<128xf32>
      %20 = vector.multi_reduction <add>, %17, %cst_19 [0] : vector<32x128xf32> to vector<128xf32>
      %21 = vector.shape_cast %20 : vector<128xf32> to vector<1x128xf32>
      %22 = arith.addf %19, %21 : vector<1x128xf32>
      %c0_20 = arith.constant 0 : index
      %c0_21 = arith.constant 0 : index
      %23 = vector.load %arg6[%c0_20, %c0_21] : memref<1x128xf32, #tpu.memory_space<vmem>>, vector<1x128xf32>
      tpu.vector_store %arg6[%c0_20, %c0_21], %22 {strides = array<i32>} : memref<1x128xf32, #tpu.memory_space<vmem>>, vector<1x128xf32>,
      %c0_22 = arith.constant 0 : index
      %c0_23 = arith.constant 0 : index
      %24 = vector.load %arg7[%c0_22, %c0_23] : memref<1x128xf32, #tpu.memory_space<vmem>>, vector<1x128xf32>
      %25 = arith.mulf %17, %17 : vector<32x128xf32>
      %cst_24 = arith.constant dense<0.000000e+00> : vector<128xf32>
      %26 = vector.multi_reduction <add>, %25, %cst_24 [0] : vector<32x128xf32> to vector<128xf32>
      %27 = vector.shape_cast %26 : vector<128xf32> to vector<1x128xf32>
      %28 = arith.addf %24, %27 : vector<1x128xf32>
      %c0_25 = arith.constant 0 : index
      %c0_26 = arith.constant 0 : index
      %29 = vector.load %arg7[%c0_25, %c0_26] : memref<1x128xf32, #tpu.memory_space<vmem>>, vector<1x128xf32>
      tpu.vector_store %arg7[%c0_25, %c0_26], %28 {strides = array<i32>} : memref<1x128xf32, #tpu.memory_space<vmem>>, vector<1x128xf32>,
    } else {
    }
    return
  }
  func.func @transform_0(%arg0: i32, %arg1: i32, %arg2: i32) -> (i32, i32) {
    %c0_i32 = arith.constant 0 : i32
    return %arg1, %arg2 : i32, i32
  }
  func.func @transform_1(%arg0: i32, %arg1: i32, %arg2: i32) -> (i32, i32) {
    %c0_i32 = arith.constant 0 : i32
    return %arg2, %arg0 : i32, i32
  }
  func.func @transform_2(%arg0: i32, %arg1: i32, %arg2: i32) -> (i32, i32) {
    %c0_i32 = arith.constant 0 : i32
    return %arg1, %arg0 : i32, i32
  }
  func.func @transform_3(%arg0: i32, %arg1: i32, %arg2: i32) -> (i32, i32) {
    %c0_i32 = arith.constant 0 : i32
    %c0_i32_0 = arith.constant 0 : i32
    return %c0_i32, %arg0 : i32, i32
  }
  func.func @transform_4(%arg0: i32, %arg1: i32, %arg2: i32) -> (i32, i32) {
    %c0_i32 = arith.constant 0 : i32
    %c0_i32_0 = arith.constant 0 : i32
    return %c0_i32, %arg0 : i32, i32
  }
}

module attributes {stable_mosaic.version = 11 : i64} {
  func.func @_bn_act_kernel(%arg0: i32, %arg1: i32, %arg2: memref<32x128xf32, #tpu.memory_space<vmem>>, %arg3: memref<1x128xf32, #tpu.memory_space<vmem>>, %arg4: memref<1x128xf32, #tpu.memory_space<vmem>>, %arg5: memref<1x128xf32, #tpu.memory_space<vmem>>, %arg6: memref<1x128xf32, #tpu.memory_space<vmem>>, %arg7: memref<32x128xf32, #tpu.memory_space<vmem>>) attributes {dimension_semantics = [#tpu.dimension_semantics<parallel>, #tpu.dimension_semantics<parallel>], iteration_bounds = array<i64: 1, 1>, scalar_prefetch = 0 : i64, scratch_operands = 0 : i64, tpu.core_type = #tpu.core_type<tc>, window_params = [{transform_indices = @transform_0, window_bounds = array<i64: 32, 128>}, {transform_indices = @transform_1, window_bounds = array<i64: 1, 128>}, {transform_indices = @transform_2, window_bounds = array<i64: 1, 128>}, {transform_indices = @transform_3, window_bounds = array<i64: 1, 128>}, {transform_indices = @transform_4, window_bounds = array<i64: 1, 128>}, {transform_indices = @transform_5, window_bounds = array<i64: 32, 128>}]} {
    %c0 = arith.constant 0 : index
    %c0_0 = arith.constant 0 : index
    %0 = vector.load %arg3[%c0, %c0_0] : memref<1x128xf32, #tpu.memory_space<vmem>>, vector<1x128xf32>
    %cst = arith.constant 3.125000e-02 : f32
    %1 = vector.broadcast %cst : f32 to vector<1x128xf32>
    %2 = arith.mulf %0, %1 : vector<1x128xf32>
    %c0_1 = arith.constant 0 : index
    %c0_2 = arith.constant 0 : index
    %3 = vector.load %arg4[%c0_1, %c0_2] : memref<1x128xf32, #tpu.memory_space<vmem>>, vector<1x128xf32>
    %cst_3 = arith.constant 3.125000e-02 : f32
    %4 = vector.broadcast %cst_3 : f32 to vector<1x128xf32>
    %5 = arith.mulf %3, %4 : vector<1x128xf32>
    %6 = arith.mulf %2, %2 : vector<1x128xf32>
    %7 = arith.subf %5, %6 : vector<1x128xf32>
    %cst_4 = arith.constant 9.99999974E-6 : f32
    %8 = vector.broadcast %cst_4 : f32 to vector<1x128xf32>
    %9 = arith.addf %7, %8 : vector<1x128xf32>
    %10 = math.rsqrt %9 : vector<1x128xf32>
    %c0_5 = arith.constant 0 : index
    %c0_6 = arith.constant 0 : index
    %11 = vector.load %arg5[%c0_5, %c0_6] : memref<1x128xf32, #tpu.memory_space<vmem>>, vector<1x128xf32>
    %12 = arith.mulf %11, %10 : vector<1x128xf32>
    %c0_7 = arith.constant 0 : index
    %c0_8 = arith.constant 0 : index
    %13 = vector.load %arg6[%c0_7, %c0_8] : memref<1x128xf32, #tpu.memory_space<vmem>>, vector<1x128xf32>
    %14 = arith.mulf %2, %12 : vector<1x128xf32>
    %15 = arith.subf %13, %14 : vector<1x128xf32>
    %c0_9 = arith.constant 0 : index
    %c0_10 = arith.constant 0 : index
    %16 = vector.load %arg2[%c0_9, %c0_10] : memref<32x128xf32, #tpu.memory_space<vmem>>, vector<32x128xf32>
    %17 = vector.broadcast %12 : vector<1x128xf32> to vector<32x128xf32>
    %18 = arith.mulf %16, %17 : vector<32x128xf32>
    %19 = vector.broadcast %15 : vector<1x128xf32> to vector<32x128xf32>
    %20 = arith.addf %18, %19 : vector<32x128xf32>
    %cst_11 = arith.constant 0.000000e+00 : f32
    %21 = vector.broadcast %cst_11 : f32 to vector<32x128xf32>
    %22 = arith.cmpf oge, %20, %21 : vector<32x128xf32>
    %cst_12 = arith.constant 2.000000e-01 : f32
    %23 = vector.broadcast %cst_12 : f32 to vector<32x128xf32>
    %24 = arith.mulf %20, %23 : vector<32x128xf32>
    %25 = arith.select %22, %20, %24 : vector<32x128xi1>, vector<32x128xf32>
    %c0_13 = arith.constant 0 : index
    %c0_14 = arith.constant 0 : index
    %26 = vector.load %arg7[%c0_13, %c0_14] : memref<32x128xf32, #tpu.memory_space<vmem>>, vector<32x128xf32>
    tpu.vector_store %arg7[%c0_13, %c0_14], %25 {strides = array<i32>} : memref<32x128xf32, #tpu.memory_space<vmem>>, vector<32x128xf32>,
    return
  }
  func.func @transform_0(%arg0: i32, %arg1: i32) -> (i32, i32) {
    %c0_i32 = arith.constant 0 : i32
    return %arg0, %arg1 : i32, i32
  }
  func.func @transform_1(%arg0: i32, %arg1: i32) -> (i32, i32) {
    %c0_i32 = arith.constant 0 : i32
    %c0_i32_0 = arith.constant 0 : i32
    return %c0_i32, %arg1 : i32, i32
  }
  func.func @transform_2(%arg0: i32, %arg1: i32) -> (i32, i32) {
    %c0_i32 = arith.constant 0 : i32
    %c0_i32_0 = arith.constant 0 : i32
    return %c0_i32, %arg1 : i32, i32
  }
  func.func @transform_3(%arg0: i32, %arg1: i32) -> (i32, i32) {
    %c0_i32 = arith.constant 0 : i32
    %c0_i32_0 = arith.constant 0 : i32
    return %c0_i32, %arg1 : i32, i32
  }
  func.func @transform_4(%arg0: i32, %arg1: i32) -> (i32, i32) {
    %c0_i32 = arith.constant 0 : i32
    %c0_i32_0 = arith.constant 0 : i32
    return %c0_i32, %arg1 : i32, i32
  }
  func.func @transform_5(%arg0: i32, %arg1: i32) -> (i32, i32) {
    %c0_i32 = arith.constant 0 : i32
    return %arg0, %arg1 : i32, i32
  }
}

module attributes {stable_mosaic.version = 11 : i64} {
  func.func @_gemm_stats_kernel(%arg0: i32, %arg1: i32, %arg2: i32, %arg3: memref<24x512xbf16, #tpu.memory_space<vmem>>, %arg4: memref<512x128xbf16, #tpu.memory_space<vmem>>, %arg5: memref<24x128xf32, #tpu.memory_space<vmem>>, %arg6: memref<1x128xf32, #tpu.memory_space<vmem>>, %arg7: memref<1x128xf32, #tpu.memory_space<vmem>>, %arg8: memref<24x128xf32, #tpu.memory_space<vmem>>) attributes {dimension_semantics = [#tpu.dimension_semantics<parallel>, #tpu.dimension_semantics<arbitrary>, #tpu.dimension_semantics<arbitrary>], iteration_bounds = array<i64: 1, 1, 2>, scalar_prefetch = 0 : i64, scratch_operands = 1 : i64, tpu.core_type = #tpu.core_type<tc>, window_params = [{transform_indices = @transform_0, window_bounds = array<i64: 24, 512>}, {transform_indices = @transform_1, window_bounds = array<i64: 512, 128>}, {transform_indices = @transform_2, window_bounds = array<i64: 24, 128>}, {transform_indices = @transform_3, window_bounds = array<i64: 1, 128>}, {transform_indices = @transform_4, window_bounds = array<i64: 1, 128>}]} {
    %c0_i32 = arith.constant 0 : i32
    %0 = arith.cmpi eq, %arg2, %c0_i32 : i32
    %1 = arith.extui %0 : i1 to i32
    %c0_i32_0 = arith.constant 0 : i32
    %2 = arith.cmpi ne, %1, %c0_i32_0 : i32
    scf.if %2 {
      %cst_12 = arith.constant 0.000000e+00 : f32
      %17 = vector.broadcast %cst_12 : f32 to vector<24x128xf32>
      %c0_13 = arith.constant 0 : index
      %c0_14 = arith.constant 0 : index
      %18 = vector.load %arg8[%c0_13, %c0_14] : memref<24x128xf32, #tpu.memory_space<vmem>>, vector<24x128xf32>
      tpu.vector_store %arg8[%c0_13, %c0_14], %17 {strides = array<i32>} : memref<24x128xf32, #tpu.memory_space<vmem>>, vector<24x128xf32>,
    } else {
    }
    %c0_i32_1 = arith.constant 0 : i32
    %3 = arith.cmpi eq, %arg1, %c0_i32_1 : i32
    %c0_i32_2 = arith.constant 0 : i32
    %4 = arith.cmpi eq, %arg2, %c0_i32_2 : i32
    %5 = arith.andi %3, %4 : i1
    %6 = arith.extui %5 : i1 to i32
    %c0_i32_3 = arith.constant 0 : i32
    %7 = arith.cmpi ne, %6, %c0_i32_3 : i32
    scf.if %7 {
      %cst_12 = arith.constant 0.000000e+00 : f32
      %17 = vector.broadcast %cst_12 : f32 to vector<1x128xf32>
      %c0_13 = arith.constant 0 : index
      %c0_14 = arith.constant 0 : index
      %18 = vector.load %arg6[%c0_13, %c0_14] : memref<1x128xf32, #tpu.memory_space<vmem>>, vector<1x128xf32>
      tpu.vector_store %arg6[%c0_13, %c0_14], %17 {strides = array<i32>} : memref<1x128xf32, #tpu.memory_space<vmem>>, vector<1x128xf32>,
      %cst_15 = arith.constant 0.000000e+00 : f32
      %19 = vector.broadcast %cst_15 : f32 to vector<1x128xf32>
      %c0_16 = arith.constant 0 : index
      %c0_17 = arith.constant 0 : index
      %20 = vector.load %arg7[%c0_16, %c0_17] : memref<1x128xf32, #tpu.memory_space<vmem>>, vector<1x128xf32>
      tpu.vector_store %arg7[%c0_16, %c0_17], %19 {strides = array<i32>} : memref<1x128xf32, #tpu.memory_space<vmem>>, vector<1x128xf32>,
    } else {
    }
    %c0 = arith.constant 0 : index
    %c0_4 = arith.constant 0 : index
    %8 = vector.load %arg8[%c0, %c0_4] : memref<24x128xf32, #tpu.memory_space<vmem>>, vector<24x128xf32>
    %c0_5 = arith.constant 0 : index
    %c0_6 = arith.constant 0 : index
    %9 = vector.load %arg3[%c0_5, %c0_6] : memref<24x512xbf16, #tpu.memory_space<vmem>>, vector<24x512xbf16>
    %c0_7 = arith.constant 0 : index
    %c0_8 = arith.constant 0 : index
    %10 = vector.load %arg4[%c0_7, %c0_8] : memref<512x128xbf16, #tpu.memory_space<vmem>>, vector<512x128xbf16>
    %cst = arith.constant dense<0.000000e+00> : vector<24x128xf32>
    %11 = tpu.matmul %9, %10, %cst {dimension_numbers = #tpu.dot_dimension_numbers<[1], [0], [0], [1], [0, 0, 1, 1], [], []>} : vector<24x512xbf16>, vector<512x128xbf16>, vector<24x128xf32> -> vector<24x128xf32>
    %12 = arith.addf %8, %11 : vector<24x128xf32>
    %c0_9 = arith.constant 0 : index
    %c0_10 = arith.constant 0 : index
    %13 = vector.load %arg8[%c0_9, %c0_10] : memref<24x128xf32, #tpu.memory_space<vmem>>, vector<24x128xf32>
    tpu.vector_store %arg8[%c0_9, %c0_10], %12 {strides = array<i32>} : memref<24x128xf32, #tpu.memory_space<vmem>>, vector<24x128xf32>,
    %c1_i32 = arith.constant 1 : i32
    %14 = arith.cmpi eq, %arg2, %c1_i32 : i32
    %15 = arith.extui %14 : i1 to i32
    %c0_i32_11 = arith.constant 0 : i32
    %16 = arith.cmpi ne, %15, %c0_i32_11 : i32
    scf.if %16 {
      %c0_12 = arith.constant 0 : index
      %c0_13 = arith.constant 0 : index
      %17 = vector.load %arg8[%c0_12, %c0_13] : memref<24x128xf32, #tpu.memory_space<vmem>>, vector<24x128xf32>
      %c0_14 = arith.constant 0 : index
      %c0_15 = arith.constant 0 : index
      %18 = vector.load %arg5[%c0_14, %c0_15] : memref<24x128xf32, #tpu.memory_space<vmem>>, vector<24x128xf32>
      tpu.vector_store %arg5[%c0_14, %c0_15], %17 {strides = array<i32>} : memref<24x128xf32, #tpu.memory_space<vmem>>, vector<24x128xf32>,
      %c0_16 = arith.constant 0 : index
      %c0_17 = arith.constant 0 : index
      %19 = vector.load %arg6[%c0_16, %c0_17] : memref<1x128xf32, #tpu.memory_space<vmem>>, vector<1x128xf32>
      %cst_18 = arith.constant dense<0.000000e+00> : vector<128xf32>
      %20 = vector.multi_reduction <add>, %17, %cst_18 [0] : vector<24x128xf32> to vector<128xf32>
      %21 = vector.shape_cast %20 : vector<128xf32> to vector<1x128xf32>
      %22 = arith.addf %19, %21 : vector<1x128xf32>
      %c0_19 = arith.constant 0 : index
      %c0_20 = arith.constant 0 : index
      %23 = vector.load %arg6[%c0_19, %c0_20] : memref<1x128xf32, #tpu.memory_space<vmem>>, vector<1x128xf32>
      tpu.vector_store %arg6[%c0_19, %c0_20], %22 {strides = array<i32>} : memref<1x128xf32, #tpu.memory_space<vmem>>, vector<1x128xf32>,
      %c0_21 = arith.constant 0 : index
      %c0_22 = arith.constant 0 : index
      %24 = vector.load %arg7[%c0_21, %c0_22] : memref<1x128xf32, #tpu.memory_space<vmem>>, vector<1x128xf32>
      %25 = arith.mulf %17, %17 : vector<24x128xf32>
      %cst_23 = arith.constant dense<0.000000e+00> : vector<128xf32>
      %26 = vector.multi_reduction <add>, %25, %cst_23 [0] : vector<24x128xf32> to vector<128xf32>
      %27 = vector.shape_cast %26 : vector<128xf32> to vector<1x128xf32>
      %28 = arith.addf %24, %27 : vector<1x128xf32>
      %c0_24 = arith.constant 0 : index
      %c0_25 = arith.constant 0 : index
      %29 = vector.load %arg7[%c0_24, %c0_25] : memref<1x128xf32, #tpu.memory_space<vmem>>, vector<1x128xf32>
      tpu.vector_store %arg7[%c0_24, %c0_25], %28 {strides = array<i32>} : memref<1x128xf32, #tpu.memory_space<vmem>>, vector<1x128xf32>,
    } else {
    }
    return
  }
  func.func @transform_0(%arg0: i32, %arg1: i32, %arg2: i32) -> (i32, i32) {
    %c0_i32 = arith.constant 0 : i32
    return %arg1, %arg2 : i32, i32
  }
  func.func @transform_1(%arg0: i32, %arg1: i32, %arg2: i32) -> (i32, i32) {
    %c0_i32 = arith.constant 0 : i32
    return %arg2, %arg0 : i32, i32
  }
  func.func @transform_2(%arg0: i32, %arg1: i32, %arg2: i32) -> (i32, i32) {
    %c0_i32 = arith.constant 0 : i32
    return %arg1, %arg0 : i32, i32
  }
  func.func @transform_3(%arg0: i32, %arg1: i32, %arg2: i32) -> (i32, i32) {
    %c0_i32 = arith.constant 0 : i32
    %c0_i32_0 = arith.constant 0 : i32
    return %c0_i32, %arg0 : i32, i32
  }
  func.func @transform_4(%arg0: i32, %arg1: i32, %arg2: i32) -> (i32, i32) {
    %c0_i32 = arith.constant 0 : i32
    %c0_i32_0 = arith.constant 0 : i32
    return %c0_i32, %arg0 : i32, i32
  }
}

module attributes {stable_mosaic.version = 11 : i64} {
  func.func @_bn_act_kernel(%arg0: i32, %arg1: i32, %arg2: memref<24x128xf32, #tpu.memory_space<vmem>>, %arg3: memref<1x128xf32, #tpu.memory_space<vmem>>, %arg4: memref<1x128xf32, #tpu.memory_space<vmem>>, %arg5: memref<1x128xf32, #tpu.memory_space<vmem>>, %arg6: memref<1x128xf32, #tpu.memory_space<vmem>>, %arg7: memref<24x128xf32, #tpu.memory_space<vmem>>) attributes {dimension_semantics = [#tpu.dimension_semantics<parallel>, #tpu.dimension_semantics<parallel>], iteration_bounds = array<i64: 1, 1>, scalar_prefetch = 0 : i64, scratch_operands = 0 : i64, tpu.core_type = #tpu.core_type<tc>, window_params = [{transform_indices = @transform_0, window_bounds = array<i64: 24, 128>}, {transform_indices = @transform_1, window_bounds = array<i64: 1, 128>}, {transform_indices = @transform_2, window_bounds = array<i64: 1, 128>}, {transform_indices = @transform_3, window_bounds = array<i64: 1, 128>}, {transform_indices = @transform_4, window_bounds = array<i64: 1, 128>}, {transform_indices = @transform_5, window_bounds = array<i64: 24, 128>}]} {
    %c0 = arith.constant 0 : index
    %c0_0 = arith.constant 0 : index
    %0 = vector.load %arg3[%c0, %c0_0] : memref<1x128xf32, #tpu.memory_space<vmem>>, vector<1x128xf32>
    %cst = arith.constant 0.055555556 : f32
    %1 = vector.broadcast %cst : f32 to vector<1x128xf32>
    %2 = arith.mulf %0, %1 : vector<1x128xf32>
    %c0_1 = arith.constant 0 : index
    %c0_2 = arith.constant 0 : index
    %3 = vector.load %arg4[%c0_1, %c0_2] : memref<1x128xf32, #tpu.memory_space<vmem>>, vector<1x128xf32>
    %cst_3 = arith.constant 0.055555556 : f32
    %4 = vector.broadcast %cst_3 : f32 to vector<1x128xf32>
    %5 = arith.mulf %3, %4 : vector<1x128xf32>
    %6 = arith.mulf %2, %2 : vector<1x128xf32>
    %7 = arith.subf %5, %6 : vector<1x128xf32>
    %cst_4 = arith.constant 9.99999974E-6 : f32
    %8 = vector.broadcast %cst_4 : f32 to vector<1x128xf32>
    %9 = arith.addf %7, %8 : vector<1x128xf32>
    %10 = math.rsqrt %9 : vector<1x128xf32>
    %c0_5 = arith.constant 0 : index
    %c0_6 = arith.constant 0 : index
    %11 = vector.load %arg5[%c0_5, %c0_6] : memref<1x128xf32, #tpu.memory_space<vmem>>, vector<1x128xf32>
    %12 = arith.mulf %11, %10 : vector<1x128xf32>
    %c0_7 = arith.constant 0 : index
    %c0_8 = arith.constant 0 : index
    %13 = vector.load %arg6[%c0_7, %c0_8] : memref<1x128xf32, #tpu.memory_space<vmem>>, vector<1x128xf32>
    %14 = arith.mulf %2, %12 : vector<1x128xf32>
    %15 = arith.subf %13, %14 : vector<1x128xf32>
    %c0_9 = arith.constant 0 : index
    %c0_10 = arith.constant 0 : index
    %16 = vector.load %arg2[%c0_9, %c0_10] : memref<24x128xf32, #tpu.memory_space<vmem>>, vector<24x128xf32>
    %17 = vector.broadcast %12 : vector<1x128xf32> to vector<24x128xf32>
    %18 = arith.mulf %16, %17 : vector<24x128xf32>
    %19 = vector.broadcast %15 : vector<1x128xf32> to vector<24x128xf32>
    %20 = arith.addf %18, %19 : vector<24x128xf32>
    %cst_11 = arith.constant 0.000000e+00 : f32
    %21 = vector.broadcast %cst_11 : f32 to vector<24x128xf32>
    %22 = arith.cmpf oge, %20, %21 : vector<24x128xf32>
    %cst_12 = arith.constant 2.000000e-01 : f32
    %23 = vector.broadcast %cst_12 : f32 to vector<24x128xf32>
    %24 = arith.mulf %20, %23 : vector<24x128xf32>
    %25 = arith.select %22, %20, %24 : vector<24x128xi1>, vector<24x128xf32>
    %c0_13 = arith.constant 0 : index
    %c0_14 = arith.constant 0 : index
    %26 = vector.load %arg7[%c0_13, %c0_14] : memref<24x128xf32, #tpu.memory_space<vmem>>, vector<24x128xf32>
    tpu.vector_store %arg7[%c0_13, %c0_14], %25 {strides = array<i32>} : memref<24x128xf32, #tpu.memory_space<vmem>>, vector<24x128xf32>,
    return
  }
  func.func @transform_0(%arg0: i32, %arg1: i32) -> (i32, i32) {
    %c0_i32 = arith.constant 0 : i32
    return %arg0, %arg1 : i32, i32
  }
  func.func @transform_1(%arg0: i32, %arg1: i32) -> (i32, i32) {
    %c0_i32 = arith.constant 0 : i32
    %c0_i32_0 = arith.constant 0 : i32
    return %c0_i32, %arg1 : i32, i32
  }
  func.func @transform_2(%arg0: i32, %arg1: i32) -> (i32, i32) {
    %c0_i32 = arith.constant 0 : i32
    %c0_i32_0 = arith.constant 0 : i32
    return %c0_i32, %arg1 : i32, i32
  }
  func.func @transform_3(%arg0: i32, %arg1: i32) -> (i32, i32) {
    %c0_i32 = arith.constant 0 : i32
    %c0_i32_0 = arith.constant 0 : i32
    return %c0_i32, %arg1 : i32, i32
  }
  func.func @transform_4(%arg0: i32, %arg1: i32) -> (i32, i32) {
    %c0_i32 = arith.constant 0 : i32
    %c0_i32_0 = arith.constant 0 : i32
    return %c0_i32, %arg1 : i32, i32
  }
  func.func @transform_5(%arg0: i32, %arg1: i32) -> (i32, i32) {
    %c0_i32 = arith.constant 0 : i32
    return %arg0, %arg1 : i32, i32
  }
}

module attributes {stable_mosaic.version = 11 : i64} {
  func.func @_gemm_bias_act_kernel(%arg0: i32, %arg1: i32, %arg2: i32, %arg3: memref<8x512xbf16, #tpu.memory_space<vmem>>, %arg4: memref<512x128xbf16, #tpu.memory_space<vmem>>, %arg5: memref<1x128xf32, #tpu.memory_space<vmem>>, %arg6: memref<8x128xf32, #tpu.memory_space<vmem>>, %arg7: memref<8x128xf32, #tpu.memory_space<vmem>>) attributes {dimension_semantics = [#tpu.dimension_semantics<parallel>, #tpu.dimension_semantics<parallel>, #tpu.dimension_semantics<arbitrary>], iteration_bounds = array<i64: 1, 1, 4>, scalar_prefetch = 0 : i64, scratch_operands = 1 : i64, tpu.core_type = #tpu.core_type<tc>, window_params = [{transform_indices = @transform_0, window_bounds = array<i64: 8, 512>}, {transform_indices = @transform_1, window_bounds = array<i64: 512, 128>}, {transform_indices = @transform_2, window_bounds = array<i64: 1, 128>}, {transform_indices = @transform_3, window_bounds = array<i64: 8, 128>}]} {
    %c0_i32 = arith.constant 0 : i32
    %0 = arith.cmpi eq, %arg2, %c0_i32 : i32
    %1 = arith.extui %0 : i1 to i32
    %c0_i32_0 = arith.constant 0 : i32
    %2 = arith.cmpi ne, %1, %c0_i32_0 : i32
    scf.if %2 {
      %cst_9 = arith.constant 0.000000e+00 : f32
      %12 = vector.broadcast %cst_9 : f32 to vector<8x128xf32>
      %c0_10 = arith.constant 0 : index
      %c0_11 = arith.constant 0 : index
      %13 = vector.load %arg7[%c0_10, %c0_11] : memref<8x128xf32, #tpu.memory_space<vmem>>, vector<8x128xf32>
      tpu.vector_store %arg7[%c0_10, %c0_11], %12 {strides = array<i32>} : memref<8x128xf32, #tpu.memory_space<vmem>>, vector<8x128xf32>,
    } else {
    }
    %c0 = arith.constant 0 : index
    %c0_1 = arith.constant 0 : index
    %3 = vector.load %arg7[%c0, %c0_1] : memref<8x128xf32, #tpu.memory_space<vmem>>, vector<8x128xf32>
    %c0_2 = arith.constant 0 : index
    %c0_3 = arith.constant 0 : index
    %4 = vector.load %arg3[%c0_2, %c0_3] : memref<8x512xbf16, #tpu.memory_space<vmem>>, vector<8x512xbf16>
    %c0_4 = arith.constant 0 : index
    %c0_5 = arith.constant 0 : index
    %5 = vector.load %arg4[%c0_4, %c0_5] : memref<512x128xbf16, #tpu.memory_space<vmem>>, vector<512x128xbf16>
    %cst = arith.constant dense<0.000000e+00> : vector<8x128xf32>
    %6 = tpu.matmul %4, %5, %cst {dimension_numbers = #tpu.dot_dimension_numbers<[1], [0], [0], [1], [0, 0, 1, 1], [], []>} : vector<8x512xbf16>, vector<512x128xbf16>, vector<8x128xf32> -> vector<8x128xf32>
    %7 = arith.addf %3, %6 : vector<8x128xf32>
    %c0_6 = arith.constant 0 : index
    %c0_7 = arith.constant 0 : index
    %8 = vector.load %arg7[%c0_6, %c0_7] : memref<8x128xf32, #tpu.memory_space<vmem>>, vector<8x128xf32>
    tpu.vector_store %arg7[%c0_6, %c0_7], %7 {strides = array<i32>} : memref<8x128xf32, #tpu.memory_space<vmem>>, vector<8x128xf32>,
    %c3_i32 = arith.constant 3 : i32
    %9 = arith.cmpi eq, %arg2, %c3_i32 : i32
    %10 = arith.extui %9 : i1 to i32
    %c0_i32_8 = arith.constant 0 : i32
    %11 = arith.cmpi ne, %10, %c0_i32_8 : i32
    scf.if %11 {
      %c0_9 = arith.constant 0 : index
      %c0_10 = arith.constant 0 : index
      %12 = vector.load %arg7[%c0_9, %c0_10] : memref<8x128xf32, #tpu.memory_space<vmem>>, vector<8x128xf32>
      %c0_11 = arith.constant 0 : index
      %c0_12 = arith.constant 0 : index
      %13 = vector.load %arg5[%c0_11, %c0_12] : memref<1x128xf32, #tpu.memory_space<vmem>>, vector<1x128xf32>
      %14 = vector.broadcast %13 : vector<1x128xf32> to vector<8x128xf32>
      %15 = arith.addf %12, %14 : vector<8x128xf32>
      %c0_13 = arith.constant 0 : index
      %c0_14 = arith.constant 0 : index
      %16 = vector.load %arg6[%c0_13, %c0_14] : memref<8x128xf32, #tpu.memory_space<vmem>>, vector<8x128xf32>
      tpu.vector_store %arg6[%c0_13, %c0_14], %15 {strides = array<i32>} : memref<8x128xf32, #tpu.memory_space<vmem>>, vector<8x128xf32>,
    } else {
    }
    return
  }
  func.func @transform_0(%arg0: i32, %arg1: i32, %arg2: i32) -> (i32, i32) {
    %c0_i32 = arith.constant 0 : i32
    return %arg0, %arg2 : i32, i32
  }
  func.func @transform_1(%arg0: i32, %arg1: i32, %arg2: i32) -> (i32, i32) {
    %c0_i32 = arith.constant 0 : i32
    return %arg2, %arg1 : i32, i32
  }
  func.func @transform_2(%arg0: i32, %arg1: i32, %arg2: i32) -> (i32, i32) {
    %c0_i32 = arith.constant 0 : i32
    %c0_i32_0 = arith.constant 0 : i32
    return %c0_i32, %arg1 : i32, i32
  }
  func.func @transform_3(%arg0: i32, %arg1: i32, %arg2: i32) -> (i32, i32) {
    %c0_i32 = arith.constant 0 : i32
    return %arg0, %arg1 : i32, i32
  }
}

</mosaic_0001>

<llo_original>
// kernel: nlayer_discriminator_forward.8
$region0: #{nlayer_discriminator_forward.8}
  #allocation0 [shape = 'u32[]', space=smem, size = 0x4, offset = 0x4, fixed_abs, tag = 'smem constant byte address 0x4 - core index']
  #allocation1 [shape = 'u32[144,128]{1,0:T(1,128)}', space=vmem, size = 0x12000, scoped, tag = 'internal scratch']
  #allocation2 [shape = 'f32[256,128]{1,0:T(8,128)}', space=vmem, size = 0x20000, scoped, tag = 'scratch operand']
  %s0 = inlined_call_operand.vmem [shape: bf16[512,128], index: 0, kind: input, shape index: {}]
  %s1 = inlined_call_operand.vmem [shape: bf16[128,128], index: 1, kind: input, shape index: {}]
  %s2 = inlined_call_operand.vmem [shape: f32[1,128], index: 2, kind: input, shape index: {}]
  %s3 = inlined_call_operand.vmem [shape: f32[512,128], index: 3, kind: output, shape index: {}]
  %s4 = sld [smem:[#allocation0]]
  $region53: #{nlayer_discriminator_forward.8} parent=0
    _
  %s6 = ssub.s32 1, %s4
  %s7 = scalar_select 0, %s6, %s4
  loop: start=0, step=1, limit=4
  $region2: #{nlayer_discriminator_forward.8} parent=0 // loop_pre_header
    _
  $region3: #{nlayer_discriminator_forward.8} parent=0 // loop_header
    %s9 = sphi 0, %s13
    %p10 = scmp.ge.s32.totalorder %s9, 4
    %s16 = sphi 0, %s35
    %s17 = sphi 0, %s31
    %s18 = sphi 0, %s27
    %s19 = sphi 0, %s16
    %s20 = sphi 0, %s17
    %s21 = sphi 0, %s18
    %s22 = sphi 0, %s19
    %s23 = sphi 0, %s20
    %s24 = sphi 0, %s21
    %s40 = sphi 0, %s42
    %s43 = sphi 0, %s40
    %s44 = sphi 0, %s43
    %s60 = sphi 0, %s44
    %s68 = sphi 0, %s70
    %s71 = sphi 0, %s68
    %s72 = sphi 0, %s71
    %s88 = sphi 0, %s72
    %s94 = sphi 0, %s96
    %s97 = sphi 0, %s94
    %s98 = sphi 0, %s97
    %s114 = sphi 0, %s98
    %s122 = sphi 0, %s124
    %s125 = sphi 0, %s122
    %s126 = sphi 0, %s125
    %s142 = sphi 0, %s126
  $region4: #{nlayer_discriminator_forward.8} parent=0 // loop_header_branch
    %12 = sbr.rel (%p10) target = $region8
  $region5: #{nlayer_discriminator_forward.8} parent=0 // loop_body
    %s14 = ssub.s32 %s9, 1
    %s15 = ssub.s32 %s9, 2
    %s25 = sadd.s32 1, %s18
    %p26 = scmp.ge.s32.totalorder %s25, 1
    %s27 = scalar_select %p26, 0, %s25
    %s28 = sadd.s32 1, %s17
    %s29 = scalar_select %p26, %s28, %s17
    %p30 = scmp.ge.s32.totalorder %s29, 1
    %s31 = scalar_select %p30, 0, %s29
    %s32 = sadd.s32 1, %s16
    %s33 = scalar_select %p30, %s32, %s16
    %p34 = scmp.ge.s32.totalorder %s33, 2
    %s35 = scalar_select %p34, 0, %s33
    %s36 = ssub.s32 %s16, %s35
    %s37 = ssub.s32 %s18, %s27
    %s38 = sor.u32 %s36, %s37
    %p39 = scmp.eq.s32.totalorder %s38, 0
    %s41 = sadd.s32 %s40, 1
    %s42 = scalar_select %p39, %s40, %s41
    %p45 = pneg %p39
    %p46 = scmp.eq.s32.totalorder %s9, 1
    %p47 = por %p45, %p46
    %p48 = scmp.ne.s32.totalorder %s40, %s43
    %p49 = scmp.eq.s32.totalorder %s9, 0
    %p50 = por %p48, %p49
    %p51 = scmp.ne.s32.totalorder %s40, %s43
    %p52 = scmp.eq.s32.totalorder %s14, 1
    %p53 = por %p51, %p52
    %p54 = scmp.ne.s32.totalorder %s43, %s44
    %p55 = scmp.eq.s32.totalorder %s14, 0
    %p56 = por %p54, %p55
    %p57 = scmp.ne.s32.totalorder %s43, %s44
    %p58 = scmp.eq.s32.totalorder %s15, 1
    %p59 = por %p57, %p58
    %p61 = scmp.ne.s32.totalorder %s44, %s60
    %p62 = scmp.eq.s32.totalorder %s15, 0
    %p63 = por %p61, %p62
    %s64 = ssub.s32 %s18, %s27
    %s65 = ssub.s32 %s17, %s31
    %s66 = sor.u32 %s64, %s65
    %p67 = scmp.eq.s32.totalorder %s66, 0
    %s69 = sadd.s32 %s68, 1
    %s70 = scalar_select %p67, %s68, %s69
    %p73 = pneg %p67
    %p74 = scmp.eq.s32.totalorder %s9, 1
    %p75 = por %p73, %p74
    %p76 = scmp.ne.s32.totalorder %s68, %s71
    %p77 = scmp.eq.s32.totalorder %s9, 0
    %p78 = por %p76, %p77
    %p79 = scmp.ne.s32.totalorder %s68, %s71
    %p80 = scmp.eq.s32.totalorder %s14, 1
    %p81 = por %p79, %p80
    %p82 = scmp.ne.s32.totalorder %s71, %s72
    %p83 = scmp.eq.s32.totalorder %s14, 0
    %p84 = por %p82, %p83
    %p85 = scmp.ne.s32.totalorder %s71, %s72
    %p86 = scmp.eq.s32.totalorder %s15, 1
    %p87 = por %p85, %p86
    %p89 = scmp.ne.s32.totalorder %s72, %s88
    %p90 = scmp.eq.s32.totalorder %s15, 0
    %p91 = por %p89, %p90
    %s92 = ssub.s32 %s17, %s31
    %p93 = scmp.eq.s32.totalorder %s92, 0
    %s95 = sadd.s32 %s94, 1
    %s96 = scalar_select %p93, %s94, %s95
    %p99 = pneg %p93
    %p100 = scmp.eq.s32.totalorder %s9, 1
    %p101 = por %p99, %p100
    %p102 = scmp.ne.s32.totalorder %s94, %s97
    %p103 = scmp.eq.s32.totalorder %s9, 0
    %p104 = por %p102, %p103
    %p105 = scmp.ne.s32.totalorder %s94, %s97
    %p106 = scmp.eq.s32.totalorder %s14, 1
    %p107 = por %p105, %p106
    %p108 = scmp.ne.s32.totalorder %s97, %s98
    %p109 = scmp.eq.s32.totalorder %s14, 0
    %p110 = por %p108, %p109
    %p111 = scmp.ne.s32.totalorder %s97, %s98
    %p112 = scmp.eq.s32.totalorder %s15, 1
    %p113 = por %p111, %p112
    %p115 = scmp.ne.s32.totalorder %s98, %s114
    %p116 = scmp.eq.s32.totalorder %s15, 0
    %p117 = por %p115, %p116
    %s118 = ssub.s32 %s16, %s35
    %s119 = ssub.s32 %s17, %s31
    %s120 = sor.u32 %s118, %s119
    %p121 = scmp.eq.s32.totalorder %s120, 0
    %s123 = sadd.s32 %s122, 1
    %s124 = scalar_select %p121, %s122, %s123
    %p127 = pneg %p121
    %p128 = scmp.eq.s32.totalorder %s9, 1
    %p129 = por %p127, %p128
    %p130 = scmp.ne.s32.totalorder %s122, %s125
    %p131 = scmp.eq.s32.totalorder %s9, 0
    %p132 = por %p130, %p131
    %p133 = scmp.ne.s32.totalorder %s122, %s125
    %p134 = scmp.eq.s32.totalorder %s14, 1
    %p135 = por %p133, %p134
    %p136 = scmp.ne.s32.totalorder %s125, %s126
    %p137 = scmp.eq.s32.totalorder %s14, 0
    %p138 = por %p136, %p137
    %p139 = scmp.ne.s32.totalorder %s125, %s126
    %p140 = scmp.eq.s32.totalorder %s15, 1
    %p141 = por %p139, %p140
    %p143 = scmp.ne.s32.totalorder %s126, %s142
    %p144 = scmp.eq.s32.totalorder %s15, 0
    %p145 = por %p143, %p144
    %p146 = scmp.le.s32.totalorder 1, %s9
    %p147 = scmp.lt.s32.totalorder %s9, 3
    %p148 = pnand %p146, %p147
    %p149 = pneg %p148
    // Predicated region
    $region9: #{nlayer_discriminator_forward.8} parent=5 // pred_check
      _
    $region10: #{nlayer_discriminator_forward.8} parent=5 // pred_check_branch
      %151 = sbr.rel (%p148) target = $region12
    $region11: #{nlayer_discriminator_forward.8} parent=5 // pred_region
      %s152 = ssub.s32 %s9, 1
      // Predicated region
      $region13: #{nlayer_discriminator_forward.8} parent=11 // pred_check
        %p153 = pneg %p84
      $region14: #{nlayer_discriminator_forward.8} parent=11 // pred_check_branch
        %155 = sbr.rel (%p153) target = $region16
      $region15: #{nlayer_discriminator_forward.8} parent=11 // pred_region
        %s156 = smul.u32 16, %s21
        %p157 = scmp.lt.s32.totalorder %s156, 15
        %s158 = scalar_select %p157, %s156, 15
        %p159 = scmp.lt.s32.totalorder %s20, 0
        %s160 = scalar_select %p159, %s20, 0
        %s161 = sadd.s32 %s160, %s158
        %s162 = smul.addr %s161, 4
        %s163 = scalar_lea.vmem %s1, %s162
        %s164 = smul.u32 16, %s21
      $region16: #{nlayer_discriminator_forward.8} parent=11 // pred_fallthru
        _
      // Predicated region
      $region17: #{nlayer_discriminator_forward.8} parent=11 // pred_check
        %p165 = pneg %p110
      $region18: #{nlayer_discriminator_forward.8} parent=11 // pred_check_branch
        %167 = sbr.rel (%p165) target = $region20
      $region19: #{nlayer_discriminator_forward.8} parent=11 // pred_region
        %p168 = scmp.lt.s32.totalorder %s20, 0
        %s169 = scalar_select %p168, %s20, 0
        %s170 = scalar_lea.vmem %s2, %s169
      $region20: #{nlayer_discriminator_forward.8} parent=11 // pred_fallthru
        _
    $region12: #{nlayer_discriminator_forward.8} parent=5 // pred_fallthru
      _
    %p171 = scmp.lt.s32.totalorder %s9, 2
    // Predicated region
    $region21: #{nlayer_discriminator_forward.8} parent=5 // pred_check
      %p172 = pneg %p171
    $region22: #{nlayer_discriminator_forward.8} parent=5 // pred_check_branch
      %174 = sbr.rel (%p172) target = $region24
    $region23: #{nlayer_discriminator_forward.8} parent=5 // pred_region
      // Predicated region
      $region25: #{nlayer_discriminator_forward.8} parent=23 // pred_check
        %p175 = pneg %p50
      $region26: #{nlayer_discriminator_forward.8} parent=23 // pred_check_branch
        %177 = sbr.rel (%p175) target = $region28
      $region27: #{nlayer_discriminator_forward.8} parent=23 // pred_region
        %s178 = smul.u32 32, %s16
        %p179 = scmp.lt.s32.totalorder %s178, 63
        %s180 = scalar_select %p179, %s178, 63
        %p181 = scmp.lt.s32.totalorder %s18, 0
        %s182 = scalar_select %p181, %s18, 0
        %s183 = sadd.s32 %s182, %s180
        %s184 = smul.addr %s183, 4
        %s185 = scalar_lea.vmem %s0, %s184
        %s186 = smul.u32 32, %s16
      $region28: #{nlayer_discriminator_forward.8} parent=23 // pred_fallthru
        _
    $region24: #{nlayer_discriminator_forward.8} parent=5 // pred_fallthru
      _
    %p187 = scmp.le.s32.totalorder 1, %s9
    %p188 = scmp.lt.s32.totalorder %s9, 3
    %p189 = pnand %p187, %p188
    %p190 = pneg %p189
    // Predicated region
    $region29: #{nlayer_discriminator_forward.8} parent=5 // pred_check
      _
    $region30: #{nlayer_discriminator_forward.8} parent=5 // pred_check_branch
      %192 = sbr.rel (%p189) target = $region32
    $region31: #{nlayer_discriminator_forward.8} parent=5 // pred_region
      %s193 = ssub.s32 %s9, 1
      %s194 = smul.u32 32, %s19
      %p195 = scmp.lt.s32.totalorder %s194, 63
      %s196 = scalar_select %p195, %s194, 63
      %p197 = scmp.lt.s32.totalorder %s21, 0
      %s198 = scalar_select %p197, %s21, 0
      %s199 = sadd.s32 %s198, %s196
      %s200 = smul.addr %s199, 4
      %s201 = scalar_lea.vmem %s0, %s200
      %p202 = pneg %p56
      %p203 = pneg %p53
      %s204 = smul.u32 16, %s21
      %p205 = scmp.lt.s32.totalorder %s204, 15
      %s206 = scalar_select %p205, %s204, 15
      %p207 = scmp.lt.s32.totalorder %s20, 0
      %s208 = scalar_select %p207, %s20, 0
      %s209 = sadd.s32 %s208, %s206
      %s210 = smul.addr %s209, 4
      %s211 = scalar_lea.vmem %s1, %s210
      %p212 = pneg %p84
      %p213 = pneg %p81
      %p214 = scmp.lt.s32.totalorder %s20, 0
      %s215 = scalar_select %p214, %s20, 0
      %s216 = scalar_lea.vmem %s2, %s215
      %p217 = pneg %p110
      %p218 = pneg %p107
      %p219 = pneg %p138
      %p220 = pneg %p135
      %s221 = smul.u32 32, %s19
      %p222 = scmp.lt.s32.totalorder %s221, 63
      %s223 = scalar_select %p222, %s221, 63
      %p224 = scmp.lt.s32.totalorder %s20, 0
      %s225 = scalar_select %p224, %s20, 0
      %s226 = sadd.s32 %s225, %s223
      %s227 = smul.addr %s226, 8
      %s228 = scalar_lea.vmem %s3, %s227
      %s229 = smul.u32 32, %s19
      %p230 = scmp.lt.s32.totalorder %s229, 63
      %s231 = scalar_select %p230, %s229, 63
      %p232 = scmp.lt.s32.totalorder %s21, 0
      %s233 = scalar_select %p232, %s21, 0
      %s234 = sadd.s32 %s233, %s231
      %s235 = smul.addr %s234, 4
      %s236 = scalar_lea.vmem %s0, %s235
      %s237 = smul.u32 32, %s19
      %s238 = smul.u32 16, %s21
      %p239 = scmp.lt.s32.totalorder %s238, 15
      %s240 = scalar_select %p239, %s238, 15
      %p241 = scmp.lt.s32.totalorder %s20, 0
      %s242 = scalar_select %p241, %s20, 0
      %s243 = sadd.s32 %s242, %s240
      %s244 = smul.addr %s243, 4
      %s245 = scalar_lea.vmem %s1, %s244
      %s246 = smul.u32 16, %s21
      %p247 = scmp.lt.s32.totalorder %s20, 0
      %s248 = scalar_select %p247, %s20, 0
      %s249 = scalar_lea.vmem %s2, %s248
      %s250 = smul.u32 32, %s19
      %p251 = scmp.lt.s32.totalorder %s250, 63
      %s252 = scalar_select %p251, %s250, 63
      %p253 = scmp.lt.s32.totalorder %s20, 0
      %s254 = scalar_select %p253, %s20, 0
      %s255 = sadd.s32 %s254, %s252
      %s256 = smul.addr %s255, 8
      %s257 = scalar_lea.vmem %s3, %s256
      %s258 = smul.u32 32, %s19
      %p260 = scmp.eq.s32.totalorder %s21, 0
      // Predicated region
      $region33: #{nlayer_discriminator_forward.8} parent=31 // pred_check
        %p261 = pneg %p260
      $region34: #{nlayer_discriminator_forward.8} parent=31 // pred_check_branch
        %263 = sbr.rel (%p261) target = $region36
      $region35: #{nlayer_discriminator_forward.8} parent=31 // pred_region
        %264 = vst [vmem:[#allocation2] sm:$0xff] 0.0
        %265 = vst [vmem:[#allocation2 + $0x8] sm:$0xff] 0.0
        %266 = vst [vmem:[#allocation2 + $0x10] sm:$0xff] 0.0
        %267 = vst [vmem:[#allocation2 + $0x18] sm:$0xff] 0.0
        %268 = vst [vmem:[#allocation2 + $0x20] sm:$0xff] 0.0
        %269 = vst [vmem:[#allocation2 + $0x28] sm:$0xff] 0.0
        %270 = vst [vmem:[#allocation2 + $0x30] sm:$0xff] 0.0
        %271 = vst [vmem:[#allocation2 + $0x38] sm:$0xff] 0.0
        %272 = vst [vmem:[#allocation2 + $0x40] sm:$0xff] 0.0
        %273 = vst [vmem:[#allocation2 + $0x48] sm:$0xff] 0.0
        %274 = vst [vmem:[#allocation2 + $0x50] sm:$0xff] 0.0
        %275 = vst [vmem:[#allocation2 + $0x58] sm:$0xff] 0.0
        %276 = vst [vmem:[#allocation2 + $0x60] sm:$0xff] 0.0
        %277 = vst [vmem:[#allocation2 + $0x68] sm:$0xff] 0.0
        %278 = vst [vmem:[#allocation2 + $0x70] sm:$0xff] 0.0
        %279 = vst [vmem:[#allocation2 + $0x78] sm:$0xff] 0.0
        %280 = vst [vmem:[#allocation2 + $0x80] sm:$0xff] 0.0
        %281 = vst [vmem:[#allocation2 + $0x88] sm:$0xff] 0.0
        %282 = vst [vmem:[#allocation2 + $0x90] sm:$0xff] 0.0
        %283 = vst [vmem:[#allocation2 + $0x98] sm:$0xff] 0.0
        %284 = vst [vmem:[#allocation2 + $0xa0] sm:$0xff] 0.0
        %285 = vst [vmem:[#allocation2 + $0xa8] sm:$0xff] 0.0
        %286 = vst [vmem:[#allocation2 + $0xb0] sm:$0xff] 0.0
        %287 = vst [vmem:[#allocation2 + $0xb8] sm:$0xff] 0.0
        %288 = vst [vmem:[#allocation2 + $0xc0] sm:$0xff] 0.0
        %289 = vst [vmem:[#allocation2 + $0xc8] sm:$0xff] 0.0
        %290 = vst [vmem:[#allocation2 + $0xd0] sm:$0xff] 0.0
        %291 = vst [vmem:[#allocation2 + $0xd8] sm:$0xff] 0.0
        %292 = vst [vmem:[#allocation2 + $0xe0] sm:$0xff] 0.0
        %293 = vst [vmem:[#allocation2 + $0xe8] sm:$0xff] 0.0
        %294 = vst [vmem:[#allocation2 + $0xf0] sm:$0xff] 0.0
        %295 = vst [vmem:[#allocation2 + $0xf8] sm:$0xff] 0.0
      $region36: #{nlayer_discriminator_forward.8} parent=31 // pred_fallthru
        _
      %v296 = vld [vmem:[#allocation2] sm:$0xff]
      %v297 = vld [vmem:[#allocation2 + $0x8] sm:$0xff]
      %v298 = vld [vmem:[#allocation2 + $0x10] sm:$0xff]
      %v299 = vld [vmem:[#allocation2 + $0x18] sm:$0xff]
      %v300 = vld [vmem:[#allocation2 + $0x20] sm:$0xff]
      %v301 = vld [vmem:[#allocation2 + $0x28] sm:$0xff]
      %v302 = vld [vmem:[#allocation2 + $0x30] sm:$0xff]
      %v303 = vld [vmem:[#allocation2 + $0x38] sm:$0xff]
      %v304 = vld [vmem:[#allocation2 + $0x40] sm:$0xff]
      %v305 = vld [vmem:[#allocation2 + $0x48] sm:$0xff]
      %v306 = vld [vmem:[#allocation2 + $0x50] sm:$0xff]
      %v307 = vld [vmem:[#allocation2 + $0x58] sm:$0xff]
      %v308 = vld [vmem:[#allocation2 + $0x60] sm:$0xff]
      %v309 = vld [vmem:[#allocation2 + $0x68] sm:$0xff]
      %v310 = vld [vmem:[#allocation2 + $0x70] sm:$0xff]
      %v311 = vld [vmem:[#allocation2 + $0x78] sm:$0xff]
      %v312 = vld [vmem:[#allocation2 + $0x80] sm:$0xff]
      %v313 = vld [vmem:[#allocation2 + $0x88] sm:$0xff]
      %v314 = vld [vmem:[#allocation2 + $0x90] sm:$0xff]
      %v315 = vld [vmem:[#allocation2 + $0x98] sm:$0xff]
      %v316 = vld [vmem:[#allocation2 + $0xa0] sm:$0xff]
      %v317 = vld [vmem:[#allocation2 + $0xa8] sm:$0xff]
      %v318 = vld [vmem:[#allocation2 + $0xb0] sm:$0xff]
      %v319 = vld [vmem:[#allocation2 + $0xb8] sm:$0xff]
      %v320 = vld [vmem:[#allocation2 + $0xc0] sm:$0xff]
      %v321 = vld [vmem:[#allocation2 + $0xc8] sm:$0xff]
      %v322 = vld [vmem:[#allocation2 + $0xd0] sm:$0xff]
      %v323 = vld [vmem:[#allocation2 + $0xd8] sm:$0xff]
      %v324 = vld [vmem:[#allocation2 + $0xe0] sm:$0xff]
      %v325 = vld [vmem:[#allocation2 + $0xe8] sm:$0xff]
      %v326 = vld [vmem:[#allocation2 + $0xf0] sm:$0xff]
      %v327 = vld [vmem:[#allocation2 + $0xf8] sm:$0xff]
      %v328 = vld [vmem:[%s236] sm:$0xf]
      %v329 = vld [vmem:[%s236 + $0x4] sm:$0xf]
      %v330 = vld [vmem:[%s236 + $0x8] sm:$0xf]
      %v331 = vld [vmem:[%s236 + $0xc] sm:$0xf]
      %v332 = vld [vmem:[%s236 + $0x10] sm:$0xf]
      %v333 = vld [vmem:[%s236 + $0x14] sm:$0xf]
      %v334 = vld [vmem:[%s236 + $0x18] sm:$0xf]
      %v335 = vld [vmem:[%s236 + $0x1c] sm:$0xf]
      %v336 = vld [vmem:[%s236 + $0x20] sm:$0xf]
      %v337 = vld [vmem:[%s236 + $0x24] sm:$0xf]
      %v338 = vld [vmem:[%s236 + $0x28] sm:$0xf]
      %v339 = vld [vmem:[%s236 + $0x2c] sm:$0xf]
      %v340 = vld [vmem:[%s236 + $0x30] sm:$0xf]
      %v341 = vld [vmem:[%s236 + $0x34] sm:$0xf]
      %v342 = vld [vmem:[%s236 + $0x38] sm:$0xf]
      %v343 = vld [vmem:[%s236 + $0x3c] sm:$0xf]
      %v344 = vld [vmem:[%s236 + $0x40] sm:$0xf]
      %v345 = vld [vmem:[%s236 + $0x44] sm:$0xf]
      %v346 = vld [vmem:[%s236 + $0x48] sm:$0xf]
      %v347 = vld [vmem:[%s236 + $0x4c] sm:$0xf]
      %v348 = vld [vmem:[%s236 + $0x50] sm:$0xf]
      %v349 = vld [vmem:[%s236 + $0x54] sm:$0xf]
      %v350 = vld [vmem:[%s236 + $0x58] sm:$0xf]
      %v351 = vld [vmem:[%s236 + $0x5c] sm:$0xf]
      %v352 = vld [vmem:[%s236 + $0x60] sm:$0xf]
      %v353 = vld [vmem:[%s236 + $0x64] sm:$0xf]
      %v354 = vld [vmem:[%s236 + $0x68] sm:$0xf]
      %v355 = vld [vmem:[%s236 + $0x6c] sm:$0xf]
      %v356 = vld [vmem:[%s236 + $0x70] sm:$0xf]
      %v357 = vld [vmem:[%s236 + $0x74] sm:$0xf]
      %v358 = vld [vmem:[%s236 + $0x78] sm:$0xf]
      %v359 = vld [vmem:[%s236 + $0x7c] sm:$0xf]
      %v360 = vld [vmem:[%s245] sm:$0xf]
      %v361 = vld [vmem:[%s245 + $0x4] sm:$0xf]
      %v362 = vld [vmem:[%s245 + $0x8] sm:$0xf]
      %v363 = vld [vmem:[%s245 + $0xc] sm:$0xf]
      %v364 = vld [vmem:[%s245 + $0x10] sm:$0xf]
      %v365 = vld [vmem:[%s245 + $0x14] sm:$0xf]
      %v366 = vld [vmem:[%s245 + $0x18] sm:$0xf]
      %v367 = vld [vmem:[%s245 + $0x1c] sm:$0xf]
      %v368 = vld [vmem:[%s245 + $0x20] sm:$0xf]
      %v369 = vld [vmem:[%s245 + $0x24] sm:$0xf]
      %v370 = vld [vmem:[%s245 + $0x28] sm:$0xf]
      %v371 = vld [vmem:[%s245 + $0x2c] sm:$0xf]
      %v372 = vld [vmem:[%s245 + $0x30] sm:$0xf]
      %v373 = vld [vmem:[%s245 + $0x34] sm:$0xf]
      %v374 = vld [vmem:[%s245 + $0x38] sm:$0xf]
      %v375 = vld [vmem:[%s245 + $0x3c] sm:$0xf]
      %v408 = vunpack.c.l.b16 %v328
      %v409 = vunpack.c.l.b16 %v329
      %v410 = vunpack.c.l.b16 %v330
      %v411 = vunpack.c.l.b16 %v331
      %v412 = vunpack.c.l.b16 %v332
      %v413 = vunpack.c.l.b16 %v333
      %v414 = vunpack.c.l.b16 %v334
      %v415 = vunpack.c.l.b16 %v335
      %v416 = vunpack.c.l.b16 %v336
      %v417 = vunpack.c.l.b16 %v337
      %v418 = vunpack.c.l.b16 %v338
      %v419 = vunpack.c.l.b16 %v339
      %v420 = vunpack.c.l.b16 %v340
      %v421 = vunpack.c.l.b16 %v341
      %v422 = vunpack.c.l.b16 %v342
      %v423 = vunpack.c.l.b16 %v343
      %v424 = vunpack.c.l.b16 %v344
      %v425 = vunpack.c.l.b16 %v345
      %v426 = vunpack.c.l.b16 %v346
      %v427 = vunpack.c.l.b16 %v347
      %v428 = vunpack.c.l.b16 %v348
      %v429 = vunpack.c.l.b16 %v349
      %v430 = vunpack.c.l.b16 %v350
      %v431 = vunpack.c.l.b16 %v351
      %v432 = vunpack.c.l.b16 %v352
      %v433 = vunpack.c.l.b16 %v353
      %v434 = vunpack.c.l.b16 %v354
      %v435 = vunpack.c.l.b16 %v355
      %v436 = vunpack.c.l.b16 %v356
      %v437 = vunpack.c.l.b16 %v357
      %v438 = vunpack.c.l.b16 %v358
      %v439 = vunpack.c.l.b16 %v359
      %v440 = vpack.c.b16 %v409, %v408
      %v441 = vpack.c.b16 %v411, %v410
      %v442 = vpack.c.b16 %v413, %v412
      %v443 = vpack.c.b16 %v415, %v414
      %v444 = vpack.c.b16 %v417, %v416
      %v445 = vpack.c.b16 %v419, %v418
      %v446 = vpack.c.b16 %v421, %v420
      %v447 = vpack.c.b16 %v423, %v422
      %v448 = vpack.c.b16 %v425, %v424
      %v449 = vpack.c.b16 %v427, %v426
      %v450 = vpack.c.b16 %v429, %v428
      %v451 = vpack.c.b16 %v431, %v430
      %v452 = vpack.c.b16 %v433, %v432
      %v453 = vpack.c.b16 %v435, %v434
      %v454 = vpack.c.b16 %v437, %v436
      %v455 = vpack.c.b16 %v439, %v438
      %v488 = vunpack.c.l.b16 %v360
      %v489 = vunpack.c.l.b16 %v361
      %v490 = vunpack.c.l.b16 %v362
      %v491 = vunpack.c.l.b16 %v363
      %v492 = vunpack.c.l.b16 %v364
      %v493 = vunpack.c.l.b16 %v365
      %v494 = vunpack.c.l.b16 %v366
      %v495 = vunpack.c.l.b16 %v367
      %v496 = vunpack.c.l.b16 %v368
      %v497 = vunpack.c.l.b16 %v369
      %v498 = vunpack.c.l.b16 %v370
      %v499 = vunpack.c.l.b16 %v371
      %v500 = vunpack.c.l.b16 %v372
      %v501 = vunpack.c.l.b16 %v373
      %v502 = vunpack.c.l.b16 %v374
      %v503 = vunpack.c.l.b16 %v375
      %v504 = vpack.c.b16 %v489, %v488
      %v505 = vpack.c.b16 %v491, %v490
      %v506 = vpack.c.b16 %v493, %v492
      %v507 = vpack.c.b16 %v495, %v494
      %v508 = vpack.c.b16 %v497, %v496
      %v509 = vpack.c.b16 %v499, %v498
      %v510 = vpack.c.b16 %v501, %v500
      %v511 = vpack.c.b16 %v503, %v502
      %520 = vmatprep.subr.bf16.mxu0 0
      %521 = vmatpush1.bf16.msra.mxu0 %v504
      %522 = vmatprep.subr.bf16.mxu0 0
      %523 = vmatpush1.bf16.msra.mxu0 %v505
      %524 = vmatprep.subr.bf16.mxu0 0
      %525 = vmatpush1.bf16.msra.mxu0 %v506
      %526 = vmatprep.subr.bf16.mxu0 0
      %527 = vmatpush1.bf16.msra.mxu0 %v507
      %528 = vmatprep.subr.bf16.mxu0 0
      %529 = vmatpush1.bf16.msra.mxu0 %v508
      %530 = vmatprep.subr.bf16.mxu0 0
      %531 = vmatpush1.bf16.msra.mxu0 %v509
      %532 = vmatprep.subr.bf16.mxu0 0
      %533 = vmatpush1.bf16.msra.mxu0 %v510
      %534 = vmatprep.subr.bf16.mxu0 0
      %535 = vmatpush1.bf16.msra.mxu0 %v511
      %536 = vmatprep.subr.bf16.mxu0 0
      %537 = vmatpush1.bf16.msra.mxu0 0
      %538 = vmatprep.subr.bf16.mxu0 0
      %539 = vmatpush1.bf16.msra.mxu0 0
      %540 = vmatprep.subr.bf16.mxu0 0
      %541 = vmatpush1.bf16.msra.mxu0 0
      %542 = vmatprep.subr.bf16.mxu0 0
      %543 = vmatpush1.bf16.msra.mxu0 0
      %544 = vmatprep.subr.bf16.mxu0 0
      %545 = vmatpush1.bf16.msra.mxu0 0
      %546 = vmatprep.subr.bf16.mxu0 0
      %547 = vmatpush1.bf16.msra.mxu0 0
      %548 = vmatprep.subr.bf16.mxu0 0
      %549 = vmatpush1.bf16.msra.mxu0 0
      %550 = vmatprep.subr.bf16.mxu0 0
      %551 = vmatpush1.bf16.msra.mxu0 0
      %552 = vmatprep.mubr.bf16.mxu0 0
      %553 = vmatmul.mubr.bf16.gmra.mrb[0].mxu0 %v440
      %v554 = vpop.f32.mrb[0].mxu0
      %v555 = vadd.f32 0.0, %v554
      %v556 = vpop.f32.mrb[0].mxu0
      %v557 = vpop.f32.mrb[0].mxu0
      %v558 = vadd.f32 0.0, %v557
      %v559 = vpop.f32.mrb[0].mxu0
      %560 = vmatprep.mubr.bf16.mxu0 0
      %561 = vmatmul.mubr.bf16.gmra.mrb[0].mxu0 %v441
      %v562 = vpop.f32.mrb[0].mxu0
      %v563 = vadd.f32 0.0, %v562
      %v564 = vpop.f32.mrb[0].mxu0
      %v565 = vpop.f32.mrb[0].mxu0
      %v566 = vadd.f32 0.0, %v565
      %v567 = vpop.f32.mrb[0].mxu0
      %568 = vmatprep.mubr.bf16.mxu0 0
      %569 = vmatmul.mubr.bf16.gmra.mrb[0].mxu0 %v442
      %v570 = vpop.f32.mrb[0].mxu0
      %v571 = vadd.f32 0.0, %v570
      %v572 = vpop.f32.mrb[0].mxu0
      %v573 = vpop.f32.mrb[0].mxu0
      %v574 = vadd.f32 0.0, %v573
      %v575 = vpop.f32.mrb[0].mxu0
      %576 = vmatprep.mubr.bf16.mxu0 0
      %577 = vmatmul.mubr.bf16.gmra.mrb[0].mxu0 %v443
      %v578 = vpop.f32.mrb[0].mxu0
      %v579 = vadd.f32 0.0, %v578
      %v580 = vpop.f32.mrb[0].mxu0
      %v581 = vpop.f32.mrb[0].mxu0
      %v582 = vadd.f32 0.0, %v581
      %v583 = vpop.f32.mrb[0].mxu0
      %584 = vmatprep.mubr.bf16.mxu0 0
      %585 = vmatmul.mubr.bf16.gmra.mrb[0].mxu0 %v444
      %v586 = vpop.f32.mrb[0].mxu0
      %v587 = vadd.f32 0.0, %v586
      %v588 = vpop.f32.mrb[0].mxu0
      %v589 = vpop.f32.mrb[0].mxu0
      %v590 = vadd.f32 0.0, %v589
      %v591 = vpop.f32.mrb[0].mxu0
      %592 = vmatprep.mubr.bf16.mxu0 0
      %593 = vmatmul.mubr.bf16.gmra.mrb[0].mxu0 %v445
      %v594 = vpop.f32.mrb[0].mxu0
      %v595 = vadd.f32 0.0, %v594
      %v596 = vpop.f32.mrb[0].mxu0
      %v597 = vpop.f32.mrb[0].mxu0
      %v598 = vadd.f32 0.0, %v597
      %v599 = vpop.f32.mrb[0].mxu0
      %600 = vmatprep.mubr.bf16.mxu0 0
      %601 = vmatmul.mubr.bf16.gmra.mrb[0].mxu0 %v446
      %v602 = vpop.f32.mrb[0].mxu0
      %v603 = vadd.f32 0.0, %v602
      %v604 = vpop.f32.mrb[0].mxu0
      %v605 = vpop.f32.mrb[0].mxu0
      %v606 = vadd.f32 0.0, %v605
      %v607 = vpop.f32.mrb[0].mxu0
      %608 = vmatprep.mubr.bf16.mxu0 0
      %609 = vmatmul.mubr.bf16.gmra.mrb[0].mxu0 %v447
      %v610 = vpop.f32.mrb[0].mxu0
      %v611 = vadd.f32 0.0, %v610
      %v612 = vpop.f32.mrb[0].mxu0
      %v613 = vpop.f32.mrb[0].mxu0
      %v614 = vadd.f32 0.0, %v613
      %v615 = vpop.f32.mrb[0].mxu0
      %616 = vmatprep.mubr.bf16.mxu0 0
      %617 = vmatmul.mubr.bf16.gmra.mrb[0].mxu0 %v448
      %v618 = vpop.f32.mrb[0].mxu0
      %v619 = vadd.f32 0.0, %v618
      %v620 = vpop.f32.mrb[0].mxu0
      %v621 = vpop.f32.mrb[0].mxu0
      %v622 = vadd.f32 0.0, %v621
      %v623 = vpop.f32.mrb[0].mxu0
      %624 = vmatprep.mubr.bf16.mxu0 0
      %625 = vmatmul.mubr.bf16.gmra.mrb[0].mxu0 %v449
      %v626 = vpop.f32.mrb[0].mxu0
      %v627 = vadd.f32 0.0, %v626
      %v628 = vpop.f32.mrb[0].mxu0
      %v629 = vpop.f32.mrb[0].mxu0
      %v630 = vadd.f32 0.0, %v629
      %v631 = vpop.f32.mrb[0].mxu0
      %632 = vmatprep.mubr.bf16.mxu0 0
      %633 = vmatmul.mubr.bf16.gmra.mrb[0].mxu0 %v450
      %v634 = vpop.f32.mrb[0].mxu0
      %v635 = vadd.f32 0.0, %v634
      %v636 = vpop.f32.mrb[0].mxu0
      %v637 = vpop.f32.mrb[0].mxu0
      %v638 = vadd.f32 0.0, %v637
      %v639 = vpop.f32.mrb[0].mxu0
      %640 = vmatprep.mubr.bf16.mxu0 0
      %641 = vmatmul.mubr.bf16.gmra.mrb[0].mxu0 %v451
      %v642 = vpop.f32.mrb[0].mxu0
      %v643 = vadd.f32 0.0, %v642
      %v644 = vpop.f32.mrb[0].mxu0
      %v645 = vpop.f32.mrb[0].mxu0
      %v646 = vadd.f32 0.0, %v645
      %v647 = vpop.f32.mrb[0].mxu0
      %648 = vmatprep.mubr.bf16.mxu0 0
      %649 = vmatmul.mubr.bf16.gmra.mrb[0].mxu0 %v452
      %v650 = vpop.f32.mrb[0].mxu0
      %v651 = vadd.f32 0.0, %v650
      %v652 = vpop.f32.mrb[0].mxu0
      %v653 = vpop.f32.mrb[0].mxu0
      %v654 = vadd.f32 0.0, %v653
      %v655 = vpop.f32.mrb[0].mxu0
      %656 = vmatprep.mubr.bf16.mxu0 0
      %657 = vmatmul.mubr.bf16.gmra.mrb[0].mxu0 %v453
      %v658 = vpop.f32.mrb[0].mxu0
      %v659 = vadd.f32 0.0, %v658
      %v660 = vpop.f32.mrb[0].mxu0
      %v661 = vpop.f32.mrb[0].mxu0
      %v662 = vadd.f32 0.0, %v661
      %v663 = vpop.f32.mrb[0].mxu0
      %664 = vmatprep.mubr.bf16.mxu0 0
      %665 = vmatmul.mubr.bf16.gmra.mrb[0].mxu0 %v454
      %v666 = vpop.f32.mrb[0].mxu0
      %v667 = vadd.f32 0.0, %v666
      %v668 = vpop.f32.mrb[0].mxu0
      %v669 = vpop.f32.mrb[0].mxu0
      %v670 = vadd.f32 0.0, %v669
      %v671 = vpop.f32.mrb[0].mxu0
      %672 = vmatprep.mubr.bf16.mxu0 0
      %673 = vmatmul.mubr.bf16.gmra.mrb[0].mxu0 %v455
      %v674 = vpop.f32.mrb[0].mxu0
      %v675 = vadd.f32 0.0, %v674
      %v676 = vpop.f32.mrb[0].mxu0
      %v677 = vpop.f32.mrb[0].mxu0
      %v678 = vadd.f32 0.0, %v677
      %v679 = vpop.f32.mrb[0].mxu0
      %680 = vdwg.mxu0
      %v681 = vadd.f32 %v296, %v555
      %v682 = vadd.f32 %v297, %v558
      %v683 = vadd.f32 %v298, %v563
      %v684 = vadd.f32 %v299, %v566
      %v685 = vadd.f32 %v300, %v571
      %v686 = vadd.f32 %v301, %v574
      %v687 = vadd.f32 %v302, %v579
      %v688 = vadd.f32 %v303, %v582
      %v689 = vadd.f32 %v304, %v587
      %v690 = vadd.f32 %v305, %v590
      %v691 = vadd.f32 %v306, %v595
      %v692 = vadd.f32 %v307, %v598
      %v693 = vadd.f32 %v308, %v603
      %v694 = vadd.f32 %v309, %v606
      %v695 = vadd.f32 %v310, %v611
      %v696 = vadd.f32 %v311, %v614
      %v697 = vadd.f32 %v312, %v619
      %v698 = vadd.f32 %v313, %v622
      %v699 = vadd.f32 %v314, %v627
      %v700 = vadd.f32 %v315, %v630
      %v701 = vadd.f32 %v316, %v635
      %v702 = vadd.f32 %v317, %v638
      %v703 = vadd.f32 %v318, %v643
      %v704 = vadd.f32 %v319, %v646
      %v705 = vadd.f32 %v320, %v651
      %v706 = vadd.f32 %v321, %v654
      %v707 = vadd.f32 %v322, %v659
      %v708 = vadd.f32 %v323, %v662
      %v709 = vadd.f32 %v324, %v667
      %v710 = vadd.f32 %v325, %v670
      %v711 = vadd.f32 %v326, %v675
      %v712 = vadd.f32 %v327, %v678
      %713 = vst [vmem:[#allocation2] sm:$0xff] %v681
      %714 = vst [vmem:[#allocation2 + $0x8] sm:$0xff] %v682
      %715 = vst [vmem:[#allocation2 + $0x10] sm:$0xff] %v683
      %716 = vst [vmem:[#allocation2 + $0x18] sm:$0xff] %v684
      %717 = vst [vmem:[#allocation2 + $0x20] sm:$0xff] %v685
      %718 = vst [vmem:[#allocation2 + $0x28] sm:$0xff] %v686
      %719 = vst [vmem:[#allocation2 + $0x30] sm:$0xff] %v687
      %720 = vst [vmem:[#allocation2 + $0x38] sm:$0xff] %v688
      %721 = vst [vmem:[#allocation2 + $0x40] sm:$0xff] %v689
      %722 = vst [vmem:[#allocation2 + $0x48] sm:$0xff] %v690
      %723 = vst [vmem:[#allocation2 + $0x50] sm:$0xff] %v691
      %724 = vst [vmem:[#allocation2 + $0x58] sm:$0xff] %v692
      %725 = vst [vmem:[#allocation2 + $0x60] sm:$0xff] %v693
      %726 = vst [vmem:[#allocation2 + $0x68] sm:$0xff] %v694
      %727 = vst [vmem:[#allocation2 + $0x70] sm:$0xff] %v695
      %728 = vst [vmem:[#allocation2 + $0x78] sm:$0xff] %v696
      %729 = vst [vmem:[#allocation2 + $0x80] sm:$0xff] %v697
      %730 = vst [vmem:[#allocation2 + $0x88] sm:$0xff] %v698
      %731 = vst [vmem:[#allocation2 + $0x90] sm:$0xff] %v699
      %732 = vst [vmem:[#allocation2 + $0x98] sm:$0xff] %v700
      %733 = vst [vmem:[#allocation2 + $0xa0] sm:$0xff] %v701
      %734 = vst [vmem:[#allocation2 + $0xa8] sm:$0xff] %v702
      %735 = vst [vmem:[#allocation2 + $0xb0] sm:$0xff] %v703
      %736 = vst [vmem:[#allocation2 + $0xb8] sm:$0xff] %v704
      %737 = vst [vmem:[#allocation2 + $0xc0] sm:$0xff] %v705
      %738 = vst [vmem:[#allocation2 + $0xc8] sm:$0xff] %v706
      %739 = vst [vmem:[#allocation2 + $0xd0] sm:$0xff] %v707
      %740 = vst [vmem:[#allocation2 + $0xd8] sm:$0xff] %v708
      %741 = vst [vmem:[#allocation2 + $0xe0] sm:$0xff] %v709
      %742 = vst [vmem:[#allocation2 + $0xe8] sm:$0xff] %v710
      %743 = vst [vmem:[#allocation2 + $0xf0] sm:$0xff] %v711
      %744 = vst [vmem:[#allocation2 + $0xf8] sm:$0xff] %v712
      // Predicated region
      $region37: #{nlayer_discriminator_forward.8} parent=31 // pred_check
        %p745 = pneg %p260
      $region38: #{nlayer_discriminator_forward.8} parent=31 // pred_check_branch
        %747 = sbr.rel (%p745) target = $region40
      $region39: #{nlayer_discriminator_forward.8} parent=31 // pred_region
        %v748 = vld [vmem:[#allocation2] sm:$0xff]
        %v749 = vld [vmem:[#allocation2 + $0x8] sm:$0xff]
        %v750 = vld [vmem:[#allocation2 + $0x10] sm:$0xff]
        %v751 = vld [vmem:[#allocation2 + $0x18] sm:$0xff]
        %v752 = vld [vmem:[#allocation2 + $0x20] sm:$0xff]
        %v753 = vld [vmem:[#allocation2 + $0x28] sm:$0xff]
        %v754 = vld [vmem:[#allocation2 + $0x30] sm:$0xff]
        %v755 = vld [vmem:[#allocation2 + $0x38] sm:$0xff]
        %v756 = vld [vmem:[#allocation2 + $0x40] sm:$0xff]
        %v757 = vld [vmem:[#allocation2 + $0x48] sm:$0xff]
        %v758 = vld [vmem:[#allocation2 + $0x50] sm:$0xff]
        %v759 = vld [vmem:[#allocation2 + $0x58] sm:$0xff]
        %v760 = vld [vmem:[#allocation2 + $0x60] sm:$0xff]
        %v761 = vld [vmem:[#allocation2 + $0x68] sm:$0xff]
        %v762 = vld [vmem:[#allocation2 + $0x70] sm:$0xff]
        %v763 = vld [vmem:[#allocation2 + $0x78] sm:$0xff]
        %v764 = vld [vmem:[#allocation2 + $0x80] sm:$0xff]
        %v765 = vld [vmem:[#allocation2 + $0x88] sm:$0xff]
        %v766 = vld [vmem:[#allocation2 + $0x90] sm:$0xff]
        %v767 = vld [vmem:[#allocation2 + $0x98] sm:$0xff]
        %v768 = vld [vmem:[#allocation2 + $0xa0] sm:$0xff]
        %v769 = vld [vmem:[#allocation2 + $0xa8] sm:$0xff]
        %v770 = vld [vmem:[#allocation2 + $0xb0] sm:$0xff]
        %v771 = vld [vmem:[#allocation2 + $0xb8] sm:$0xff]
        %v772 = vld [vmem:[#allocation2 + $0xc0] sm:$0xff]
        %v773 = vld [vmem:[#allocation2 + $0xc8] sm:$0xff]
        %v774 = vld [vmem:[#allocation2 + $0xd0] sm:$0xff]
        %v775 = vld [vmem:[#allocation2 + $0xd8] sm:$0xff]
        %v776 = vld [vmem:[#allocation2 + $0xe0] sm:$0xff]
        %v777 = vld [vmem:[#allocation2 + $0xe8] sm:$0xff]
        %v778 = vld [vmem:[#allocation2 + $0xf0] sm:$0xff]
        %v779 = vld [vmem:[#allocation2 + $0xf8] sm:$0xff]
        %v780 = vld [vmem:[%s249] sm:$0x1]
        %v782 = vlaneseq
        %v783 = vshrl.u32 %v782, 7
        %v784 = vsub.s32 0, %v783
        %v785 = vrot.slane %v780, %v784
        %v787 = vadd.f32 %v748, %v785
        %v788 = vadd.f32 %v749, %v785
        %v789 = vadd.f32 %v750, %v785
        %v790 = vadd.f32 %v751, %v785
        %v791 = vadd.f32 %v752, %v785
        %v792 = vadd.f32 %v753, %v785
        %v793 = vadd.f32 %v754, %v785
        %v794 = vadd.f32 %v755, %v785
        %v795 = vadd.f32 %v756, %v785
        %v796 = vadd.f32 %v757, %v785
        %v797 = vadd.f32 %v758, %v785
        %v798 = vadd.f32 %v759, %v785
        %v799 = vadd.f32 %v760, %v785
        %v800 = vadd.f32 %v761, %v785
        %v801 = vadd.f32 %v762, %v785
        %v802 = vadd.f32 %v763, %v785
        %v803 = vadd.f32 %v764, %v785
        %v804 = vadd.f32 %v765, %v785
        %v805 = vadd.f32 %v766, %v785
        %v806 = vadd.f32 %v767, %v785
        %v807 = vadd.f32 %v768, %v785
        %v808 = vadd.f32 %v769, %v785
        %v809 = vadd.f32 %v770, %v785
        %v810 = vadd.f32 %v771, %v785
        %v811 = vadd.f32 %v772, %v785
        %v812 = vadd.f32 %v773, %v785
        %v813 = vadd.f32 %v774, %v785
        %v814 = vadd.f32 %v775, %v785
        %v815 = vadd.f32 %v776, %v785
        %v816 = vadd.f32 %v777, %v785
        %v817 = vadd.f32 %v778, %v785
        %v818 = vadd.f32 %v779, %v785
        %vm819 = vcmp.ge.f32.partialorder %v787, 0.0
        %vm820 = vcmp.ge.f32.partialorder %v788, 0.0
        %vm821 = vcmp.ge.f32.partialorder %v789, 0.0
        %vm822 = vcmp.ge.f32.partialorder %v790, 0.0
        %vm823 = vcmp.ge.f32.partialorder %v791, 0.0
        %vm824 = vcmp.ge.f32.partialorder %v792, 0.0
        %vm825 = vcmp.ge.f32.partialorder %v793, 0.0
        %vm826 = vcmp.ge.f32.partialorder %v794, 0.0
        %vm827 = vcmp.ge.f32.partialorder %v795, 0.0
        %vm828 = vcmp.ge.f32.partialorder %v796, 0.0
        %vm829 = vcmp.ge.f32.partialorder %v797, 0.0
        %vm830 = vcmp.ge.f32.partialorder %v798, 0.0
        %vm831 = vcmp.ge.f32.partialorder %v799, 0.0
        %vm832 = vcmp.ge.f32.partialorder %v800, 0.0
        %vm833 = vcmp.ge.f32.partialorder %v801, 0.0
        %vm834 = vcmp.ge.f32.partialorder %v802, 0.0
        %vm835 = vcmp.ge.f32.partialorder %v803, 0.0
        %vm836 = vcmp.ge.f32.partialorder %v804, 0.0
        %vm837 = vcmp.ge.f32.partialorder %v805, 0.0
        %vm838 = vcmp.ge.f32.partialorder %v806, 0.0
        %vm839 = vcmp.ge.f32.partialorder %v807, 0.0
        %vm840 = vcmp.ge.f32.partialorder %v808, 0.0
        %vm841 = vcmp.ge.f32.partialorder %v809, 0.0
        %vm842 = vcmp.ge.f32.partialorder %v810, 0.0
        %vm843 = vcmp.ge.f32.partialorder %v811, 0.0
        %vm844 = vcmp.ge.f32.partialorder %v812, 0.0
        %vm845 = vcmp.ge.f32.partialorder %v813, 0.0
        %vm846 = vcmp.ge.f32.partialorder %v814, 0.0
        %vm847 = vcmp.ge.f32.partialorder %v815, 0.0
        %vm848 = vcmp.ge.f32.partialorder %v816, 0.0
        %vm849 = vcmp.ge.f32.partialorder %v817, 0.0
        %vm850 = vcmp.ge.f32.partialorder %v818, 0.0
        %v851 = vmul.f32 %v787, 0.2
        %v852 = vmul.f32 %v788, 0.2
        %v853 = vmul.f32 %v789, 0.2
        %v854 = vmul.f32 %v790, 0.2
        %v855 = vmul.f32 %v791, 0.2
        %v856 = vmul.f32 %v792, 0.2
        %v857 = vmul.f32 %v793, 0.2
        %v858 = vmul.f32 %v794, 0.2
        %v859 = vmul.f32 %v795, 0.2
        %v860 = vmul.f32 %v796, 0.2
        %v861 = vmul.f32 %v797, 0.2
        %v862 = vmul.f32 %v798, 0.2
        %v863 = vmul.f32 %v799, 0.2
        %v864 = vmul.f32 %v800, 0.2
        %v865 = vmul.f32 %v801, 0.2
        %v866 = vmul.f32 %v802, 0.2
        %v867 = vmul.f32 %v803, 0.2
        %v868 = vmul.f32 %v804, 0.2
        %v869 = vmul.f32 %v805, 0.2
        %v870 = vmul.f32 %v806, 0.2
        %v871 = vmul.f32 %v807, 0.2
        %v872 = vmul.f32 %v808, 0.2
        %v873 = vmul.f32 %v809, 0.2
        %v874 = vmul.f32 %v810, 0.2
        %v875 = vmul.f32 %v811, 0.2
        %v876 = vmul.f32 %v812, 0.2
        %v877 = vmul.f32 %v813, 0.2
        %v878 = vmul.f32 %v814, 0.2
        %v879 = vmul.f32 %v815, 0.2
        %v880 = vmul.f32 %v816, 0.2
        %v881 = vmul.f32 %v817, 0.2
        %v882 = vmul.f32 %v818, 0.2
        %v883 = vsel %vm819, %v787, %v851
        %v884 = vsel %vm820, %v788, %v852
        %v885 = vsel %vm821, %v789, %v853
        %v886 = vsel %vm822, %v790, %v854
        %v887 = vsel %vm823, %v791, %v855
        %v888 = vsel %vm824, %v792, %v856
        %v889 = vsel %vm825, %v793, %v857
        %v890 = vsel %vm826, %v794, %v858
        %v891 = vsel %vm827, %v795, %v859
        %v892 = vsel %vm828, %v796, %v860
        %v893 = vsel %vm829, %v797, %v861
        %v894 = vsel %vm830, %v798, %v862
        %v895 = vsel %vm831, %v799, %v863
        %v896 = vsel %vm832, %v800, %v864
        %v897 = vsel %vm833, %v801, %v865
        %v898 = vsel %vm834, %v802, %v866
        %v899 = vsel %vm835, %v803, %v867
        %v900 = vsel %vm836, %v804, %v868
        %v901 = vsel %vm837, %v805, %v869
        %v902 = vsel %vm838, %v806, %v870
        %v903 = vsel %vm839, %v807, %v871
        %v904 = vsel %vm840, %v808, %v872
        %v905 = vsel %vm841, %v809, %v873
        %v906 = vsel %vm842, %v810, %v874
        %v907 = vsel %vm843, %v811, %v875
        %v908 = vsel %vm844, %v812, %v876
        %v909 = vsel %vm845, %v813, %v877
        %v910 = vsel %vm846, %v814, %v878
        %v911 = vsel %vm847, %v815, %v879
        %v912 = vsel %vm848, %v816, %v880
        %v913 = vsel %vm849, %v817, %v881
        %v914 = vsel %vm850, %v818, %v882
        %915 = vst [vmem:[%s257] sm:$0xff] %v883
        %916 = vst [vmem:[%s257 + $0x8] sm:$0xff] %v884
        %917 = vst [vmem:[%s257 + $0x10] sm:$0xff] %v885
        %918 = vst [vmem:[%s257 + $0x18] sm:$0xff] %v886
        %919 = vst [vmem:[%s257 + $0x20] sm:$0xff] %v887
        %920 = vst [vmem:[%s257 + $0x28] sm:$0xff] %v888
        %921 = vst [vmem:[%s257 + $0x30] sm:$0xff] %v889
        %922 = vst [vmem:[%s257 + $0x38] sm:$0xff] %v890
        %923 = vst [vmem:[%s257 + $0x40] sm:$0xff] %v891
        %924 = vst [vmem:[%s257 + $0x48] sm:$0xff] %v892
        %925 = vst [vmem:[%s257 + $0x50] sm:$0xff] %v893
        %926 = vst [vmem:[%s257 + $0x58] sm:$0xff] %v894
        %927 = vst [vmem:[%s257 + $0x60] sm:$0xff] %v895
        %928 = vst [vmem:[%s257 + $0x68] sm:$0xff] %v896
        %929 = vst [vmem:[%s257 + $0x70] sm:$0xff] %v897
        %930 = vst [vmem:[%s257 + $0x78] sm:$0xff] %v898
        %931 = vst [vmem:[%s257 + $0x80] sm:$0xff] %v899
        %932 = vst [vmem:[%s257 + $0x88] sm:$0xff] %v900
        %933 = vst [vmem:[%s257 + $0x90] sm:$0xff] %v901
        %934 = vst [vmem:[%s257 + $0x98] sm:$0xff] %v902
        %935 = vst [vmem:[%s257 + $0xa0] sm:$0xff] %v903
        %936 = vst [vmem:[%s257 + $0xa8] sm:$0xff] %v904
        %937 = vst [vmem:[%s257 + $0xb0] sm:$0xff] %v905
        %938 = vst [vmem:[%s257 + $0xb8] sm:$0xff] %v906
        %939 = vst [vmem:[%s257 + $0xc0] sm:$0xff] %v907
        %940 = vst [vmem:[%s257 + $0xc8] sm:$0xff] %v908
        %941 = vst [vmem:[%s257 + $0xd0] sm:$0xff] %v909
        %942 = vst [vmem:[%s257 + $0xd8] sm:$0xff] %v910
        %943 = vst [vmem:[%s257 + $0xe0] sm:$0xff] %v911
        %944 = vst [vmem:[%s257 + $0xe8] sm:$0xff] %v912
        %945 = vst [vmem:[%s257 + $0xf0] sm:$0xff] %v913
        %946 = vst [vmem:[%s257 + $0xf8] sm:$0xff] %v914
      $region40: #{nlayer_discriminator_forward.8} parent=31 // pred_fallthru
        _
      %s947 = smul.u32 32, %s19
      %p948 = scmp.lt.s32.totalorder %s947, 63
      %s949 = scalar_select %p948, %s947, 63
      %p950 = scmp.lt.s32.totalorder %s20, 0
      %s951 = scalar_select %p950, %s20, 0
      %s952 = sadd.s32 %s951, %s949
      %s953 = smul.addr %s952, 8
      %s954 = scalar_lea.vmem %s3, %s953
      // Predicated region
      $region41: #{nlayer_discriminator_forward.8} parent=31 // pred_check
        %p955 = pneg %p135
      $region42: #{nlayer_discriminator_forward.8} parent=31 // pred_check_branch
        %957 = sbr.rel (%p955) target = $region44
      $region43: #{nlayer_discriminator_forward.8} parent=31 // pred_region
        %s958 = smul.u32 32, %s19
      $region44: #{nlayer_discriminator_forward.8} parent=31 // pred_fallthru
        _
    $region32: #{nlayer_discriminator_forward.8} parent=5 // pred_fallthru
      _
    %p959 = scmp.le.s32.totalorder 2, %s9
    // Predicated region
    $region45: #{nlayer_discriminator_forward.8} parent=5 // pred_check
      %p960 = pneg %p959
    $region46: #{nlayer_discriminator_forward.8} parent=5 // pred_check_branch
      %962 = sbr.rel (%p960) target = $region48
    $region47: #{nlayer_discriminator_forward.8} parent=5 // pred_region
      %s963 = ssub.s32 %s9, 2
      // Predicated region
      $region49: #{nlayer_discriminator_forward.8} parent=47 // pred_check
        %p964 = pneg %p141
      $region50: #{nlayer_discriminator_forward.8} parent=47 // pred_check_branch
        %966 = sbr.rel (%p964) target = $region52
      $region51: #{nlayer_discriminator_forward.8} parent=47 // pred_region
        %s967 = smul.u32 32, %s22
        %p968 = scmp.lt.s32.totalorder %s967, 63
        %s969 = scalar_select %p968, %s967, 63
        %p970 = scmp.lt.s32.totalorder %s23, 0
        %s971 = scalar_select %p970, %s23, 0
        %s972 = sadd.s32 %s971, %s969
        %s973 = smul.addr %s972, 8
        %s974 = scalar_lea.vmem %s3, %s973
      $region52: #{nlayer_discriminator_forward.8} parent=47 // pred_fallthru
        _
    $region48: #{nlayer_discriminator_forward.8} parent=5 // pred_fallthru
      _
  $region6: #{nlayer_discriminator_forward.8} parent=0 // loop_footer
    %s13 = sadd.s32 1, %s9
  $region7: #{nlayer_discriminator_forward.8} parent=0 // loop_footer_branch
    %8 = sbr.rel target = $region3
  $region8: #{nlayer_discriminator_forward.8} parent=0 // loop_exit
    _

// kernel: nlayer_discriminator_forward.9
$region0: #{nlayer_discriminator_forward.9}
  #allocation0 [shape = 'u32[]', space=smem, size = 0x4, offset = 0x4, fixed_abs, tag = 'smem constant byte address 0x4 - core index']
  #allocation1 [shape = 'u32[144,128]{1,0:T(1,128)}', space=vmem, size = 0x12000, scoped, tag = 'internal scratch']
  #allocation2 [shape = 'f32[128,128]{1,0:T(8,128)}', space=vmem, size = 0x10000, scoped, tag = 'scratch operand']
  %s0 = inlined_call_operand.vmem [shape: bf16[128,256], index: 0, kind: input, shape index: {}]
  %s1 = inlined_call_operand.vmem [shape: bf16[256,128], index: 1, kind: input, shape index: {}]
  %s2 = inlined_call_operand.vmem [shape: f32[128,128], index: 2, kind: output, shape index: {0}]
  %s3 = inlined_call_operand.vmem [shape: f32[1,128], index: 3, kind: output, shape index: {1}]
  %s4 = inlined_call_operand.vmem [shape: f32[1,128], index: 4, kind: output, shape index: {2}]
  %5 = xla_tuple %s2, %s3, %s4
  %s6 = sld [smem:[#allocation0]]
  $region46: #{nlayer_discriminator_forward.9} parent=0
    _
  %s8 = ssub.s32 1, %s6
  %s9 = scalar_select 0, %s8, %s6
  // Predicated region
  $region2: #{nlayer_discriminator_forward.9} parent=0 // pred_check
    _
  $region3: #{nlayer_discriminator_forward.9} parent=0 // pred_check_branch
    %11 = sbr.rel (0) target = $region5
  $region4: #{nlayer_discriminator_forward.9} parent=0 // pred_region
    _
  $region5: #{nlayer_discriminator_forward.9} parent=0 // pred_fallthru
    _
  // Predicated region
  $region6: #{nlayer_discriminator_forward.9} parent=0 // pred_check
    _
  $region7: #{nlayer_discriminator_forward.9} parent=0 // pred_check_branch
    %13 = sbr.rel (0) target = $region9
  $region8: #{nlayer_discriminator_forward.9} parent=0 // pred_region
    _
  $region9: #{nlayer_discriminator_forward.9} parent=0 // pred_fallthru
    _
  %p15 = scmp.eq.s32.totalorder 0, 0
  // Predicated region
  $region10: #{nlayer_discriminator_forward.9} parent=0 // pred_check
    %p16 = pneg %p15
  $region11: #{nlayer_discriminator_forward.9} parent=0 // pred_check_branch
    %18 = sbr.rel (%p16) target = $region13
  $region12: #{nlayer_discriminator_forward.9} parent=0 // pred_region
    %19 = vst [vmem:[#allocation2] sm:$0xff] 0.0
    %20 = vst [vmem:[#allocation2 + $0x8] sm:$0xff] 0.0
    %21 = vst [vmem:[#allocation2 + $0x10] sm:$0xff] 0.0
    %22 = vst [vmem:[#allocation2 + $0x18] sm:$0xff] 0.0
    %23 = vst [vmem:[#allocation2 + $0x20] sm:$0xff] 0.0
    %24 = vst [vmem:[#allocation2 + $0x28] sm:$0xff] 0.0
    %25 = vst [vmem:[#allocation2 + $0x30] sm:$0xff] 0.0
    %26 = vst [vmem:[#allocation2 + $0x38] sm:$0xff] 0.0
    %27 = vst [vmem:[#allocation2 + $0x40] sm:$0xff] 0.0
    %28 = vst [vmem:[#allocation2 + $0x48] sm:$0xff] 0.0
    %29 = vst [vmem:[#allocation2 + $0x50] sm:$0xff] 0.0
    %30 = vst [vmem:[#allocation2 + $0x58] sm:$0xff] 0.0
    %31 = vst [vmem:[#allocation2 + $0x60] sm:$0xff] 0.0
    %32 = vst [vmem:[#allocation2 + $0x68] sm:$0xff] 0.0
    %33 = vst [vmem:[#allocation2 + $0x70] sm:$0xff] 0.0
    %34 = vst [vmem:[#allocation2 + $0x78] sm:$0xff] 0.0
  $region13: #{nlayer_discriminator_forward.9} parent=0 // pred_fallthru
    _
  %p35 = scmp.eq.s32.totalorder 0, 0
  %p36 = pnand %p35, %p15
  %p37 = pneg %p36
  // Predicated region
  $region14: #{nlayer_discriminator_forward.9} parent=0 // pred_check
    _
  $region15: #{nlayer_discriminator_forward.9} parent=0 // pred_check_branch
    %39 = sbr.rel (%p36) target = $region17
  $region16: #{nlayer_discriminator_forward.9} parent=0 // pred_region
    %40 = vst [vmem:[%s3] sm:$0x1] 0.0
    %41 = vst [vmem:[%s4] sm:$0x1] 0.0
  $region17: #{nlayer_discriminator_forward.9} parent=0 // pred_fallthru
    _
  %v42 = vld [vmem:[#allocation2] sm:$0xff]
  %v43 = vld [vmem:[#allocation2 + $0x8] sm:$0xff]
  %v44 = vld [vmem:[#allocation2 + $0x10] sm:$0xff]
  %v45 = vld [vmem:[#allocation2 + $0x18] sm:$0xff]
  %v46 = vld [vmem:[#allocation2 + $0x20] sm:$0xff]
  %v47 = vld [vmem:[#allocation2 + $0x28] sm:$0xff]
  %v48 = vld [vmem:[#allocation2 + $0x30] sm:$0xff]
  %v49 = vld [vmem:[#allocation2 + $0x38] sm:$0xff]
  %v50 = vld [vmem:[#allocation2 + $0x40] sm:$0xff]
  %v51 = vld [vmem:[#allocation2 + $0x48] sm:$0xff]
  %v52 = vld [vmem:[#allocation2 + $0x50] sm:$0xff]
  %v53 = vld [vmem:[#allocation2 + $0x58] sm:$0xff]
  %v54 = vld [vmem:[#allocation2 + $0x60] sm:$0xff]
  %v55 = vld [vmem:[#allocation2 + $0x68] sm:$0xff]
  %v56 = vld [vmem:[#allocation2 + $0x70] sm:$0xff]
  %v57 = vld [vmem:[#allocation2 + $0x78] sm:$0xff]
  %v58 = vld [vmem:[%s0] sm:$0xff]
  %v59 = vld [vmem:[%s0 + $0x8] sm:$0xff]
  %v60 = vld [vmem:[%s0 + $0x10] sm:$0xff]
  %v61 = vld [vmem:[%s0 + $0x18] sm:$0xff]
  %v62 = vld [vmem:[%s0 + $0x20] sm:$0xff]
  %v63 = vld [vmem:[%s0 + $0x28] sm:$0xff]
  %v64 = vld [vmem:[%s0 + $0x30] sm:$0xff]
  %v65 = vld [vmem:[%s0 + $0x38] sm:$0xff]
  %v66 = vld [vmem:[%s0 + $0x40] sm:$0xff]
  %v67 = vld [vmem:[%s0 + $0x48] sm:$0xff]
  %v68 = vld [vmem:[%s0 + $0x50] sm:$0xff]
  %v69 = vld [vmem:[%s0 + $0x58] sm:$0xff]
  %v70 = vld [vmem:[%s0 + $0x60] sm:$0xff]
  %v71 = vld [vmem:[%s0 + $0x68] sm:$0xff]
  %v72 = vld [vmem:[%s0 + $0x70] sm:$0xff]
  %v73 = vld [vmem:[%s0 + $0x78] sm:$0xff]
  %v74 = vld [vmem:[%s1] sm:$0xf]
  %v75 = vld [vmem:[%s1 + $0x4] sm:$0xf]
  %v76 = vld [vmem:[%s1 + $0x8] sm:$0xf]
  %v77 = vld [vmem:[%s1 + $0xc] sm:$0xf]
  %v78 = vld [vmem:[%s1 + $0x10] sm:$0xf]
  %v79 = vld [vmem:[%s1 + $0x14] sm:$0xf]
  %v80 = vld [vmem:[%s1 + $0x18] sm:$0xf]
  %v81 = vld [vmem:[%s1 + $0x1c] sm:$0xf]
  %v82 = vld [vmem:[%s1 + $0x20] sm:$0xf]
  %v83 = vld [vmem:[%s1 + $0x24] sm:$0xf]
  %v84 = vld [vmem:[%s1 + $0x28] sm:$0xf]
  %v85 = vld [vmem:[%s1 + $0x2c] sm:$0xf]
  %v86 = vld [vmem:[%s1 + $0x30] sm:$0xf]
  %v87 = vld [vmem:[%s1 + $0x34] sm:$0xf]
  %v88 = vld [vmem:[%s1 + $0x38] sm:$0xf]
  %v89 = vld [vmem:[%s1 + $0x3c] sm:$0xf]
  %v90 = vld [vmem:[%s1 + $0x40] sm:$0xf]
  %v91 = vld [vmem:[%s1 + $0x44] sm:$0xf]
  %v92 = vld [vmem:[%s1 + $0x48] sm:$0xf]
  %v93 = vld [vmem:[%s1 + $0x4c] sm:$0xf]
  %v94 = vld [vmem:[%s1 + $0x50] sm:$0xf]
  %v95 = vld [vmem:[%s1 + $0x54] sm:$0xf]
  %v96 = vld [vmem:[%s1 + $0x58] sm:$0xf]
  %v97 = vld [vmem:[%s1 + $0x5c] sm:$0xf]
  %v98 = vld [vmem:[%s1 + $0x60] sm:$0xf]
  %v99 = vld [vmem:[%s1 + $0x64] sm:$0xf]
  %v100 = vld [vmem:[%s1 + $0x68] sm:$0xf]
  %v101 = vld [vmem:[%s1 + $0x6c] sm:$0xf]
  %v102 = vld [vmem:[%s1 + $0x70] sm:$0xf]
  %v103 = vld [vmem:[%s1 + $0x74] sm:$0xf]
  %v104 = vld [vmem:[%s1 + $0x78] sm:$0xf]
  %v105 = vld [vmem:[%s1 + $0x7c] sm:$0xf]
  %v122 = vunpack.c.l.b16 %v58
  %v123 = vunpack.c.h.b16 %v58
  %v124 = vunpack.c.l.b16 %v59
  %v125 = vunpack.c.h.b16 %v59
  %v126 = vunpack.c.l.b16 %v60
  %v127 = vunpack.c.h.b16 %v60
  %v128 = vunpack.c.l.b16 %v61
  %v129 = vunpack.c.h.b16 %v61
  %v130 = vunpack.c.l.b16 %v62
  %v131 = vunpack.c.h.b16 %v62
  %v132 = vunpack.c.l.b16 %v63
  %v133 = vunpack.c.h.b16 %v63
  %v134 = vunpack.c.l.b16 %v64
  %v135 = vunpack.c.h.b16 %v64
  %v136 = vunpack.c.l.b16 %v65
  %v137 = vunpack.c.h.b16 %v65
  %v138 = vunpack.c.l.b16 %v66
  %v139 = vunpack.c.h.b16 %v66
  %v140 = vunpack.c.l.b16 %v67
  %v141 = vunpack.c.h.b16 %v67
  %v142 = vunpack.c.l.b16 %v68
  %v143 = vunpack.c.h.b16 %v68
  %v144 = vunpack.c.l.b16 %v69
  %v145 = vunpack.c.h.b16 %v69
  %v146 = vunpack.c.l.b16 %v70
  %v147 = vunpack.c.h.b16 %v70
  %v148 = vunpack.c.l.b16 %v71
  %v149 = vunpack.c.h.b16 %v71
  %v150 = vunpack.c.l.b16 %v72
  %v151 = vunpack.c.h.b16 %v72
  %v152 = vunpack.c.l.b16 %v73
  %v153 = vunpack.c.h.b16 %v73
  %v154 = vpack.c.b16 %v124, %v122
  %v155 = vpack.c.b16 %v125, %v123
  %v156 = vpack.c.b16 %v128, %v126
  %v157 = vpack.c.b16 %v129, %v127
  %v158 = vpack.c.b16 %v132, %v130
  %v159 = vpack.c.b16 %v133, %v131
  %v160 = vpack.c.b16 %v136, %v134
  %v161 = vpack.c.b16 %v137, %v135
  %v162 = vpack.c.b16 %v140, %v138
  %v163 = vpack.c.b16 %v141, %v139
  %v164 = vpack.c.b16 %v144, %v142
  %v165 = vpack.c.b16 %v145, %v143
  %v166 = vpack.c.b16 %v148, %v146
  %v167 = vpack.c.b16 %v149, %v147
  %v168 = vpack.c.b16 %v152, %v150
  %v169 = vpack.c.b16 %v153, %v151
  %v218 = vunpack.c.l.b16 %v74
  %v219 = vunpack.c.l.b16 %v75
  %v220 = vunpack.c.l.b16 %v76
  %v221 = vunpack.c.l.b16 %v77
  %v222 = vunpack.c.l.b16 %v78
  %v223 = vunpack.c.l.b16 %v79
  %v224 = vunpack.c.l.b16 %v80
  %v225 = vunpack.c.l.b16 %v81
  %v226 = vunpack.c.l.b16 %v82
  %v227 = vunpack.c.l.b16 %v83
  %v228 = vunpack.c.l.b16 %v84
  %v229 = vunpack.c.l.b16 %v85
  %v230 = vunpack.c.l.b16 %v86
  %v231 = vunpack.c.l.b16 %v87
  %v232 = vunpack.c.l.b16 %v88
  %v233 = vunpack.c.l.b16 %v89
  %v234 = vunpack.c.l.b16 %v90
  %v235 = vunpack.c.l.b16 %v91
  %v236 = vunpack.c.l.b16 %v92
  %v237 = vunpack.c.l.b16 %v93
  %v238 = vunpack.c.l.b16 %v94
  %v239 = vunpack.c.l.b16 %v95
  %v240 = vunpack.c.l.b16 %v96
  %v241 = vunpack.c.l.b16 %v97
  %v242 = vunpack.c.l.b16 %v98
  %v243 = vunpack.c.l.b16 %v99
  %v244 = vunpack.c.l.b16 %v100
  %v245 = vunpack.c.l.b16 %v101
  %v246 = vunpack.c.l.b16 %v102
  %v247 = vunpack.c.l.b16 %v103
  %v248 = vunpack.c.l.b16 %v104
  %v249 = vunpack.c.l.b16 %v105
  %v250 = vpack.c.b16 %v219, %v218
  %v251 = vpack.c.b16 %v221, %v220
  %v252 = vpack.c.b16 %v223, %v222
  %v253 = vpack.c.b16 %v225, %v224
  %v254 = vpack.c.b16 %v227, %v226
  %v255 = vpack.c.b16 %v229, %v228
  %v256 = vpack.c.b16 %v231, %v230
  %v257 = vpack.c.b16 %v233, %v232
  %v258 = vpack.c.b16 %v235, %v234
  %v259 = vpack.c.b16 %v237, %v236
  %v260 = vpack.c.b16 %v239, %v238
  %v261 = vpack.c.b16 %v241, %v240
  %v262 = vpack.c.b16 %v243, %v242
  %v263 = vpack.c.b16 %v245, %v244
  %v264 = vpack.c.b16 %v247, %v246
  %v265 = vpack.c.b16 %v249, %v248
  %282 = vmatprep.subr.bf16.mxu0 0
  %283 = vmatpush1.bf16.msra.mxu0 %v250
  %284 = vmatprep.subr.bf16.mxu0 0
  %285 = vmatpush1.bf16.msra.mxu0 %v251
  %286 = vmatprep.subr.bf16.mxu0 0
  %287 = vmatpush1.bf16.msra.mxu0 %v252
  %288 = vmatprep.subr.bf16.mxu0 0
  %289 = vmatpush1.bf16.msra.mxu0 %v253
  %290 = vmatprep.subr.bf16.mxu0 0
  %291 = vmatpush1.bf16.msra.mxu0 %v254
  %292 = vmatprep.subr.bf16.mxu0 0
  %293 = vmatpush1.bf16.msra.mxu0 %v255
  %294 = vmatprep.subr.bf16.mxu0 0
  %295 = vmatpush1.bf16.msra.mxu0 %v256
  %296 = vmatprep.subr.bf16.mxu0 0
  %297 = vmatpush1.bf16.msra.mxu0 %v257
  %298 = vmatprep.subr.bf16.mxu0 0
  %299 = vmatpush1.bf16.msra.mxu0 %v258
  %300 = vmatprep.subr.bf16.mxu0 0
  %301 = vmatpush1.bf16.msra.mxu0 %v259
  %302 = vmatprep.subr.bf16.mxu0 0
  %303 = vmatpush1.bf16.msra.mxu0 %v260
  %304 = vmatprep.subr.bf16.mxu0 0
  %305 = vmatpush1.bf16.msra.mxu0 %v261
  %306 = vmatprep.subr.bf16.mxu0 0
  %307 = vmatpush1.bf16.msra.mxu0 %v262
  %308 = vmatprep.subr.bf16.mxu0 0
  %309 = vmatpush1.bf16.msra.mxu0 %v263
  %310 = vmatprep.subr.bf16.mxu0 0
  %311 = vmatpush1.bf16.msra.mxu0 %v264
  %312 = vmatprep.subr.bf16.mxu0 0
  %313 = vmatpush1.bf16.msra.mxu0 %v265
  %314 = vmatprep.mubr.bf16.mxu0 %v155
  %315 = vmatmul.mubr.bf16.gmra.mrb[0].mxu0 %v154
  %v316 = vpop.f32.mrb[0].mxu0
  %v317 = vadd.f32 0.0, %v316
  %v318 = vpop.f32.mrb[0].mxu0
  %v319 = vpop.f32.mrb[0].mxu0
  %v320 = vadd.f32 0.0, %v319
  %v321 = vpop.f32.mrb[0].mxu0
  %322 = vmatprep.mubr.bf16.mxu0 %v157
  %323 = vmatmul.mubr.bf16.gmra.mrb[0].mxu0 %v156
  %v324 = vpop.f32.mrb[0].mxu0
  %v325 = vadd.f32 0.0, %v324
  %v326 = vpop.f32.mrb[0].mxu0
  %v327 = vpop.f32.mrb[0].mxu0
  %v328 = vadd.f32 0.0, %v327
  %v329 = vpop.f32.mrb[0].mxu0
  %330 = vmatprep.mubr.bf16.mxu0 %v159
  %331 = vmatmul.mubr.bf16.gmra.mrb[0].mxu0 %v158
  %v332 = vpop.f32.mrb[0].mxu0
  %v333 = vadd.f32 0.0, %v332
  %v334 = vpop.f32.mrb[0].mxu0
  %v335 = vpop.f32.mrb[0].mxu0
  %v336 = vadd.f32 0.0, %v335
  %v337 = vpop.f32.mrb[0].mxu0
  %338 = vmatprep.mubr.bf16.mxu0 %v161
  %339 = vmatmul.mubr.bf16.gmra.mrb[0].mxu0 %v160
  %v340 = vpop.f32.mrb[0].mxu0
  %v341 = vadd.f32 0.0, %v340
  %v342 = vpop.f32.mrb[0].mxu0
  %v343 = vpop.f32.mrb[0].mxu0
  %v344 = vadd.f32 0.0, %v343
  %v345 = vpop.f32.mrb[0].mxu0
  %346 = vmatprep.mubr.bf16.mxu0 %v163
  %347 = vmatmul.mubr.bf16.gmra.mrb[0].mxu0 %v162
  %v348 = vpop.f32.mrb[0].mxu0
  %v349 = vadd.f32 0.0, %v348
  %v350 = vpop.f32.mrb[0].mxu0
  %v351 = vpop.f32.mrb[0].mxu0
  %v352 = vadd.f32 0.0, %v351
  %v353 = vpop.f32.mrb[0].mxu0
  %354 = vmatprep.mubr.bf16.mxu0 %v165
  %355 = vmatmul.mubr.bf16.gmra.mrb[0].mxu0 %v164
  %v356 = vpop.f32.mrb[0].mxu0
  %v357 = vadd.f32 0.0, %v356
  %v358 = vpop.f32.mrb[0].mxu0
  %v359 = vpop.f32.mrb[0].mxu0
  %v360 = vadd.f32 0.0, %v359
  %v361 = vpop.f32.mrb[0].mxu0
  %362 = vmatprep.mubr.bf16.mxu0 %v167
  %363 = vmatmul.mubr.bf16.gmra.mrb[0].mxu0 %v166
  %v364 = vpop.f32.mrb[0].mxu0
  %v365 = vadd.f32 0.0, %v364
  %v366 = vpop.f32.mrb[0].mxu0
  %v367 = vpop.f32.mrb[0].mxu0
  %v368 = vadd.f32 0.0, %v367
  %v369 = vpop.f32.mrb[0].mxu0
  %370 = vmatprep.mubr.bf16.mxu0 %v169
  %371 = vmatmul.mubr.bf16.gmra.mrb[0].mxu0 %v168
  %v372 = vpop.f32.mrb[0].mxu0
  %v373 = vadd.f32 0.0, %v372
  %v374 = vpop.f32.mrb[0].mxu0
  %v375 = vpop.f32.mrb[0].mxu0
  %v376 = vadd.f32 0.0, %v375
  %v377 = vpop.f32.mrb[0].mxu0
  %378 = vdwg.mxu0
  %v379 = vadd.f32 %v42, %v317
  %v380 = vadd.f32 %v43, %v320
  %v381 = vadd.f32 %v44, %v325
  %v382 = vadd.f32 %v45, %v328
  %v383 = vadd.f32 %v46, %v333
  %v384 = vadd.f32 %v47, %v336
  %v385 = vadd.f32 %v48, %v341
  %v386 = vadd.f32 %v49, %v344
  %v387 = vadd.f32 %v50, %v349
  %v388 = vadd.f32 %v51, %v352
  %v389 = vadd.f32 %v52, %v357
  %v390 = vadd.f32 %v53, %v360
  %v391 = vadd.f32 %v54, %v365
  %v392 = vadd.f32 %v55, %v368
  %v393 = vadd.f32 %v56, %v373
  %v394 = vadd.f32 %v57, %v376
  %395 = vst [vmem:[#allocation2] sm:$0xff] %v379
  %396 = vst [vmem:[#allocation2 + $0x8] sm:$0xff] %v380
  %397 = vst [vmem:[#allocation2 + $0x10] sm:$0xff] %v381
  %398 = vst [vmem:[#allocation2 + $0x18] sm:$0xff] %v382
  %399 = vst [vmem:[#allocation2 + $0x20] sm:$0xff] %v383
  %400 = vst [vmem:[#allocation2 + $0x28] sm:$0xff] %v384
  %401 = vst [vmem:[#allocation2 + $0x30] sm:$0xff] %v385
  %402 = vst [vmem:[#allocation2 + $0x38] sm:$0xff] %v386
  %403 = vst [vmem:[#allocation2 + $0x40] sm:$0xff] %v387
  %404 = vst [vmem:[#allocation2 + $0x48] sm:$0xff] %v388
  %405 = vst [vmem:[#allocation2 + $0x50] sm:$0xff] %v389
  %406 = vst [vmem:[#allocation2 + $0x58] sm:$0xff] %v390
  %407 = vst [vmem:[#allocation2 + $0x60] sm:$0xff] %v391
  %408 = vst [vmem:[#allocation2 + $0x68] sm:$0xff] %v392
  %409 = vst [vmem:[#allocation2 + $0x70] sm:$0xff] %v393
  %410 = vst [vmem:[#allocation2 + $0x78] sm:$0xff] %v394
  // Predicated region
  $region18: #{nlayer_discriminator_forward.9} parent=0 // pred_check
    %p411 = pneg %p15
  $region19: #{nlayer_discriminator_forward.9} parent=0 // pred_check_branch
    %413 = sbr.rel (%p411) target = $region21
  $region20: #{nlayer_discriminator_forward.9} parent=0 // pred_region
    %v414 = vld [vmem:[#allocation2] sm:$0xff]
    %v415 = vld [vmem:[#allocation2 + $0x8] sm:$0xff]
    %v416 = vld [vmem:[#allocation2 + $0x10] sm:$0xff]
    %v417 = vld [vmem:[#allocation2 + $0x18] sm:$0xff]
    %v418 = vld [vmem:[#allocation2 + $0x20] sm:$0xff]
    %v419 = vld [vmem:[#allocation2 + $0x28] sm:$0xff]
    %v420 = vld [vmem:[#allocation2 + $0x30] sm:$0xff]
    %v421 = vld [vmem:[#allocation2 + $0x38] sm:$0xff]
    %v422 = vld [vmem:[#allocation2 + $0x40] sm:$0xff]
    %v423 = vld [vmem:[#allocation2 + $0x48] sm:$0xff]
    %v424 = vld [vmem:[#allocation2 + $0x50] sm:$0xff]
    %v425 = vld [vmem:[#allocation2 + $0x58] sm:$0xff]
    %v426 = vld [vmem:[#allocation2 + $0x60] sm:$0xff]
    %v427 = vld [vmem:[#allocation2 + $0x68] sm:$0xff]
    %v428 = vld [vmem:[#allocation2 + $0x70] sm:$0xff]
    %v429 = vld [vmem:[#allocation2 + $0x78] sm:$0xff]
    %430 = vst [vmem:[%s2] sm:$0xff] %v414
    %431 = vst [vmem:[%s2 + $0x8] sm:$0xff] %v415
    %432 = vst [vmem:[%s2 + $0x10] sm:$0xff] %v416
    %433 = vst [vmem:[%s2 + $0x18] sm:$0xff] %v417
    %434 = vst [vmem:[%s2 + $0x20] sm:$0xff] %v418
    %435 = vst [vmem:[%s2 + $0x28] sm:$0xff] %v419
    %436 = vst [vmem:[%s2 + $0x30] sm:$0xff] %v420
    %437 = vst [vmem:[%s2 + $0x38] sm:$0xff] %v421
    %438 = vst [vmem:[%s2 + $0x40] sm:$0xff] %v422
    %439 = vst [vmem:[%s2 + $0x48] sm:$0xff] %v423
    %440 = vst [vmem:[%s2 + $0x50] sm:$0xff] %v424
    %441 = vst [vmem:[%s2 + $0x58] sm:$0xff] %v425
    %442 = vst [vmem:[%s2 + $0x60] sm:$0xff] %v426
    %443 = vst [vmem:[%s2 + $0x68] sm:$0xff] %v427
    %444 = vst [vmem:[%s2 + $0x70] sm:$0xff] %v428
    %445 = vst [vmem:[%s2 + $0x78] sm:$0xff] %v429
    %v446 = vld [vmem:[%s3] sm:$0x1]
    %v447 = vadd.f32 %v414, %v415
    %v448 = vadd.f32 %v447, %v416
    %v449 = vadd.f32 %v448, %v417
    %v450 = vadd.f32 %v449, %v418
    %v451 = vadd.f32 %v450, %v419
    %v452 = vadd.f32 %v451, %v420
    %v453 = vadd.f32 %v452, %v421
    %v454 = vadd.f32 %v453, %v422
    %v455 = vadd.f32 %v454, %v423
    %v456 = vadd.f32 %v455, %v424
    %v457 = vadd.f32 %v456, %v425
    %v458 = vadd.f32 %v457, %v426
    %v459 = vadd.f32 %v458, %v427
    %v460 = vadd.f32 %v459, %v428
    %v461 = vadd.f32 %v460, %v429
    %v462 = vrot.slane %v461, 4
    %v463 = vadd.f32 %v461, %v462
    %v464 = vrot.slane %v463, 2
    %v465 = vadd.f32 %v463, %v464
    %v466 = vrot.slane %v465, 1
    %v467 = vadd.f32 %v465, %v466
    %v468 = vadd.f32 %v446, %v467
    %469 = vst [vmem:[%s3] sm:$0x1] %v468
    %v470 = vld [vmem:[%s4] sm:$0x1]
    %v471 = vmul.f32 %v414, %v414
    %v472 = vmul.f32 %v415, %v415
    %v473 = vmul.f32 %v416, %v416
    %v474 = vmul.f32 %v417, %v417
    %v475 = vmul.f32 %v418, %v418
    %v476 = vmul.f32 %v419, %v419
    %v477 = vmul.f32 %v420, %v420
    %v478 = vmul.f32 %v421, %v421
    %v479 = vmul.f32 %v422, %v422
    %v480 = vmul.f32 %v423, %v423
    %v481 = vmul.f32 %v424, %v424
    %v482 = vmul.f32 %v425, %v425
    %v483 = vmul.f32 %v426, %v426
    %v484 = vmul.f32 %v427, %v427
    %v485 = vmul.f32 %v428, %v428
    %v486 = vmul.f32 %v429, %v429
    %v487 = vadd.f32 %v471, %v472
    %v488 = vadd.f32 %v487, %v473
    %v489 = vadd.f32 %v488, %v474
    %v490 = vadd.f32 %v489, %v475
    %v491 = vadd.f32 %v490, %v476
    %v492 = vadd.f32 %v491, %v477
    %v493 = vadd.f32 %v492, %v478
    %v494 = vadd.f32 %v493, %v479
    %v495 = vadd.f32 %v494, %v480
    %v496 = vadd.f32 %v495, %v481
    %v497 = vadd.f32 %v496, %v482
    %v498 = vadd.f32 %v497, %v483
    %v499 = vadd.f32 %v498, %v484
    %v500 = vadd.f32 %v499, %v485
    %v501 = vadd.f32 %v500, %v486
    %v502 = vrot.slane %v501, 4
    %v503 = vadd.f32 %v501, %v502
    %v504 = vrot.slane %v503, 2
    %v505 = vadd.f32 %v503, %v504
    %v506 = vrot.slane %v505, 1
    %v507 = vadd.f32 %v505, %v506
    %v508 = vadd.f32 %v470, %v507
    %509 = vst [vmem:[%s4] sm:$0x1] %v508
  $region21: #{nlayer_discriminator_forward.9} parent=0 // pred_fallthru
    _
  // Predicated region
  $region22: #{nlayer_discriminator_forward.9} parent=0 // pred_check
    _
  $region23: #{nlayer_discriminator_forward.9} parent=0 // pred_check_branch
    %511 = sbr.rel (0) target = $region25
  $region24: #{nlayer_discriminator_forward.9} parent=0 // pred_region
    _
  $region25: #{nlayer_discriminator_forward.9} parent=0 // pred_fallthru
    _
  // Predicated region
  $region26: #{nlayer_discriminator_forward.9} parent=0 // pred_check
    _
  $region27: #{nlayer_discriminator_forward.9} parent=0 // pred_check_branch
    %513 = sbr.rel (0) target = $region29
  $region28: #{nlayer_discriminator_forward.9} parent=0 // pred_region
    _
  $region29: #{nlayer_discriminator_forward.9} parent=0 // pred_fallthru
    _
  // Predicated region
  $region30: #{nlayer_discriminator_forward.9} parent=0 // pred_check
    _
  $region31: #{nlayer_discriminator_forward.9} parent=0 // pred_check_branch
    %515 = sbr.rel (0) target = $region33
  $region32: #{nlayer_discriminator_forward.9} parent=0 // pred_region
    _
  $region33: #{nlayer_discriminator_forward.9} parent=0 // pred_fallthru
    _
  // Predicated region
  $region34: #{nlayer_discriminator_forward.9} parent=0 // pred_check
    _
  $region35: #{nlayer_discriminator_forward.9} parent=0 // pred_check_branch
    %517 = sbr.rel (0) target = $region37
  $region36: #{nlayer_discriminator_forward.9} parent=0 // pred_region
    _
  $region37: #{nlayer_discriminator_forward.9} parent=0 // pred_fallthru
    _
  // Predicated region
  $region38: #{nlayer_discriminator_forward.9} parent=0 // pred_check
    _
  $region39: #{nlayer_discriminator_forward.9} parent=0 // pred_check_branch
    %519 = sbr.rel (0) target = $region41
  $region40: #{nlayer_discriminator_forward.9} parent=0 // pred_region
    _
  $region41: #{nlayer_discriminator_forward.9} parent=0 // pred_fallthru
    _
  // Predicated region
  $region42: #{nlayer_discriminator_forward.9} parent=0 // pred_check
    _
  $region43: #{nlayer_discriminator_forward.9} parent=0 // pred_check_branch
    %521 = sbr.rel (0) target = $region45
  $region44: #{nlayer_discriminator_forward.9} parent=0 // pred_region
    _
  $region45: #{nlayer_discriminator_forward.9} parent=0 // pred_fallthru
    _

// kernel: nlayer_discriminator_forward.10
$region0: #{nlayer_discriminator_forward.10}
  #allocation0 [shape = 'u32[]', space=smem, size = 0x4, offset = 0x4, fixed_abs, tag = 'smem constant byte address 0x4 - core index']
  #allocation1 [shape = 'u32[144,128]{1,0:T(1,128)}', space=vmem, size = 0x12000, scoped, tag = 'internal scratch']
  %s0 = inlined_call_operand.vmem [shape: f32[128,128], index: 0, kind: input, shape index: {}]
  %s1 = inlined_call_operand.vmem [shape: f32[1,128], index: 1, kind: input, shape index: {}]
  %s2 = inlined_call_operand.vmem [shape: f32[1,128], index: 2, kind: input, shape index: {}]
  %s3 = inlined_call_operand.vmem [shape: f32[1,128], index: 3, kind: input, shape index: {}]
  %s4 = inlined_call_operand.vmem [shape: f32[1,128], index: 4, kind: input, shape index: {}]
  %s5 = inlined_call_operand.vmem [shape: f32[128,128], index: 5, kind: output, shape index: {}]
  %s6 = sld [smem:[#allocation0]]
  $region30: #{nlayer_discriminator_forward.10} parent=0
    _
  %s8 = ssub.s32 1, %s6
  %s9 = scalar_select 0, %s8, %s6
  // Predicated region
  $region2: #{nlayer_discriminator_forward.10} parent=0 // pred_check
    _
  $region3: #{nlayer_discriminator_forward.10} parent=0 // pred_check_branch
    %11 = sbr.rel (0) target = $region5
  $region4: #{nlayer_discriminator_forward.10} parent=0 // pred_region
    _
  $region5: #{nlayer_discriminator_forward.10} parent=0 // pred_fallthru
    _
  // Predicated region
  $region6: #{nlayer_discriminator_forward.10} parent=0 // pred_check
    _
  $region7: #{nlayer_discriminator_forward.10} parent=0 // pred_check_branch
    %13 = sbr.rel (0) target = $region9
  $region8: #{nlayer_discriminator_forward.10} parent=0 // pred_region
    _
  $region9: #{nlayer_discriminator_forward.10} parent=0 // pred_fallthru
    _
  // Predicated region
  $region10: #{nlayer_discriminator_forward.10} parent=0 // pred_check
    _
  $region11: #{nlayer_discriminator_forward.10} parent=0 // pred_check_branch
    %15 = sbr.rel (0) target = $region13
  $region12: #{nlayer_discriminator_forward.10} parent=0 // pred_region
    _
  $region13: #{nlayer_discriminator_forward.10} parent=0 // pred_fallthru
    _
  // Predicated region
  $region14: #{nlayer_discriminator_forward.10} parent=0 // pred_check
    _
  $region15: #{nlayer_discriminator_forward.10} parent=0 // pred_check_branch
    %17 = sbr.rel (0) target = $region17
  $region16: #{nlayer_discriminator_forward.10} parent=0 // pred_region
    _
  $region17: #{nlayer_discriminator_forward.10} parent=0 // pred_fallthru
    _
  // Predicated region
  $region18: #{nlayer_discriminator_forward.10} parent=0 // pred_check
    _
  $region19: #{nlayer_discriminator_forward.10} parent=0 // pred_check_branch
    %19 = sbr.rel (0) target = $region21
  $region20: #{nlayer_discriminator_forward.10} parent=0 // pred_region
    _
  $region21: #{nlayer_discriminator_forward.10} parent=0 // pred_fallthru
    _
  %v20 = vld [vmem:[%s1] sm:$0x1]
  %v21 = vmul.f32 %v20, 0.0078125
  %v22 = vld [vmem:[%s2] sm:$0x1]
  %v23 = vmul.f32 %v22, 0.0078125
  %v24 = vmul.f32 %v21, %v21
  %v25 = vsub.f32 %v23, %v24
  %v26 = vadd.f32 %v25, 1e-05
  %v27 = vrsqrt.pop %v26
  %v28 = vld [vmem:[%s3] sm:$0x1]
  %v29 = vmul.f32 %v28, %v27
  %v30 = vld [vmem:[%s4] sm:$0x1]
  %v31 = vmul.f32 %v21, %v29
  %v32 = vsub.f32 %v30, %v31
  %v33 = vld [vmem:[%s0] sm:$0xff]
  %v34 = vld [vmem:[%s0 + $0x8] sm:$0xff]
  %v35 = vld [vmem:[%s0 + $0x10] sm:$0xff]
  %v36 = vld [vmem:[%s0 + $0x18] sm:$0xff]
  %v37 = vld [vmem:[%s0 + $0x20] sm:$0xff]
  %v38 = vld [vmem:[%s0 + $0x28] sm:$0xff]
  %v39 = vld [vmem:[%s0 + $0x30] sm:$0xff]
  %v40 = vld [vmem:[%s0 + $0x38] sm:$0xff]
  %v41 = vld [vmem:[%s0 + $0x40] sm:$0xff]
  %v42 = vld [vmem:[%s0 + $0x48] sm:$0xff]
  %v43 = vld [vmem:[%s0 + $0x50] sm:$0xff]
  %v44 = vld [vmem:[%s0 + $0x58] sm:$0xff]
  %v45 = vld [vmem:[%s0 + $0x60] sm:$0xff]
  %v46 = vld [vmem:[%s0 + $0x68] sm:$0xff]
  %v47 = vld [vmem:[%s0 + $0x70] sm:$0xff]
  %v48 = vld [vmem:[%s0 + $0x78] sm:$0xff]
  %v50 = vlaneseq
  %v51 = vshrl.u32 %v50, 7
  %v52 = vsub.s32 0, %v51
  %v53 = vrot.slane %v29, %v52
  %v55 = vmul.f32 %v33, %v53
  %v56 = vmul.f32 %v34, %v53
  %v57 = vmul.f32 %v35, %v53
  %v58 = vmul.f32 %v36, %v53
  %v59 = vmul.f32 %v37, %v53
  %v60 = vmul.f32 %v38, %v53
  %v61 = vmul.f32 %v39, %v53
  %v62 = vmul.f32 %v40, %v53
  %v63 = vmul.f32 %v41, %v53
  %v64 = vmul.f32 %v42, %v53
  %v65 = vmul.f32 %v43, %v53
  %v66 = vmul.f32 %v44, %v53
  %v67 = vmul.f32 %v45, %v53
  %v68 = vmul.f32 %v46, %v53
  %v69 = vmul.f32 %v47, %v53
  %v70 = vmul.f32 %v48, %v53
  %v72 = vlaneseq
  %v73 = vshrl.u32 %v72, 7
  %v74 = vsub.s32 0, %v73
  %v75 = vrot.slane %v32, %v74
  %v77 = vadd.f32 %v55, %v75
  %v78 = vadd.f32 %v56, %v75
  %v79 = vadd.f32 %v57, %v75
  %v80 = vadd.f32 %v58, %v75
  %v81 = vadd.f32 %v59, %v75
  %v82 = vadd.f32 %v60, %v75
  %v83 = vadd.f32 %v61, %v75
  %v84 = vadd.f32 %v62, %v75
  %v85 = vadd.f32 %v63, %v75
  %v86 = vadd.f32 %v64, %v75
  %v87 = vadd.f32 %v65, %v75
  %v88 = vadd.f32 %v66, %v75
  %v89 = vadd.f32 %v67, %v75
  %v90 = vadd.f32 %v68, %v75
  %v91 = vadd.f32 %v69, %v75
  %v92 = vadd.f32 %v70, %v75
  %vm93 = vcmp.ge.f32.partialorder %v77, 0.0
  %vm94 = vcmp.ge.f32.partialorder %v78, 0.0
  %vm95 = vcmp.ge.f32.partialorder %v79, 0.0
  %vm96 = vcmp.ge.f32.partialorder %v80, 0.0
  %vm97 = vcmp.ge.f32.partialorder %v81, 0.0
  %vm98 = vcmp.ge.f32.partialorder %v82, 0.0
  %vm99 = vcmp.ge.f32.partialorder %v83, 0.0
  %vm100 = vcmp.ge.f32.partialorder %v84, 0.0
  %vm101 = vcmp.ge.f32.partialorder %v85, 0.0
  %vm102 = vcmp.ge.f32.partialorder %v86, 0.0
  %vm103 = vcmp.ge.f32.partialorder %v87, 0.0
  %vm104 = vcmp.ge.f32.partialorder %v88, 0.0
  %vm105 = vcmp.ge.f32.partialorder %v89, 0.0
  %vm106 = vcmp.ge.f32.partialorder %v90, 0.0
  %vm107 = vcmp.ge.f32.partialorder %v91, 0.0
  %vm108 = vcmp.ge.f32.partialorder %v92, 0.0
  %v109 = vmul.f32 %v77, 0.2
  %v110 = vmul.f32 %v78, 0.2
  %v111 = vmul.f32 %v79, 0.2
  %v112 = vmul.f32 %v80, 0.2
  %v113 = vmul.f32 %v81, 0.2
  %v114 = vmul.f32 %v82, 0.2
  %v115 = vmul.f32 %v83, 0.2
  %v116 = vmul.f32 %v84, 0.2
  %v117 = vmul.f32 %v85, 0.2
  %v118 = vmul.f32 %v86, 0.2
  %v119 = vmul.f32 %v87, 0.2
  %v120 = vmul.f32 %v88, 0.2
  %v121 = vmul.f32 %v89, 0.2
  %v122 = vmul.f32 %v90, 0.2
  %v123 = vmul.f32 %v91, 0.2
  %v124 = vmul.f32 %v92, 0.2
  %v125 = vsel %vm93, %v77, %v109
  %v126 = vsel %vm94, %v78, %v110
  %v127 = vsel %vm95, %v79, %v111
  %v128 = vsel %vm96, %v80, %v112
  %v129 = vsel %vm97, %v81, %v113
  %v130 = vsel %vm98, %v82, %v114
  %v131 = vsel %vm99, %v83, %v115
  %v132 = vsel %vm100, %v84, %v116
  %v133 = vsel %vm101, %v85, %v117
  %v134 = vsel %vm102, %v86, %v118
  %v135 = vsel %vm103, %v87, %v119
  %v136 = vsel %vm104, %v88, %v120
  %v137 = vsel %vm105, %v89, %v121
  %v138 = vsel %vm106, %v90, %v122
  %v139 = vsel %vm107, %v91, %v123
  %v140 = vsel %vm108, %v92, %v124
  %141 = vst [vmem:[%s5] sm:$0xff] %v125
  %142 = vst [vmem:[%s5 + $0x8] sm:$0xff] %v126
  %143 = vst [vmem:[%s5 + $0x10] sm:$0xff] %v127
  %144 = vst [vmem:[%s5 + $0x18] sm:$0xff] %v128
  %145 = vst [vmem:[%s5 + $0x20] sm:$0xff] %v129
  %146 = vst [vmem:[%s5 + $0x28] sm:$0xff] %v130
  %147 = vst [vmem:[%s5 + $0x30] sm:$0xff] %v131
  %148 = vst [vmem:[%s5 + $0x38] sm:$0xff] %v132
  %149 = vst [vmem:[%s5 + $0x40] sm:$0xff] %v133
  %150 = vst [vmem:[%s5 + $0x48] sm:$0xff] %v134
  %151 = vst [vmem:[%s5 + $0x50] sm:$0xff] %v135
  %152 = vst [vmem:[%s5 + $0x58] sm:$0xff] %v136
  %153 = vst [vmem:[%s5 + $0x60] sm:$0xff] %v137
  %154 = vst [vmem:[%s5 + $0x68] sm:$0xff] %v138
  %155 = vst [vmem:[%s5 + $0x70] sm:$0xff] %v139
  %156 = vst [vmem:[%s5 + $0x78] sm:$0xff] %v140
  // Predicated region
  $region22: #{nlayer_discriminator_forward.10} parent=0 // pred_check
    _
  $region23: #{nlayer_discriminator_forward.10} parent=0 // pred_check_branch
    %158 = sbr.rel (0) target = $region25
  $region24: #{nlayer_discriminator_forward.10} parent=0 // pred_region
    _
  $region25: #{nlayer_discriminator_forward.10} parent=0 // pred_fallthru
    _
  // Predicated region
  $region26: #{nlayer_discriminator_forward.10} parent=0 // pred_check
    _
  $region27: #{nlayer_discriminator_forward.10} parent=0 // pred_check_branch
    %160 = sbr.rel (0) target = $region29
  $region28: #{nlayer_discriminator_forward.10} parent=0 // pred_region
    _
  $region29: #{nlayer_discriminator_forward.10} parent=0 // pred_fallthru
    _

// kernel: nlayer_discriminator_forward.12
$region0: #{nlayer_discriminator_forward.12}
  #allocation0 [shape = 'u32[]', space=smem, size = 0x4, offset = 0x4, fixed_abs, tag = 'smem constant byte address 0x4 - core index']
  #allocation1 [shape = 'u32[144,128]{1,0:T(1,128)}', space=vmem, size = 0x12000, scoped, tag = 'internal scratch']
  %s0 = inlined_call_operand.vmem [shape: f32[32,128], index: 0, kind: input, shape index: {}]
  %s1 = inlined_call_operand.vmem [shape: f32[1,128], index: 1, kind: input, shape index: {}]
  %s2 = inlined_call_operand.vmem [shape: f32[1,128], index: 2, kind: input, shape index: {}]
  %s3 = inlined_call_operand.vmem [shape: f32[1,128], index: 3, kind: input, shape index: {}]
  %s4 = inlined_call_operand.vmem [shape: f32[1,128], index: 4, kind: input, shape index: {}]
  %s5 = inlined_call_operand.vmem [shape: f32[32,128], index: 5, kind: output, shape index: {}]
  %s6 = sld [smem:[#allocation0]]
  $region30: #{nlayer_discriminator_forward.12} parent=0
    _
  %s8 = ssub.s32 1, %s6
  %s9 = scalar_select 0, %s8, %s6
  // Predicated region
  $region2: #{nlayer_discriminator_forward.12} parent=0 // pred_check
    _
  $region3: #{nlayer_discriminator_forward.12} parent=0 // pred_check_branch
    %11 = sbr.rel (0) target = $region5
  $region4: #{nlayer_discriminator_forward.12} parent=0 // pred_region
    _
  $region5: #{nlayer_discriminator_forward.12} parent=0 // pred_fallthru
    _
  // Predicated region
  $region6: #{nlayer_discriminator_forward.12} parent=0 // pred_check
    _
  $region7: #{nlayer_discriminator_forward.12} parent=0 // pred_check_branch
    %13 = sbr.rel (0) target = $region9
  $region8: #{nlayer_discriminator_forward.12} parent=0 // pred_region
    _
  $region9: #{nlayer_discriminator_forward.12} parent=0 // pred_fallthru
    _
  // Predicated region
  $region10: #{nlayer_discriminator_forward.12} parent=0 // pred_check
    _
  $region11: #{nlayer_discriminator_forward.12} parent=0 // pred_check_branch
    %15 = sbr.rel (0) target = $region13
  $region12: #{nlayer_discriminator_forward.12} parent=0 // pred_region
    _
  $region13: #{nlayer_discriminator_forward.12} parent=0 // pred_fallthru
    _
  // Predicated region
  $region14: #{nlayer_discriminator_forward.12} parent=0 // pred_check
    _
  $region15: #{nlayer_discriminator_forward.12} parent=0 // pred_check_branch
    %17 = sbr.rel (0) target = $region17
  $region16: #{nlayer_discriminator_forward.12} parent=0 // pred_region
    _
  $region17: #{nlayer_discriminator_forward.12} parent=0 // pred_fallthru
    _
  // Predicated region
  $region18: #{nlayer_discriminator_forward.12} parent=0 // pred_check
    _
  $region19: #{nlayer_discriminator_forward.12} parent=0 // pred_check_branch
    %19 = sbr.rel (0) target = $region21
  $region20: #{nlayer_discriminator_forward.12} parent=0 // pred_region
    _
  $region21: #{nlayer_discriminator_forward.12} parent=0 // pred_fallthru
    _
  %v20 = vld [vmem:[%s1] sm:$0x1]
  %v21 = vmul.f32 %v20, 0.03125
  %v22 = vld [vmem:[%s2] sm:$0x1]
  %v23 = vmul.f32 %v22, 0.03125
  %v24 = vmul.f32 %v21, %v21
  %v25 = vsub.f32 %v23, %v24
  %v26 = vadd.f32 %v25, 1e-05
  %v27 = vrsqrt.pop %v26
  %v28 = vld [vmem:[%s3] sm:$0x1]
  %v29 = vmul.f32 %v28, %v27
  %v30 = vld [vmem:[%s4] sm:$0x1]
  %v31 = vmul.f32 %v21, %v29
  %v32 = vsub.f32 %v30, %v31
  %v33 = vld [vmem:[%s0] sm:$0xff]
  %v34 = vld [vmem:[%s0 + $0x8] sm:$0xff]
  %v35 = vld [vmem:[%s0 + $0x10] sm:$0xff]
  %v36 = vld [vmem:[%s0 + $0x18] sm:$0xff]
  %v38 = vlaneseq
  %v39 = vshrl.u32 %v38, 7
  %v40 = vsub.s32 0, %v39
  %v41 = vrot.slane %v29, %v40
  %v43 = vmul.f32 %v33, %v41
  %v44 = vmul.f32 %v34, %v41
  %v45 = vmul.f32 %v35, %v41
  %v46 = vmul.f32 %v36, %v41
  %v48 = vlaneseq
  %v49 = vshrl.u32 %v48, 7
  %v50 = vsub.s32 0, %v49
  %v51 = vrot.slane %v32, %v50
  %v53 = vadd.f32 %v43, %v51
  %v54 = vadd.f32 %v44, %v51
  %v55 = vadd.f32 %v45, %v51
  %v56 = vadd.f32 %v46, %v51
  %vm57 = vcmp.ge.f32.partialorder %v53, 0.0
  %vm58 = vcmp.ge.f32.partialorder %v54, 0.0
  %vm59 = vcmp.ge.f32.partialorder %v55, 0.0
  %vm60 = vcmp.ge.f32.partialorder %v56, 0.0
  %v61 = vmul.f32 %v53, 0.2
  %v62 = vmul.f32 %v54, 0.2
  %v63 = vmul.f32 %v55, 0.2
  %v64 = vmul.f32 %v56, 0.2
  %v65 = vsel %vm57, %v53, %v61
  %v66 = vsel %vm58, %v54, %v62
  %v67 = vsel %vm59, %v55, %v63
  %v68 = vsel %vm60, %v56, %v64
  %69 = vst [vmem:[%s5] sm:$0xff] %v65
  %70 = vst [vmem:[%s5 + $0x8] sm:$0xff] %v66
  %71 = vst [vmem:[%s5 + $0x10] sm:$0xff] %v67
  %72 = vst [vmem:[%s5 + $0x18] sm:$0xff] %v68
  // Predicated region
  $region22: #{nlayer_discriminator_forward.12} parent=0 // pred_check
    _
  $region23: #{nlayer_discriminator_forward.12} parent=0 // pred_check_branch
    %74 = sbr.rel (0) target = $region25
  $region24: #{nlayer_discriminator_forward.12} parent=0 // pred_region
    _
  $region25: #{nlayer_discriminator_forward.12} parent=0 // pred_fallthru
    _
  // Predicated region
  $region26: #{nlayer_discriminator_forward.12} parent=0 // pred_check
    _
  $region27: #{nlayer_discriminator_forward.12} parent=0 // pred_check_branch
    %76 = sbr.rel (0) target = $region29
  $region28: #{nlayer_discriminator_forward.12} parent=0 // pred_region
    _
  $region29: #{nlayer_discriminator_forward.12} parent=0 // pred_fallthru
    _

// kernel: nlayer_discriminator_forward.11
$region0: #{nlayer_discriminator_forward.11}
  #allocation0 [shape = 'u32[]', space=smem, size = 0x4, offset = 0x4, fixed_abs, tag = 'smem constant byte address 0x4 - core index']
  #allocation1 [shape = 'u32[144,128]{1,0:T(1,128)}', space=vmem, size = 0x12000, scoped, tag = 'internal scratch']
  #allocation2 [shape = 'f32[32,128]{1,0:T(8,128)}', space=vmem, size = 0x4000, scoped, tag = 'scratch operand']
  %s0 = inlined_call_operand.vmem [shape: bf16[32,512], index: 0, kind: input, shape index: {}]
  %s1 = inlined_call_operand.vmem [shape: bf16[512,128], index: 1, kind: input, shape index: {}]
  %s2 = inlined_call_operand.vmem [shape: f32[32,128], index: 2, kind: output, shape index: {0}]
  %s3 = inlined_call_operand.vmem [shape: f32[1,128], index: 3, kind: output, shape index: {1}]
  %s4 = inlined_call_operand.vmem [shape: f32[1,128], index: 4, kind: output, shape index: {2}]
  %5 = xla_tuple %s2, %s3, %s4
  %s6 = sld [smem:[#allocation0]]
  $region46: #{nlayer_discriminator_forward.11} parent=0
    _
  %s8 = ssub.s32 1, %s6
  %s9 = scalar_select 0, %s8, %s6
  // Predicated region
  $region2: #{nlayer_discriminator_forward.11} parent=0 // pred_check
    _
  $region3: #{nlayer_discriminator_forward.11} parent=0 // pred_check_branch
    %11 = sbr.rel (0) target = $region5
  $region4: #{nlayer_discriminator_forward.11} parent=0 // pred_region
    _
  $region5: #{nlayer_discriminator_forward.11} parent=0 // pred_fallthru
    _
  // Predicated region
  $region6: #{nlayer_discriminator_forward.11} parent=0 // pred_check
    _
  $region7: #{nlayer_discriminator_forward.11} parent=0 // pred_check_branch
    %13 = sbr.rel (0) target = $region9
  $region8: #{nlayer_discriminator_forward.11} parent=0 // pred_region
    _
  $region9: #{nlayer_discriminator_forward.11} parent=0 // pred_fallthru
    _
  %p15 = scmp.eq.s32.totalorder 0, 0
  // Predicated region
  $region10: #{nlayer_discriminator_forward.11} parent=0 // pred_check
    %p16 = pneg %p15
  $region11: #{nlayer_discriminator_forward.11} parent=0 // pred_check_branch
    %18 = sbr.rel (%p16) target = $region13
  $region12: #{nlayer_discriminator_forward.11} parent=0 // pred_region
    %19 = vst [vmem:[#allocation2] sm:$0xff] 0.0
    %20 = vst [vmem:[#allocation2 + $0x8] sm:$0xff] 0.0
    %21 = vst [vmem:[#allocation2 + $0x10] sm:$0xff] 0.0
    %22 = vst [vmem:[#allocation2 + $0x18] sm:$0xff] 0.0
  $region13: #{nlayer_discriminator_forward.11} parent=0 // pred_fallthru
    _
  %p23 = scmp.eq.s32.totalorder 0, 0
  %p24 = pnand %p23, %p15
  %p25 = pneg %p24
  // Predicated region
  $region14: #{nlayer_discriminator_forward.11} parent=0 // pred_check
    _
  $region15: #{nlayer_discriminator_forward.11} parent=0 // pred_check_branch
    %27 = sbr.rel (%p24) target = $region17
  $region16: #{nlayer_discriminator_forward.11} parent=0 // pred_region
    %28 = vst [vmem:[%s3] sm:$0x1] 0.0
    %29 = vst [vmem:[%s4] sm:$0x1] 0.0
  $region17: #{nlayer_discriminator_forward.11} parent=0 // pred_fallthru
    _
  %v30 = vld [vmem:[#allocation2] sm:$0xff]
  %v31 = vld [vmem:[#allocation2 + $0x8] sm:$0xff]
  %v32 = vld [vmem:[#allocation2 + $0x10] sm:$0xff]
  %v33 = vld [vmem:[#allocation2 + $0x18] sm:$0xff]
  %v34 = vld [vmem:[%s0] sm:$0xff]
  %v35 = vld [vmem:[%s0 + $0x8] sm:$0xff]
  %v36 = vld [vmem:[%s0 + $0x10] sm:$0xff]
  %v37 = vld [vmem:[%s0 + $0x18] sm:$0xff]
  %v38 = vld [vmem:[%s0 + $0x20] sm:$0xff]
  %v39 = vld [vmem:[%s0 + $0x28] sm:$0xff]
  %v40 = vld [vmem:[%s0 + $0x30] sm:$0xff]
  %v41 = vld [vmem:[%s0 + $0x38] sm:$0xff]
  %v42 = vld [vmem:[%s1] sm:$0xf]
  %v43 = vld [vmem:[%s1 + $0x4] sm:$0xf]
  %v44 = vld [vmem:[%s1 + $0x8] sm:$0xf]
  %v45 = vld [vmem:[%s1 + $0xc] sm:$0xf]
  %v46 = vld [vmem:[%s1 + $0x10] sm:$0xf]
  %v47 = vld [vmem:[%s1 + $0x14] sm:$0xf]
  %v48 = vld [vmem:[%s1 + $0x18] sm:$0xf]
  %v49 = vld [vmem:[%s1 + $0x1c] sm:$0xf]
  %v50 = vld [vmem:[%s1 + $0x20] sm:$0xf]
  %v51 = vld [vmem:[%s1 + $0x24] sm:$0xf]
  %v52 = vld [vmem:[%s1 + $0x28] sm:$0xf]
  %v53 = vld [vmem:[%s1 + $0x2c] sm:$0xf]
  %v54 = vld [vmem:[%s1 + $0x30] sm:$0xf]
  %v55 = vld [vmem:[%s1 + $0x34] sm:$0xf]
  %v56 = vld [vmem:[%s1 + $0x38] sm:$0xf]
  %v57 = vld [vmem:[%s1 + $0x3c] sm:$0xf]
  %v58 = vld [vmem:[%s1 + $0x40] sm:$0xf]
  %v59 = vld [vmem:[%s1 + $0x44] sm:$0xf]
  %v60 = vld [vmem:[%s1 + $0x48] sm:$0xf]
  %v61 = vld [vmem:[%s1 + $0x4c] sm:$0xf]
  %v62 = vld [vmem:[%s1 + $0x50] sm:$0xf]
  %v63 = vld [vmem:[%s1 + $0x54] sm:$0xf]
  %v64 = vld [vmem:[%s1 + $0x58] sm:$0xf]
  %v65 = vld [vmem:[%s1 + $0x5c] sm:$0xf]
  %v66 = vld [vmem:[%s1 + $0x60] sm:$0xf]
  %v67 = vld [vmem:[%s1 + $0x64] sm:$0xf]
  %v68 = vld [vmem:[%s1 + $0x68] sm:$0xf]
  %v69 = vld [vmem:[%s1 + $0x6c] sm:$0xf]
  %v70 = vld [vmem:[%s1 + $0x70] sm:$0xf]
  %v71 = vld [vmem:[%s1 + $0x74] sm:$0xf]
  %v72 = vld [vmem:[%s1 + $0x78] sm:$0xf]
  %v73 = vld [vmem:[%s1 + $0x7c] sm:$0xf]
  %v74 = vld [vmem:[%s1 + $0x80] sm:$0xf]
  %v75 = vld [vmem:[%s1 + $0x84] sm:$0xf]
  %v76 = vld [vmem:[%s1 + $0x88] sm:$0xf]
  %v77 = vld [vmem:[%s1 + $0x8c] sm:$0xf]
  %v78 = vld [vmem:[%s1 + $0x90] sm:$0xf]
  %v79 = vld [vmem:[%s1 + $0x94] sm:$0xf]
  %v80 = vld [vmem:[%s1 + $0x98] sm:$0xf]
  %v81 = vld [vmem:[%s1 + $0x9c] sm:$0xf]
  %v82 = vld [vmem:[%s1 + $0xa0] sm:$0xf]
  %v83 = vld [vmem:[%s1 + $0xa4] sm:$0xf]
  %v84 = vld [vmem:[%s1 + $0xa8] sm:$0xf]
  %v85 = vld [vmem:[%s1 + $0xac] sm:$0xf]
  %v86 = vld [vmem:[%s1 + $0xb0] sm:$0xf]
  %v87 = vld [vmem:[%s1 + $0xb4] sm:$0xf]
  %v88 = vld [vmem:[%s1 + $0xb8] sm:$0xf]
  %v89 = vld [vmem:[%s1 + $0xbc] sm:$0xf]
  %v90 = vld [vmem:[%s1 + $0xc0] sm:$0xf]
  %v91 = vld [vmem:[%s1 + $0xc4] sm:$0xf]
  %v92 = vld [vmem:[%s1 + $0xc8] sm:$0xf]
  %v93 = vld [vmem:[%s1 + $0xcc] sm:$0xf]
  %v94 = vld [vmem:[%s1 + $0xd0] sm:$0xf]
  %v95 = vld [vmem:[%s1 + $0xd4] sm:$0xf]
  %v96 = vld [vmem:[%s1 + $0xd8] sm:$0xf]
  %v97 = vld [vmem:[%s1 + $0xdc] sm:$0xf]
  %v98 = vld [vmem:[%s1 + $0xe0] sm:$0xf]
  %v99 = vld [vmem:[%s1 + $0xe4] sm:$0xf]
  %v100 = vld [vmem:[%s1 + $0xe8] sm:$0xf]
  %v101 = vld [vmem:[%s1 + $0xec] sm:$0xf]
  %v102 = vld [vmem:[%s1 + $0xf0] sm:$0xf]
  %v103 = vld [vmem:[%s1 + $0xf4] sm:$0xf]
  %v104 = vld [vmem:[%s1 + $0xf8] sm:$0xf]
  %v105 = vld [vmem:[%s1 + $0xfc] sm:$0xf]
  %v114 = vunpack.c.l.b16 %v34
  %v115 = vunpack.c.h.b16 %v34
  %v116 = vunpack.c.l.b16 %v35
  %v117 = vunpack.c.h.b16 %v35
  %v118 = vunpack.c.l.b16 %v36
  %v119 = vunpack.c.h.b16 %v36
  %v120 = vunpack.c.l.b16 %v37
  %v121 = vunpack.c.h.b16 %v37
  %v122 = vunpack.c.l.b16 %v38
  %v123 = vunpack.c.h.b16 %v38
  %v124 = vunpack.c.l.b16 %v39
  %v125 = vunpack.c.h.b16 %v39
  %v126 = vunpack.c.l.b16 %v40
  %v127 = vunpack.c.h.b16 %v40
  %v128 = vunpack.c.l.b16 %v41
  %v129 = vunpack.c.h.b16 %v41
  %v130 = vpack.c.b16 %v118, %v114
  %v131 = vpack.c.b16 %v119, %v115
  %v132 = vpack.c.b16 %v120, %v116
  %v133 = vpack.c.b16 %v121, %v117
  %v134 = vpack.c.b16 %v126, %v122
  %v135 = vpack.c.b16 %v127, %v123
  %v136 = vpack.c.b16 %v128, %v124
  %v137 = vpack.c.b16 %v129, %v125
  %v210 = vunpack.c.l.b16 %v42
  %v211 = vunpack.c.l.b16 %v43
  %v212 = vunpack.c.l.b16 %v44
  %v213 = vunpack.c.l.b16 %v45
  %v214 = vunpack.c.l.b16 %v46
  %v215 = vunpack.c.l.b16 %v47
  %v216 = vunpack.c.l.b16 %v48
  %v217 = vunpack.c.l.b16 %v49
  %v218 = vunpack.c.l.b16 %v50
  %v219 = vunpack.c.l.b16 %v51
  %v220 = vunpack.c.l.b16 %v52
  %v221 = vunpack.c.l.b16 %v53
  %v222 = vunpack.c.l.b16 %v54
  %v223 = vunpack.c.l.b16 %v55
  %v224 = vunpack.c.l.b16 %v56
  %v225 = vunpack.c.l.b16 %v57
  %v226 = vunpack.c.l.b16 %v58
  %v227 = vunpack.c.l.b16 %v59
  %v228 = vunpack.c.l.b16 %v60
  %v229 = vunpack.c.l.b16 %v61
  %v230 = vunpack.c.l.b16 %v62
  %v231 = vunpack.c.l.b16 %v63
  %v232 = vunpack.c.l.b16 %v64
  %v233 = vunpack.c.l.b16 %v65
  %v234 = vunpack.c.l.b16 %v66
  %v235 = vunpack.c.l.b16 %v67
  %v236 = vunpack.c.l.b16 %v68
  %v237 = vunpack.c.l.b16 %v69
  %v238 = vunpack.c.l.b16 %v70
  %v239 = vunpack.c.l.b16 %v71
  %v240 = vunpack.c.l.b16 %v72
  %v241 = vunpack.c.l.b16 %v73
  %v242 = vunpack.c.l.b16 %v74
  %v243 = vunpack.c.l.b16 %v75
  %v244 = vunpack.c.l.b16 %v76
  %v245 = vunpack.c.l.b16 %v77
  %v246 = vunpack.c.l.b16 %v78
  %v247 = vunpack.c.l.b16 %v79
  %v248 = vunpack.c.l.b16 %v80
  %v249 = vunpack.c.l.b16 %v81
  %v250 = vunpack.c.l.b16 %v82
  %v251 = vunpack.c.l.b16 %v83
  %v252 = vunpack.c.l.b16 %v84
  %v253 = vunpack.c.l.b16 %v85
  %v254 = vunpack.c.l.b16 %v86
  %v255 = vunpack.c.l.b16 %v87
  %v256 = vunpack.c.l.b16 %v88
  %v257 = vunpack.c.l.b16 %v89
  %v258 = vunpack.c.l.b16 %v90
  %v259 = vunpack.c.l.b16 %v91
  %v260 = vunpack.c.l.b16 %v92
  %v261 = vunpack.c.l.b16 %v93
  %v262 = vunpack.c.l.b16 %v94
  %v263 = vunpack.c.l.b16 %v95
  %v264 = vunpack.c.l.b16 %v96
  %v265 = vunpack.c.l.b16 %v97
  %v266 = vunpack.c.l.b16 %v98
  %v267 = vunpack.c.l.b16 %v99
  %v268 = vunpack.c.l.b16 %v100
  %v269 = vunpack.c.l.b16 %v101
  %v270 = vunpack.c.l.b16 %v102
  %v271 = vunpack.c.l.b16 %v103
  %v272 = vunpack.c.l.b16 %v104
  %v273 = vunpack.c.l.b16 %v105
  %v274 = vpack.c.b16 %v211, %v210
  %v275 = vpack.c.b16 %v213, %v212
  %v276 = vpack.c.b16 %v215, %v214
  %v277 = vpack.c.b16 %v217, %v216
  %v278 = vpack.c.b16 %v219, %v218
  %v279 = vpack.c.b16 %v221, %v220
  %v280 = vpack.c.b16 %v223, %v222
  %v281 = vpack.c.b16 %v225, %v224
  %v282 = vpack.c.b16 %v227, %v226
  %v283 = vpack.c.b16 %v229, %v228
  %v284 = vpack.c.b16 %v231, %v230
  %v285 = vpack.c.b16 %v233, %v232
  %v286 = vpack.c.b16 %v235, %v234
  %v287 = vpack.c.b16 %v237, %v236
  %v288 = vpack.c.b16 %v239, %v238
  %v289 = vpack.c.b16 %v241, %v240
  %v290 = vpack.c.b16 %v243, %v242
  %v291 = vpack.c.b16 %v245, %v244
  %v292 = vpack.c.b16 %v247, %v246
  %v293 = vpack.c.b16 %v249, %v248
  %v294 = vpack.c.b16 %v251, %v250
  %v295 = vpack.c.b16 %v253, %v252
  %v296 = vpack.c.b16 %v255, %v254
  %v297 = vpack.c.b16 %v257, %v256
  %v298 = vpack.c.b16 %v259, %v258
  %v299 = vpack.c.b16 %v261, %v260
  %v300 = vpack.c.b16 %v263, %v262
  %v301 = vpack.c.b16 %v265, %v264
  %v302 = vpack.c.b16 %v267, %v266
  %v303 = vpack.c.b16 %v269, %v268
  %v304 = vpack.c.b16 %v271, %v270
  %v305 = vpack.c.b16 %v273, %v272
  %338 = vmatprep.subr.bf16.mxu0 0
  %339 = vmatpush1.bf16.msra.mxu0 %v274
  %340 = vmatprep.subr.bf16.mxu0 0
  %341 = vmatpush1.bf16.msra.mxu0 %v275
  %342 = vmatprep.subr.bf16.mxu0 0
  %343 = vmatpush1.bf16.msra.mxu0 %v276
  %344 = vmatprep.subr.bf16.mxu0 0
  %345 = vmatpush1.bf16.msra.mxu0 %v277
  %346 = vmatprep.subr.bf16.mxu0 0
  %347 = vmatpush1.bf16.msra.mxu0 %v278
  %348 = vmatprep.subr.bf16.mxu0 0
  %349 = vmatpush1.bf16.msra.mxu0 %v279
  %350 = vmatprep.subr.bf16.mxu0 0
  %351 = vmatpush1.bf16.msra.mxu0 %v280
  %352 = vmatprep.subr.bf16.mxu0 0
  %353 = vmatpush1.bf16.msra.mxu0 %v281
  %354 = vmatprep.subr.bf16.mxu0 0
  %355 = vmatpush1.bf16.msra.mxu0 %v282
  %356 = vmatprep.subr.bf16.mxu0 0
  %357 = vmatpush1.bf16.msra.mxu0 %v283
  %358 = vmatprep.subr.bf16.mxu0 0
  %359 = vmatpush1.bf16.msra.mxu0 %v284
  %360 = vmatprep.subr.bf16.mxu0 0
  %361 = vmatpush1.bf16.msra.mxu0 %v285
  %362 = vmatprep.subr.bf16.mxu0 0
  %363 = vmatpush1.bf16.msra.mxu0 %v286
  %364 = vmatprep.subr.bf16.mxu0 0
  %365 = vmatpush1.bf16.msra.mxu0 %v287
  %366 = vmatprep.subr.bf16.mxu0 0
  %367 = vmatpush1.bf16.msra.mxu0 %v288
  %368 = vmatprep.subr.bf16.mxu0 0
  %369 = vmatpush1.bf16.msra.mxu0 %v289
  %370 = vmatprep.mubr.bf16.mxu0 %v131
  %371 = vmatmul.mubr.bf16.gmra.mrb[0].mxu0 %v130
  %v372 = vpop.f32.mrb[0].mxu0
  %v373 = vadd.f32 0.0, %v372
  %v374 = vpop.f32.mrb[0].mxu0
  %v375 = vpop.f32.mrb[0].mxu0
  %v376 = vadd.f32 0.0, %v375
  %v377 = vpop.f32.mrb[0].mxu0
  %378 = vmatprep.mubr.bf16.mxu0 %v135
  %379 = vmatmul.mubr.bf16.gmra.mrb[0].mxu0 %v134
  %v380 = vpop.f32.mrb[0].mxu0
  %v381 = vadd.f32 0.0, %v380
  %v382 = vpop.f32.mrb[0].mxu0
  %v383 = vpop.f32.mrb[0].mxu0
  %v384 = vadd.f32 0.0, %v383
  %v385 = vpop.f32.mrb[0].mxu0
  %386 = vdwg.mxu0
  %387 = vmatprep.subr.bf16.mxu0 0
  %388 = vmatpush1.bf16.msra.mxu0 %v290
  %389 = vmatprep.subr.bf16.mxu0 0
  %390 = vmatpush1.bf16.msra.mxu0 %v291
  %391 = vmatprep.subr.bf16.mxu0 0
  %392 = vmatpush1.bf16.msra.mxu0 %v292
  %393 = vmatprep.subr.bf16.mxu0 0
  %394 = vmatpush1.bf16.msra.mxu0 %v293
  %395 = vmatprep.subr.bf16.mxu0 0
  %396 = vmatpush1.bf16.msra.mxu0 %v294
  %397 = vmatprep.subr.bf16.mxu0 0
  %398 = vmatpush1.bf16.msra.mxu0 %v295
  %399 = vmatprep.subr.bf16.mxu0 0
  %400 = vmatpush1.bf16.msra.mxu0 %v296
  %401 = vmatprep.subr.bf16.mxu0 0
  %402 = vmatpush1.bf16.msra.mxu0 %v297
  %403 = vmatprep.subr.bf16.mxu0 0
  %404 = vmatpush1.bf16.msra.mxu0 %v298
  %405 = vmatprep.subr.bf16.mxu0 0
  %406 = vmatpush1.bf16.msra.mxu0 %v299
  %407 = vmatprep.subr.bf16.mxu0 0
  %408 = vmatpush1.bf16.msra.mxu0 %v300
  %409 = vmatprep.subr.bf16.mxu0 0
  %410 = vmatpush1.bf16.msra.mxu0 %v301
  %411 = vmatprep.subr.bf16.mxu0 0
  %412 = vmatpush1.bf16.msra.mxu0 %v302
  %413 = vmatprep.subr.bf16.mxu0 0
  %414 = vmatpush1.bf16.msra.mxu0 %v303
  %415 = vmatprep.subr.bf16.mxu0 0
  %416 = vmatpush1.bf16.msra.mxu0 %v304
  %417 = vmatprep.subr.bf16.mxu0 0
  %418 = vmatpush1.bf16.msra.mxu0 %v305
  %419 = vmatprep.mubr.bf16.mxu0 %v133
  %420 = vmatmul.mubr.bf16.gmra.mrb[0].mxu0 %v132
  %v421 = vpop.f32.mrb[0].mxu0
  %v422 = vadd.f32 %v373, %v421
  %v423 = vpop.f32.mrb[0].mxu0
  %v424 = vpop.f32.mrb[0].mxu0
  %v425 = vadd.f32 %v376, %v424
  %v426 = vpop.f32.mrb[0].mxu0
  %427 = vmatprep.mubr.bf16.mxu0 %v137
  %428 = vmatmul.mubr.bf16.gmra.mrb[0].mxu0 %v136
  %v429 = vpop.f32.mrb[0].mxu0
  %v430 = vadd.f32 %v381, %v429
  %v431 = vpop.f32.mrb[0].mxu0
  %v432 = vpop.f32.mrb[0].mxu0
  %v433 = vadd.f32 %v384, %v432
  %v434 = vpop.f32.mrb[0].mxu0
  %435 = vdwg.mxu0
  %v436 = vadd.f32 %v30, %v422
  %v437 = vadd.f32 %v31, %v425
  %v438 = vadd.f32 %v32, %v430
  %v439 = vadd.f32 %v33, %v433
  %440 = vst [vmem:[#allocation2] sm:$0xff] %v436
  %441 = vst [vmem:[#allocation2 + $0x8] sm:$0xff] %v437
  %442 = vst [vmem:[#allocation2 + $0x10] sm:$0xff] %v438
  %443 = vst [vmem:[#allocation2 + $0x18] sm:$0xff] %v439
  // Predicated region
  $region18: #{nlayer_discriminator_forward.11} parent=0 // pred_check
    %p444 = pneg %p15
  $region19: #{nlayer_discriminator_forward.11} parent=0 // pred_check_branch
    %446 = sbr.rel (%p444) target = $region21
  $region20: #{nlayer_discriminator_forward.11} parent=0 // pred_region
    %v447 = vld [vmem:[#allocation2] sm:$0xff]
    %v448 = vld [vmem:[#allocation2 + $0x8] sm:$0xff]
    %v449 = vld [vmem:[#allocation2 + $0x10] sm:$0xff]
    %v450 = vld [vmem:[#allocation2 + $0x18] sm:$0xff]
    %451 = vst [vmem:[%s2] sm:$0xff] %v447
    %452 = vst [vmem:[%s2 + $0x8] sm:$0xff] %v448
    %453 = vst [vmem:[%s2 + $0x10] sm:$0xff] %v449
    %454 = vst [vmem:[%s2 + $0x18] sm:$0xff] %v450
    %v455 = vld [vmem:[%s3] sm:$0x1]
    %v456 = vadd.f32 %v447, %v448
    %v457 = vadd.f32 %v456, %v449
    %v458 = vadd.f32 %v457, %v450
    %v459 = vrot.slane %v458, 4
    %v460 = vadd.f32 %v458, %v459
    %v461 = vrot.slane %v460, 2
    %v462 = vadd.f32 %v460, %v461
    %v463 = vrot.slane %v462, 1
    %v464 = vadd.f32 %v462, %v463
    %v465 = vadd.f32 %v455, %v464
    %466 = vst [vmem:[%s3] sm:$0x1] %v465
    %v467 = vld [vmem:[%s4] sm:$0x1]
    %v468 = vmul.f32 %v447, %v447
    %v469 = vmul.f32 %v448, %v448
    %v470 = vmul.f32 %v449, %v449
    %v471 = vmul.f32 %v450, %v450
    %v472 = vadd.f32 %v468, %v469
    %v473 = vadd.f32 %v472, %v470
    %v474 = vadd.f32 %v473, %v471
    %v475 = vrot.slane %v474, 4
    %v476 = vadd.f32 %v474, %v475
    %v477 = vrot.slane %v476, 2
    %v478 = vadd.f32 %v476, %v477
    %v479 = vrot.slane %v478, 1
    %v480 = vadd.f32 %v478, %v479
    %v481 = vadd.f32 %v467, %v480
    %482 = vst [vmem:[%s4] sm:$0x1] %v481
  $region21: #{nlayer_discriminator_forward.11} parent=0 // pred_fallthru
    _
  // Predicated region
  $region22: #{nlayer_discriminator_forward.11} parent=0 // pred_check
    _
  $region23: #{nlayer_discriminator_forward.11} parent=0 // pred_check_branch
    %484 = sbr.rel (0) target = $region25
  $region24: #{nlayer_discriminator_forward.11} parent=0 // pred_region
    _
  $region25: #{nlayer_discriminator_forward.11} parent=0 // pred_fallthru
    _
  // Predicated region
  $region26: #{nlayer_discriminator_forward.11} parent=0 // pred_check
    _
  $region27: #{nlayer_discriminator_forward.11} parent=0 // pred_check_branch
    %486 = sbr.rel (0) target = $region29
  $region28: #{nlayer_discriminator_forward.11} parent=0 // pred_region
    _
  $region29: #{nlayer_discriminator_forward.11} parent=0 // pred_fallthru
    _
  // Predicated region
  $region30: #{nlayer_discriminator_forward.11} parent=0 // pred_check
    _
  $region31: #{nlayer_discriminator_forward.11} parent=0 // pred_check_branch
    %488 = sbr.rel (0) target = $region33
  $region32: #{nlayer_discriminator_forward.11} parent=0 // pred_region
    _
  $region33: #{nlayer_discriminator_forward.11} parent=0 // pred_fallthru
    _
  // Predicated region
  $region34: #{nlayer_discriminator_forward.11} parent=0 // pred_check
    _
  $region35: #{nlayer_discriminator_forward.11} parent=0 // pred_check_branch
    %490 = sbr.rel (0) target = $region37
  $region36: #{nlayer_discriminator_forward.11} parent=0 // pred_region
    _
  $region37: #{nlayer_discriminator_forward.11} parent=0 // pred_fallthru
    _
  // Predicated region
  $region38: #{nlayer_discriminator_forward.11} parent=0 // pred_check
    _
  $region39: #{nlayer_discriminator_forward.11} parent=0 // pred_check_branch
    %492 = sbr.rel (0) target = $region41
  $region40: #{nlayer_discriminator_forward.11} parent=0 // pred_region
    _
  $region41: #{nlayer_discriminator_forward.11} parent=0 // pred_fallthru
    _
  // Predicated region
  $region42: #{nlayer_discriminator_forward.11} parent=0 // pred_check
    _
  $region43: #{nlayer_discriminator_forward.11} parent=0 // pred_check_branch
    %494 = sbr.rel (0) target = $region45
  $region44: #{nlayer_discriminator_forward.11} parent=0 // pred_region
    _
  $region45: #{nlayer_discriminator_forward.11} parent=0 // pred_fallthru
    _

// kernel: nlayer_discriminator_forward.14
$region0: #{nlayer_discriminator_forward.14}
  #allocation0 [shape = 'u32[]', space=smem, size = 0x4, offset = 0x4, fixed_abs, tag = 'smem constant byte address 0x4 - core index']
  #allocation1 [shape = 'u32[144,128]{1,0:T(1,128)}', space=vmem, size = 0x12000, scoped, tag = 'internal scratch']
  %s0 = inlined_call_operand.vmem [shape: f32[24,128], index: 0, kind: input, shape index: {}]
  %s1 = inlined_call_operand.vmem [shape: f32[1,128], index: 1, kind: input, shape index: {}]
  %s2 = inlined_call_operand.vmem [shape: f32[1,128], index: 2, kind: input, shape index: {}]
  %s3 = inlined_call_operand.vmem [shape: f32[1,128], index: 3, kind: input, shape index: {}]
  %s4 = inlined_call_operand.vmem [shape: f32[1,128], index: 4, kind: input, shape index: {}]
  %s5 = inlined_call_operand.vmem [shape: f32[24,128], index: 5, kind: output, shape index: {}]
  %s6 = sld [smem:[#allocation0]]
  $region30: #{nlayer_discriminator_forward.14} parent=0
    _
  %s8 = ssub.s32 1, %s6
  %s9 = scalar_select 0, %s8, %s6
  // Predicated region
  $region2: #{nlayer_discriminator_forward.14} parent=0 // pred_check
    _
  $region3: #{nlayer_discriminator_forward.14} parent=0 // pred_check_branch
    %11 = sbr.rel (0) target = $region5
  $region4: #{nlayer_discriminator_forward.14} parent=0 // pred_region
    _
  $region5: #{nlayer_discriminator_forward.14} parent=0 // pred_fallthru
    _
  // Predicated region
  $region6: #{nlayer_discriminator_forward.14} parent=0 // pred_check
    _
  $region7: #{nlayer_discriminator_forward.14} parent=0 // pred_check_branch
    %13 = sbr.rel (0) target = $region9
  $region8: #{nlayer_discriminator_forward.14} parent=0 // pred_region
    _
  $region9: #{nlayer_discriminator_forward.14} parent=0 // pred_fallthru
    _
  // Predicated region
  $region10: #{nlayer_discriminator_forward.14} parent=0 // pred_check
    _
  $region11: #{nlayer_discriminator_forward.14} parent=0 // pred_check_branch
    %15 = sbr.rel (0) target = $region13
  $region12: #{nlayer_discriminator_forward.14} parent=0 // pred_region
    _
  $region13: #{nlayer_discriminator_forward.14} parent=0 // pred_fallthru
    _
  // Predicated region
  $region14: #{nlayer_discriminator_forward.14} parent=0 // pred_check
    _
  $region15: #{nlayer_discriminator_forward.14} parent=0 // pred_check_branch
    %17 = sbr.rel (0) target = $region17
  $region16: #{nlayer_discriminator_forward.14} parent=0 // pred_region
    _
  $region17: #{nlayer_discriminator_forward.14} parent=0 // pred_fallthru
    _
  // Predicated region
  $region18: #{nlayer_discriminator_forward.14} parent=0 // pred_check
    _
  $region19: #{nlayer_discriminator_forward.14} parent=0 // pred_check_branch
    %19 = sbr.rel (0) target = $region21
  $region20: #{nlayer_discriminator_forward.14} parent=0 // pred_region
    _
  $region21: #{nlayer_discriminator_forward.14} parent=0 // pred_fallthru
    _
  %v20 = vld [vmem:[%s1] sm:$0x1]
  %v21 = vmul.f32 %v20, 0.055555556
  %v22 = vld [vmem:[%s2] sm:$0x1]
  %v23 = vmul.f32 %v22, 0.055555556
  %v24 = vmul.f32 %v21, %v21
  %v25 = vsub.f32 %v23, %v24
  %v26 = vadd.f32 %v25, 1e-05
  %v27 = vrsqrt.pop %v26
  %v28 = vld [vmem:[%s3] sm:$0x1]
  %v29 = vmul.f32 %v28, %v27
  %v30 = vld [vmem:[%s4] sm:$0x1]
  %v31 = vmul.f32 %v21, %v29
  %v32 = vsub.f32 %v30, %v31
  %v33 = vld [vmem:[%s0] sm:$0xff]
  %v34 = vld [vmem:[%s0 + $0x8] sm:$0xff]
  %v35 = vld [vmem:[%s0 + $0x10] sm:$0xff]
  %v37 = vlaneseq
  %v38 = vshrl.u32 %v37, 7
  %v39 = vsub.s32 0, %v38
  %v40 = vrot.slane %v29, %v39
  %v42 = vmul.f32 %v33, %v40
  %v43 = vmul.f32 %v34, %v40
  %v44 = vmul.f32 %v35, %v40
  %v46 = vlaneseq
  %v47 = vshrl.u32 %v46, 7
  %v48 = vsub.s32 0, %v47
  %v49 = vrot.slane %v32, %v48
  %v51 = vadd.f32 %v42, %v49
  %v52 = vadd.f32 %v43, %v49
  %v53 = vadd.f32 %v44, %v49
  %vm54 = vcmp.ge.f32.partialorder %v51, 0.0
  %vm55 = vcmp.ge.f32.partialorder %v52, 0.0
  %vm56 = vcmp.ge.f32.partialorder %v53, 0.0
  %v57 = vmul.f32 %v51, 0.2
  %v58 = vmul.f32 %v52, 0.2
  %v59 = vmul.f32 %v53, 0.2
  %v60 = vsel %vm54, %v51, %v57
  %v61 = vsel %vm55, %v52, %v58
  %v62 = vsel %vm56, %v53, %v59
  %63 = vst [vmem:[%s5] sm:$0xff] %v60
  %64 = vst [vmem:[%s5 + $0x8] sm:$0xff] %v61
  %65 = vst [vmem:[%s5 + $0x10] sm:$0xff] %v62
  // Predicated region
  $region22: #{nlayer_discriminator_forward.14} parent=0 // pred_check
    _
  $region23: #{nlayer_discriminator_forward.14} parent=0 // pred_check_branch
    %67 = sbr.rel (0) target = $region25
  $region24: #{nlayer_discriminator_forward.14} parent=0 // pred_region
    _
  $region25: #{nlayer_discriminator_forward.14} parent=0 // pred_fallthru
    _
  // Predicated region
  $region26: #{nlayer_discriminator_forward.14} parent=0 // pred_check
    _
  $region27: #{nlayer_discriminator_forward.14} parent=0 // pred_check_branch
    %69 = sbr.rel (0) target = $region29
  $region28: #{nlayer_discriminator_forward.14} parent=0 // pred_region
    _
  $region29: #{nlayer_discriminator_forward.14} parent=0 // pred_fallthru
    _

// kernel: nlayer_discriminator_forward.13
$region0: #{nlayer_discriminator_forward.13}
  #allocation0 [shape = 'u32[]', space=smem, size = 0x4, offset = 0x4, fixed_abs, tag = 'smem constant byte address 0x4 - core index']
  #allocation1 [shape = 'u32[144,128]{1,0:T(1,128)}', space=vmem, size = 0x12000, scoped, tag = 'internal scratch']
  #allocation2 [shape = 'f32[24,128]{1,0:T(8,128)}', space=vmem, size = 0x3000, scoped, tag = 'scratch operand']
  %s0 = inlined_call_operand.vmem [shape: bf16[24,1024], index: 0, kind: input, shape index: {}]
  %s1 = inlined_call_operand.vmem [shape: bf16[1024,128], index: 1, kind: input, shape index: {}]
  %s2 = inlined_call_operand.vmem [shape: f32[24,128], index: 2, kind: output, shape index: {0}]
  %s3 = inlined_call_operand.vmem [shape: f32[1,128], index: 3, kind: output, shape index: {1}]
  %s4 = inlined_call_operand.vmem [shape: f32[1,128], index: 4, kind: output, shape index: {2}]
  %5 = xla_tuple %s2, %s3, %s4
  %s6 = sld [smem:[#allocation0]]
  $region92: #{nlayer_discriminator_forward.13} parent=0
    _
  %s8 = ssub.s32 1, %s6
  %s9 = scalar_select 0, %s8, %s6
  $region1: #{nlayer_discriminator_forward.13} parent=0
    #allocation3 [shape = 'u8[49152]{0}', space=vmem, size = 0xc000, scoped, tag = 'input window, operand 0']
    loop: start=0, step=1, limit=4
    $region2: #{nlayer_discriminator_forward.13} parent=1 // loop_pre_header
      _
    $region3: #{nlayer_discriminator_forward.13} parent=1 // loop_header
      %s11 = sphi 0, %s15
      %p12 = scmp.ge.s32.totalorder %s11, 4
      %s18 = sphi 0, %s37
      %s19 = sphi 0, %s33
      %s20 = sphi 0, %s29
      %s21 = sphi 0, %s18
      %s22 = sphi 0, %s19
      %s23 = sphi 0, %s20
      %s24 = sphi 0, %s21
      %s25 = sphi 0, %s22
      %s26 = sphi 0, %s23
      %s42 = sphi 0, %s44
      %s45 = sphi 0, %s42
      %s46 = sphi 0, %s45
      %s62 = sphi 0, %s46
      %s70 = sphi 0, %s72
      %s73 = sphi 0, %s70
      %s74 = sphi 0, %s73
      %s90 = sphi 0, %s74
      %s98 = sphi 0, %s100
      %s101 = sphi 0, %s98
      %s102 = sphi 0, %s101
      %s118 = sphi 0, %s102
      %s124 = sphi 0, %s126
      %s127 = sphi 0, %s124
      %s128 = sphi 0, %s127
      %s144 = sphi 0, %s128
      %s150 = sphi 0, %s152
      %s153 = sphi 0, %s150
      %s154 = sphi 0, %s153
      %s170 = sphi 0, %s154
    $region4: #{nlayer_discriminator_forward.13} parent=1 // loop_header_branch
      %14 = sbr.rel (%p12) target = $region8
    $region5: #{nlayer_discriminator_forward.13} parent=1 // loop_body
      %s16 = ssub.s32 %s11, 1
      %s17 = ssub.s32 %s11, 2
      %s27 = sadd.s32 1, %s20
      %p28 = scmp.ge.s32.totalorder %s27, 2
      %s29 = scalar_select %p28, 0, %s27
      %s30 = sadd.s32 1, %s19
      %s31 = scalar_select %p28, %s30, %s19
      %p32 = scmp.ge.s32.totalorder %s31, 1
      %s33 = scalar_select %p32, 0, %s31
      %s34 = sadd.s32 1, %s18
      %s35 = scalar_select %p32, %s34, %s18
      %p36 = scmp.ge.s32.totalorder %s35, 1
      %s37 = scalar_select %p36, 0, %s35
      %s38 = ssub.s32 %s19, %s33
      %s39 = ssub.s32 %s20, %s29
      %s40 = sor.u32 %s38, %s39
      %p41 = scmp.eq.s32.totalorder %s40, 0
      %s43 = sadd.s32 %s42, 1
      %s44 = scalar_select %p41, %s42, %s43
      %p47 = pneg %p41
      %p48 = scmp.eq.s32.totalorder %s11, 1
      %p49 = por %p47, %p48
      %p50 = scmp.ne.s32.totalorder %s42, %s45
      %p51 = scmp.eq.s32.totalorder %s11, 0
      %p52 = por %p50, %p51
      %p53 = scmp.ne.s32.totalorder %s42, %s45
      %p54 = scmp.eq.s32.totalorder %s16, 1
      %p55 = por %p53, %p54
      %p56 = scmp.ne.s32.totalorder %s45, %s46
      %p57 = scmp.eq.s32.totalorder %s16, 0
      %p58 = por %p56, %p57
      %p59 = scmp.ne.s32.totalorder %s45, %s46
      %p60 = scmp.eq.s32.totalorder %s17, 1
      %p61 = por %p59, %p60
      %p63 = scmp.ne.s32.totalorder %s46, %s62
      %p64 = scmp.eq.s32.totalorder %s17, 0
      %p65 = por %p63, %p64
      %s66 = ssub.s32 %s20, %s29
      %s67 = ssub.s32 %s18, %s37
      %s68 = sor.u32 %s66, %s67
      %p69 = scmp.eq.s32.totalorder %s68, 0
      %s71 = sadd.s32 %s70, 1
      %s72 = scalar_select %p69, %s70, %s71
      %p75 = pneg %p69
      %p76 = scmp.eq.s32.totalorder %s11, 1
      %p77 = por %p75, %p76
      %p78 = scmp.ne.s32.totalorder %s70, %s73
      %p79 = scmp.eq.s32.totalorder %s11, 0
      %p80 = por %p78, %p79
      %p81 = scmp.ne.s32.totalorder %s70, %s73
      %p82 = scmp.eq.s32.totalorder %s16, 1
      %p83 = por %p81, %p82
      %p84 = scmp.ne.s32.totalorder %s73, %s74
      %p85 = scmp.eq.s32.totalorder %s16, 0
      %p86 = por %p84, %p85
      %p87 = scmp.ne.s32.totalorder %s73, %s74
      %p88 = scmp.eq.s32.totalorder %s17, 1
      %p89 = por %p87, %p88
      %p91 = scmp.ne.s32.totalorder %s74, %s90
      %p92 = scmp.eq.s32.totalorder %s17, 0
      %p93 = por %p91, %p92
      %s94 = ssub.s32 %s19, %s33
      %s95 = ssub.s32 %s18, %s37
      %s96 = sor.u32 %s94, %s95
      %p97 = scmp.eq.s32.totalorder %s96, 0
      %s99 = sadd.s32 %s98, 1
      %s100 = scalar_select %p97, %s98, %s99
      %p103 = pneg %p97
      %p104 = scmp.eq.s32.totalorder %s11, 1
      %p105 = por %p103, %p104
      %p106 = scmp.ne.s32.totalorder %s98, %s101
      %p107 = scmp.eq.s32.totalorder %s11, 0
      %p108 = por %p106, %p107
      %p109 = scmp.ne.s32.totalorder %s98, %s101
      %p110 = scmp.eq.s32.totalorder %s16, 1
      %p111 = por %p109, %p110
      %p112 = scmp.ne.s32.totalorder %s101, %s102
      %p113 = scmp.eq.s32.totalorder %s16, 0
      %p114 = por %p112, %p113
      %p115 = scmp.ne.s32.totalorder %s101, %s102
      %p116 = scmp.eq.s32.totalorder %s17, 1
      %p117 = por %p115, %p116
      %p119 = scmp.ne.s32.totalorder %s102, %s118
      %p120 = scmp.eq.s32.totalorder %s17, 0
      %p121 = por %p119, %p120
      %s122 = ssub.s32 %s18, %s37
      %p123 = scmp.eq.s32.totalorder %s122, 0
      %s125 = sadd.s32 %s124, 1
      %s126 = scalar_select %p123, %s124, %s125
      %p129 = pneg %p123
      %p130 = scmp.eq.s32.totalorder %s11, 1
      %p131 = por %p129, %p130
      %p132 = scmp.ne.s32.totalorder %s124, %s127
      %p133 = scmp.eq.s32.totalorder %s11, 0
      %p134 = por %p132, %p133
      %p135 = scmp.ne.s32.totalorder %s124, %s127
      %p136 = scmp.eq.s32.totalorder %s16, 1
      %p137 = por %p135, %p136
      %p138 = scmp.ne.s32.totalorder %s127, %s128
      %p139 = scmp.eq.s32.totalorder %s16, 0
      %p140 = por %p138, %p139
      %p141 = scmp.ne.s32.totalorder %s127, %s128
      %p142 = scmp.eq.s32.totalorder %s17, 1
      %p143 = por %p141, %p142
      %p145 = scmp.ne.s32.totalorder %s128, %s144
      %p146 = scmp.eq.s32.totalorder %s17, 0
      %p147 = por %p145, %p146
      %s148 = ssub.s32 %s18, %s37
      %p149 = scmp.eq.s32.totalorder %s148, 0
      %s151 = sadd.s32 %s150, 1
      %s152 = scalar_select %p149, %s150, %s151
      %p155 = pneg %p149
      %p156 = scmp.eq.s32.totalorder %s11, 1
      %p157 = por %p155, %p156
      %p158 = scmp.ne.s32.totalorder %s150, %s153
      %p159 = scmp.eq.s32.totalorder %s11, 0
      %p160 = por %p158, %p159
      %p161 = scmp.ne.s32.totalorder %s150, %s153
      %p162 = scmp.eq.s32.totalorder %s16, 1
      %p163 = por %p161, %p162
      %p164 = scmp.ne.s32.totalorder %s153, %s154
      %p165 = scmp.eq.s32.totalorder %s16, 0
      %p166 = por %p164, %p165
      %p167 = scmp.ne.s32.totalorder %s153, %s154
      %p168 = scmp.eq.s32.totalorder %s17, 1
      %p169 = por %p167, %p168
      %p171 = scmp.ne.s32.totalorder %s154, %s170
      %p172 = scmp.eq.s32.totalorder %s17, 0
      %p173 = por %p171, %p172
      %p174 = scmp.le.s32.totalorder 1, %s11
      %p175 = scmp.lt.s32.totalorder %s11, 3
      %p176 = pnand %p174, %p175
      %p177 = pneg %p176
      // Predicated region
      $region9: #{nlayer_discriminator_forward.13} parent=5 // pred_check
        _
      $region10: #{nlayer_discriminator_forward.13} parent=5 // pred_check_branch
        %179 = sbr.rel (%p176) target = $region12
      $region11: #{nlayer_discriminator_forward.13} parent=5 // pred_region
        %s180 = ssub.s32 %s11, 1
      $region12: #{nlayer_discriminator_forward.13} parent=5 // pred_fallthru
        _
      %p181 = scmp.lt.s32.totalorder %s11, 2
      // Predicated region
      $region13: #{nlayer_discriminator_forward.13} parent=5 // pred_check
        %p182 = pneg %p181
      $region14: #{nlayer_discriminator_forward.13} parent=5 // pred_check_branch
        %184 = sbr.rel (%p182) target = $region16
      $region15: #{nlayer_discriminator_forward.13} parent=5 // pred_region
        // Predicated region
        $region17: #{nlayer_discriminator_forward.13} parent=15 // pred_check
          %p185 = pneg %p52
        $region18: #{nlayer_discriminator_forward.13} parent=15 // pred_check_branch
          %187 = sbr.rel (%p185) target = $region20
        $region19: #{nlayer_discriminator_forward.13} parent=15 // pred_region
          %s188 = sand.u32 %s42, 1
          %s189 = sand.u32 %s42, 1
          %s190 = smul.addr %s189, 48
          %s191 = scalar_lea.vmem [#allocation3], %s190
          %s192 = smul.u32 3, %s19
          %s193 = smul.u32 4, %s20
          %s194 = smul.addr %s192, 8
          %s195 = sadd.s32 %s193, %s194
          %s196 = smul.addr %s195, 4
          %s197 = scalar_lea.vmem %s0, %s196
          // Predicated region
          $region21: #{nlayer_discriminator_forward.13} parent=19 // pred_check
            _
          $region22: #{nlayer_discriminator_forward.13} parent=19 // pred_check_branch
            %199 = sbr.rel (0) target = $region24
          $region23: #{nlayer_discriminator_forward.13} parent=19 // pred_region
            // Predicated region
            $region25: #{nlayer_discriminator_forward.13} parent=23 // pred_check
              _
            $region26: #{nlayer_discriminator_forward.13} parent=23 // pred_check_branch
              %201 = sbr.rel (0) target = $region28
            $region27: #{nlayer_discriminator_forward.13} parent=23 // pred_region
              loop: start=0, step=1, limit=1
              $region29: #{nlayer_discriminator_forward.13} parent=27 // loop_pre_header
                _
              $region30: #{nlayer_discriminator_forward.13} parent=27 // loop_header
                %s203 = sphi 0, %s207
                %p204 = scmp.ge.s32.totalorder %s203, 1
                %s208 = sphi %s197, %s197
                %s209 = sphi %s191, %s191
              $region31: #{nlayer_discriminator_forward.13} parent=27 // loop_header_branch
                %206 = sbr.rel (%p204) target = $region35
              $region32: #{nlayer_discriminator_forward.13} parent=27 // loop_body
                %v210 = vld [vmem:[%s208] sm:$0xff]
                %211 = vst [vmem:[%s209] sm:$0xff] %v210
                %v212 = vld [vmem:[%s208 + $0x8] sm:$0xff]
                %213 = vst [vmem:[%s209 + $0x8] sm:$0xff] %v212
                %v214 = vld [vmem:[%s208 + $0x20] sm:$0xff]
                %215 = vst [vmem:[%s209 + $0x10] sm:$0xff] %v214
                %v216 = vld [vmem:[%s208 + $0x28] sm:$0xff]
                %217 = vst [vmem:[%s209 + $0x18] sm:$0xff] %v216
                %v218 = vld [vmem:[%s208 + $0x40] sm:$0xff]
                %219 = vst [vmem:[%s209 + $0x20] sm:$0xff] %v218
                %v220 = vld [vmem:[%s208 + $0x48] sm:$0xff]
                %221 = vst [vmem:[%s209 + $0x28] sm:$0xff] %v220
              $region33: #{nlayer_discriminator_forward.13} parent=27 // loop_footer
                %s207 = sadd.s32 1, %s203
              $region34: #{nlayer_discriminator_forward.13} parent=27 // loop_footer_branch
                %202 = sbr.rel target = $region30
              $region35: #{nlayer_discriminator_forward.13} parent=27 // loop_exit
                _
            $region28: #{nlayer_discriminator_forward.13} parent=23 // pred_fallthru
              _
            // Predicated region
            $region36: #{nlayer_discriminator_forward.13} parent=23 // pred_check
              _
            $region37: #{nlayer_discriminator_forward.13} parent=23 // pred_check_branch
              %223 = sbr.rel target = $region39
            $region38: #{nlayer_discriminator_forward.13} parent=23 // pred_region
              _
            $region39: #{nlayer_discriminator_forward.13} parent=23 // pred_fallthru
              _
          $region24: #{nlayer_discriminator_forward.13} parent=19 // pred_fallthru
            _
          %224 = vnop
        $region20: #{nlayer_discriminator_forward.13} parent=15 // pred_fallthru
          _
        // Predicated region
        $region40: #{nlayer_discriminator_forward.13} parent=15 // pred_check
          %p225 = pneg %p80
        $region41: #{nlayer_discriminator_forward.13} parent=15 // pred_check_branch
          %227 = sbr.rel (%p225) target = $region43
        $region42: #{nlayer_discriminator_forward.13} parent=15 // pred_region
          %s228 = smul.u32 64, %s20
          %p229 = scmp.lt.s32.totalorder %s228, 127
          %s230 = scalar_select %p229, %s228, 127
          %p231 = scmp.lt.s32.totalorder %s18, 0
          %s232 = scalar_select %p231, %s18, 0
          %s233 = sadd.s32 %s232, %s230
          %s234 = smul.addr %s233, 4
          %s235 = scalar_lea.vmem %s1, %s234
          %s236 = smul.u32 64, %s20
        $region43: #{nlayer_discriminator_forward.13} parent=15 // pred_fallthru
          _
      $region16: #{nlayer_discriminator_forward.13} parent=5 // pred_fallthru
        _
      %p237 = scmp.le.s32.totalorder 1, %s11
      %p238 = scmp.lt.s32.totalorder %s11, 3
      %p239 = pnand %p237, %p238
      %p240 = pneg %p239
      // Predicated region
      $region44: #{nlayer_discriminator_forward.13} parent=5 // pred_check
        _
      $region45: #{nlayer_discriminator_forward.13} parent=5 // pred_check_branch
        %242 = sbr.rel (%p239) target = $region47
      $region46: #{nlayer_discriminator_forward.13} parent=5 // pred_region
        %s243 = ssub.s32 %s11, 1
        %s244 = sand.u32 %s45, 1
        %s245 = sand.u32 %s45, 1
        %s246 = smul.addr %s245, 48
        %s247 = scalar_lea.vmem [#allocation3], %s246
        // Predicated region
        $region48: #{nlayer_discriminator_forward.13} parent=46 // pred_check
          %p248 = pneg %p58
        $region49: #{nlayer_discriminator_forward.13} parent=46 // pred_check_branch
          %250 = sbr.rel (%p248) target = $region51
        $region50: #{nlayer_discriminator_forward.13} parent=46 // pred_region
          _
        $region51: #{nlayer_discriminator_forward.13} parent=46 // pred_fallthru
          _
        %s251 = sand.u32 %s45, 1
        %s252 = sand.u32 %s45, 1
        %s253 = smul.addr %s252, 48
        %s254 = scalar_lea.vmem [#allocation3], %s253
        %p255 = pneg %p58
        %p256 = pneg %p55
        %s257 = smul.u32 64, %s23
        %p258 = scmp.lt.s32.totalorder %s257, 127
        %s259 = scalar_select %p258, %s257, 127
        %p260 = scmp.lt.s32.totalorder %s21, 0
        %s261 = scalar_select %p260, %s21, 0
        %s262 = sadd.s32 %s261, %s259
        %s263 = smul.addr %s262, 4
        %s264 = scalar_lea.vmem %s1, %s263
        %p265 = pneg %p86
        %p266 = pneg %p83
        %p267 = pneg %p114
        %p268 = pneg %p111
        %s269 = smul.u32 3, %s22
        %p270 = scmp.lt.s32.totalorder %s269, 2
        %s271 = scalar_select %p270, %s269, 2
        %p272 = scmp.lt.s32.totalorder %s21, 0
        %s273 = scalar_select %p272, %s21, 0
        %s274 = sadd.s32 %s273, %s271
        %s275 = smul.addr %s274, 8
        %s276 = scalar_lea.vmem %s2, %s275
        %p277 = pneg %p140
        %p278 = pneg %p137
        %p279 = scmp.lt.s32.totalorder %s21, 0
        %s280 = scalar_select %p279, %s21, 0
        %s281 = scalar_lea.vmem %s3, %s280
        %p282 = pneg %p166
        %p283 = pneg %p163
        %p284 = scmp.lt.s32.totalorder %s21, 0
        %s285 = scalar_select %p284, %s21, 0
        %s286 = scalar_lea.vmem %s4, %s285
        %s287 = smul.u32 3, %s22
        %s288 = smul.u32 4, %s23
        %s289 = smul.u32 64, %s23
        %p290 = scmp.lt.s32.totalorder %s289, 127
        %s291 = scalar_select %p290, %s289, 127
        %p292 = scmp.lt.s32.totalorder %s21, 0
        %s293 = scalar_select %p292, %s21, 0
        %s294 = sadd.s32 %s293, %s291
        %s295 = smul.addr %s294, 4
        %s296 = scalar_lea.vmem %s1, %s295
        %s297 = smul.u32 64, %s23
        %s298 = smul.u32 3, %s22
        %p299 = scmp.lt.s32.totalorder %s298, 2
        %s300 = scalar_select %p299, %s298, 2
        %p301 = scmp.lt.s32.totalorder %s21, 0
        %s302 = scalar_select %p301, %s21, 0
        %s303 = sadd.s32 %s302, %s300
        %s304 = smul.addr %s303, 8
        %s305 = scalar_lea.vmem %s2, %s304
        %s306 = smul.u32 3, %s22
        %p307 = scmp.lt.s32.totalorder %s21, 0
        %s308 = scalar_select %p307, %s21, 0
        %s309 = scalar_lea.vmem %s3, %s308
        %p310 = scmp.lt.s32.totalorder %s21, 0
        %s311 = scalar_select %p310, %s21, 0
        %s312 = scalar_lea.vmem %s4, %s311
        %p314 = scmp.eq.s32.totalorder %s23, 0
        // Predicated region
        $region52: #{nlayer_discriminator_forward.13} parent=46 // pred_check
          %p315 = pneg %p314
        $region53: #{nlayer_discriminator_forward.13} parent=46 // pred_check_branch
          %317 = sbr.rel (%p315) target = $region55
        $region54: #{nlayer_discriminator_forward.13} parent=46 // pred_region
          %318 = vst [vmem:[#allocation2] sm:$0xff] 0.0
          %319 = vst [vmem:[#allocation2 + $0x8] sm:$0xff] 0.0
          %320 = vst [vmem:[#allocation2 + $0x10] sm:$0xff] 0.0
        $region55: #{nlayer_discriminator_forward.13} parent=46 // pred_fallthru
          _
        %p321 = scmp.eq.s32.totalorder %s22, 0
        %p322 = pnand %p321, %p314
        %p323 = pneg %p322
        // Predicated region
        $region56: #{nlayer_discriminator_forward.13} parent=46 // pred_check
          _
        $region57: #{nlayer_discriminator_forward.13} parent=46 // pred_check_branch
          %325 = sbr.rel (%p322) target = $region59
        $region58: #{nlayer_discriminator_forward.13} parent=46 // pred_region
          %326 = vst [vmem:[%s309] sm:$0x1] 0.0
          %327 = vst [vmem:[%s312] sm:$0x1] 0.0
        $region59: #{nlayer_discriminator_forward.13} parent=46 // pred_fallthru
          _
        %v328 = vld [vmem:[#allocation2] sm:$0xff]
        %v329 = vld [vmem:[#allocation2 + $0x8] sm:$0xff]
        %v330 = vld [vmem:[#allocation2 + $0x10] sm:$0xff]
        %v331 = vld [vmem:[%s247] sm:$0xff]
        %v332 = vld [vmem:[%s247 + $0x8] sm:$0xff]
        %v333 = vld [vmem:[%s247 + $0x10] sm:$0xff]
        %v334 = vld [vmem:[%s247 + $0x18] sm:$0xff]
        %v335 = vld [vmem:[%s247 + $0x20] sm:$0xff]
        %v336 = vld [vmem:[%s247 + $0x28] sm:$0xff]
        %v337 = vld [vmem:[%s296] sm:$0xf]
        %v338 = vld [vmem:[%s296 + $0x4] sm:$0xf]
        %v339 = vld [vmem:[%s296 + $0x8] sm:$0xf]
        %v340 = vld [vmem:[%s296 + $0xc] sm:$0xf]
        %v341 = vld [vmem:[%s296 + $0x10] sm:$0xf]
        %v342 = vld [vmem:[%s296 + $0x14] sm:$0xf]
        %v343 = vld [vmem:[%s296 + $0x18] sm:$0xf]
        %v344 = vld [vmem:[%s296 + $0x1c] sm:$0xf]
        %v345 = vld [vmem:[%s296 + $0x20] sm:$0xf]
        %v346 = vld [vmem:[%s296 + $0x24] sm:$0xf]
        %v347 = vld [vmem:[%s296 + $0x28] sm:$0xf]
        %v348 = vld [vmem:[%s296 + $0x2c] sm:$0xf]
        %v349 = vld [vmem:[%s296 + $0x30] sm:$0xf]
        %v350 = vld [vmem:[%s296 + $0x34] sm:$0xf]
        %v351 = vld [vmem:[%s296 + $0x38] sm:$0xf]
        %v352 = vld [vmem:[%s296 + $0x3c] sm:$0xf]
        %v353 = vld [vmem:[%s296 + $0x40] sm:$0xf]
        %v354 = vld [vmem:[%s296 + $0x44] sm:$0xf]
        %v355 = vld [vmem:[%s296 + $0x48] sm:$0xf]
        %v356 = vld [vmem:[%s296 + $0x4c] sm:$0xf]
        %v357 = vld [vmem:[%s296 + $0x50] sm:$0xf]
        %v358 = vld [vmem:[%s296 + $0x54] sm:$0xf]
        %v359 = vld [vmem:[%s296 + $0x58] sm:$0xf]
        %v360 = vld [vmem:[%s296 + $0x5c] sm:$0xf]
        %v361 = vld [vmem:[%s296 + $0x60] sm:$0xf]
        %v362 = vld [vmem:[%s296 + $0x64] sm:$0xf]
        %v363 = vld [vmem:[%s296 + $0x68] sm:$0xf]
        %v364 = vld [vmem:[%s296 + $0x6c] sm:$0xf]
        %v365 = vld [vmem:[%s296 + $0x70] sm:$0xf]
        %v366 = vld [vmem:[%s296 + $0x74] sm:$0xf]
        %v367 = vld [vmem:[%s296 + $0x78] sm:$0xf]
        %v368 = vld [vmem:[%s296 + $0x7c] sm:$0xf]
        %v369 = vld [vmem:[%s296 + $0x80] sm:$0xf]
        %v370 = vld [vmem:[%s296 + $0x84] sm:$0xf]
        %v371 = vld [vmem:[%s296 + $0x88] sm:$0xf]
        %v372 = vld [vmem:[%s296 + $0x8c] sm:$0xf]
        %v373 = vld [vmem:[%s296 + $0x90] sm:$0xf]
        %v374 = vld [vmem:[%s296 + $0x94] sm:$0xf]
        %v375 = vld [vmem:[%s296 + $0x98] sm:$0xf]
        %v376 = vld [vmem:[%s296 + $0x9c] sm:$0xf]
        %v377 = vld [vmem:[%s296 + $0xa0] sm:$0xf]
        %v378 = vld [vmem:[%s296 + $0xa4] sm:$0xf]
        %v379 = vld [vmem:[%s296 + $0xa8] sm:$0xf]
        %v380 = vld [vmem:[%s296 + $0xac] sm:$0xf]
        %v381 = vld [vmem:[%s296 + $0xb0] sm:$0xf]
        %v382 = vld [vmem:[%s296 + $0xb4] sm:$0xf]
        %v383 = vld [vmem:[%s296 + $0xb8] sm:$0xf]
        %v384 = vld [vmem:[%s296 + $0xbc] sm:$0xf]
        %v385 = vld [vmem:[%s296 + $0xc0] sm:$0xf]
        %v386 = vld [vmem:[%s296 + $0xc4] sm:$0xf]
        %v387 = vld [vmem:[%s296 + $0xc8] sm:$0xf]
        %v388 = vld [vmem:[%s296 + $0xcc] sm:$0xf]
        %v389 = vld [vmem:[%s296 + $0xd0] sm:$0xf]
        %v390 = vld [vmem:[%s296 + $0xd4] sm:$0xf]
        %v391 = vld [vmem:[%s296 + $0xd8] sm:$0xf]
        %v392 = vld [vmem:[%s296 + $0xdc] sm:$0xf]
        %v393 = vld [vmem:[%s296 + $0xe0] sm:$0xf]
        %v394 = vld [vmem:[%s296 + $0xe4] sm:$0xf]
        %v395 = vld [vmem:[%s296 + $0xe8] sm:$0xf]
        %v396 = vld [vmem:[%s296 + $0xec] sm:$0xf]
        %v397 = vld [vmem:[%s296 + $0xf0] sm:$0xf]
        %v398 = vld [vmem:[%s296 + $0xf4] sm:$0xf]
        %v399 = vld [vmem:[%s296 + $0xf8] sm:$0xf]
        %v400 = vld [vmem:[%s296 + $0xfc] sm:$0xf]
        %v407 = vunpack.c.l.b16 %v331
        %v408 = vunpack.c.h.b16 %v331
        %v409 = vunpack.c.l.b16 %v332
        %v410 = vunpack.c.h.b16 %v332
        %v411 = vunpack.c.l.b16 %v333
        %v412 = vunpack.c.h.b16 %v333
        %v413 = vunpack.c.l.b16 %v334
        %v414 = vunpack.c.h.b16 %v334
        %v415 = vunpack.c.l.b16 %v335
        %v416 = vunpack.c.h.b16 %v335
        %v417 = vunpack.c.l.b16 %v336
        %v418 = vunpack.c.h.b16 %v336
        %v419 = vpack.c.b16 %v411, %v407
        %v420 = vpack.c.b16 %v412, %v408
        %v421 = vpack.c.b16 %v413, %v409
        %v422 = vpack.c.b16 %v414, %v410
        %v423 = vpack.c.b16 %v415, %v415
        %v424 = vpack.c.b16 %v416, %v416
        %v425 = vpack.c.b16 %v417, %v417
        %v426 = vpack.c.b16 %v418, %v418
        %v499 = vunpack.c.l.b16 %v337
        %v500 = vunpack.c.l.b16 %v338
        %v501 = vunpack.c.l.b16 %v339
        %v502 = vunpack.c.l.b16 %v340
        %v503 = vunpack.c.l.b16 %v341
        %v504 = vunpack.c.l.b16 %v342
        %v505 = vunpack.c.l.b16 %v343
        %v506 = vunpack.c.l.b16 %v344
        %v507 = vunpack.c.l.b16 %v345
        %v508 = vunpack.c.l.b16 %v346
        %v509 = vunpack.c.l.b16 %v347
        %v510 = vunpack.c.l.b16 %v348
        %v511 = vunpack.c.l.b16 %v349
        %v512 = vunpack.c.l.b16 %v350
        %v513 = vunpack.c.l.b16 %v351
        %v514 = vunpack.c.l.b16 %v352
        %v515 = vunpack.c.l.b16 %v353
        %v516 = vunpack.c.l.b16 %v354
        %v517 = vunpack.c.l.b16 %v355
        %v518 = vunpack.c.l.b16 %v356
        %v519 = vunpack.c.l.b16 %v357
        %v520 = vunpack.c.l.b16 %v358
        %v521 = vunpack.c.l.b16 %v359
        %v522 = vunpack.c.l.b16 %v360
        %v523 = vunpack.c.l.b16 %v361
        %v524 = vunpack.c.l.b16 %v362
        %v525 = vunpack.c.l.b16 %v363
        %v526 = vunpack.c.l.b16 %v364
        %v527 = vunpack.c.l.b16 %v365
        %v528 = vunpack.c.l.b16 %v366
        %v529 = vunpack.c.l.b16 %v367
        %v530 = vunpack.c.l.b16 %v368
        %v531 = vunpack.c.l.b16 %v369
        %v532 = vunpack.c.l.b16 %v370
        %v533 = vunpack.c.l.b16 %v371
        %v534 = vunpack.c.l.b16 %v372
        %v535 = vunpack.c.l.b16 %v373
        %v536 = vunpack.c.l.b16 %v374
        %v537 = vunpack.c.l.b16 %v375
        %v538 = vunpack.c.l.b16 %v376
        %v539 = vunpack.c.l.b16 %v377
        %v540 = vunpack.c.l.b16 %v378
        %v541 = vunpack.c.l.b16 %v379
        %v542 = vunpack.c.l.b16 %v380
        %v543 = vunpack.c.l.b16 %v381
        %v544 = vunpack.c.l.b16 %v382
        %v545 = vunpack.c.l.b16 %v383
        %v546 = vunpack.c.l.b16 %v384
        %v547 = vunpack.c.l.b16 %v385
        %v548 = vunpack.c.l.b16 %v386
        %v549 = vunpack.c.l.b16 %v387
        %v550 = vunpack.c.l.b16 %v388
        %v551 = vunpack.c.l.b16 %v389
        %v552 = vunpack.c.l.b16 %v390
        %v553 = vunpack.c.l.b16 %v391
        %v554 = vunpack.c.l.b16 %v392
        %v555 = vunpack.c.l.b16 %v393
        %v556 = vunpack.c.l.b16 %v394
        %v557 = vunpack.c.l.b16 %v395
        %v558 = vunpack.c.l.b16 %v396
        %v559 = vunpack.c.l.b16 %v397
        %v560 = vunpack.c.l.b16 %v398
        %v561 = vunpack.c.l.b16 %v399
        %v562 = vunpack.c.l.b16 %v400
        %v563 = vpack.c.b16 %v500, %v499
        %v564 = vpack.c.b16 %v502, %v501
        %v565 = vpack.c.b16 %v504, %v503
        %v566 = vpack.c.b16 %v506, %v505
        %v567 = vpack.c.b16 %v508, %v507
        %v568 = vpack.c.b16 %v510, %v509
        %v569 = vpack.c.b16 %v512, %v511
        %v570 = vpack.c.b16 %v514, %v513
        %v571 = vpack.c.b16 %v516, %v515
        %v572 = vpack.c.b16 %v518, %v517
        %v573 = vpack.c.b16 %v520, %v519
        %v574 = vpack.c.b16 %v522, %v521
        %v575 = vpack.c.b16 %v524, %v523
        %v576 = vpack.c.b16 %v526, %v525
        %v577 = vpack.c.b16 %v528, %v527
        %v578 = vpack.c.b16 %v530, %v529
        %v579 = vpack.c.b16 %v532, %v531
        %v580 = vpack.c.b16 %v534, %v533
        %v581 = vpack.c.b16 %v536, %v535
        %v582 = vpack.c.b16 %v538, %v537
        %v583 = vpack.c.b16 %v540, %v539
        %v584 = vpack.c.b16 %v542, %v541
        %v585 = vpack.c.b16 %v544, %v543
        %v586 = vpack.c.b16 %v546, %v545
        %v587 = vpack.c.b16 %v548, %v547
        %v588 = vpack.c.b16 %v550, %v549
        %v589 = vpack.c.b16 %v552, %v551
        %v590 = vpack.c.b16 %v554, %v553
        %v591 = vpack.c.b16 %v556, %v555
        %v592 = vpack.c.b16 %v558, %v557
        %v593 = vpack.c.b16 %v560, %v559
        %v594 = vpack.c.b16 %v562, %v561
        %627 = vmatprep.subr.bf16.mxu0 0
        %628 = vmatpush1.bf16.msra.mxu0 %v563
        %629 = vmatprep.subr.bf16.mxu0 0
        %630 = vmatpush1.bf16.msra.mxu0 %v564
        %631 = vmatprep.subr.bf16.mxu0 0
        %632 = vmatpush1.bf16.msra.mxu0 %v565
        %633 = vmatprep.subr.bf16.mxu0 0
        %634 = vmatpush1.bf16.msra.mxu0 %v566
        %635 = vmatprep.subr.bf16.mxu0 0
        %636 = vmatpush1.bf16.msra.mxu0 %v567
        %637 = vmatprep.subr.bf16.mxu0 0
        %638 = vmatpush1.bf16.msra.mxu0 %v568
        %639 = vmatprep.subr.bf16.mxu0 0
        %640 = vmatpush1.bf16.msra.mxu0 %v569
        %641 = vmatprep.subr.bf16.mxu0 0
        %642 = vmatpush1.bf16.msra.mxu0 %v570
        %643 = vmatprep.subr.bf16.mxu0 0
        %644 = vmatpush1.bf16.msra.mxu0 %v571
        %645 = vmatprep.subr.bf16.mxu0 0
        %646 = vmatpush1.bf16.msra.mxu0 %v572
        %647 = vmatprep.subr.bf16.mxu0 0
        %648 = vmatpush1.bf16.msra.mxu0 %v573
        %649 = vmatprep.subr.bf16.mxu0 0
        %650 = vmatpush1.bf16.msra.mxu0 %v574
        %651 = vmatprep.subr.bf16.mxu0 0
        %652 = vmatpush1.bf16.msra.mxu0 %v575
        %653 = vmatprep.subr.bf16.mxu0 0
        %654 = vmatpush1.bf16.msra.mxu0 %v576
        %655 = vmatprep.subr.bf16.mxu0 0
        %656 = vmatpush1.bf16.msra.mxu0 %v577
        %657 = vmatprep.subr.bf16.mxu0 0
        %658 = vmatpush1.bf16.msra.mxu0 %v578
        %659 = vmatprep.mubr.bf16.mxu0 %v420
        %660 = vmatmul.mubr.bf16.gmra.mrb[0].mxu0 %v419
        %v661 = vpop.f32.mrb[0].mxu0
        %v662 = vadd.f32 0.0, %v661
        %v663 = vpop.f32.mrb[0].mxu0
        %v664 = vpop.f32.mrb[0].mxu0
        %v665 = vadd.f32 0.0, %v664
        %v666 = vpop.f32.mrb[0].mxu0
        %667 = vmatprep.mubr.bf16.mxu0 %v424
        %668 = vmatmul.mubr.bf16.gmra.mrb[0].mxu0 %v423
        %v669 = vpop.f32.mrb[0].mxu0
        %v670 = vadd.f32 0.0, %v669
        %v671 = vpop.f32.mrb[0].mxu0
        %v672 = vpop.f32.mrb[0].mxu0
        %v673 = vpop.f32.mrb[0].mxu0
        %674 = vdwg.mxu0
        %675 = vmatprep.subr.bf16.mxu0 0
        %676 = vmatpush1.bf16.msra.mxu0 %v579
        %677 = vmatprep.subr.bf16.mxu0 0
        %678 = vmatpush1.bf16.msra.mxu0 %v580
        %679 = vmatprep.subr.bf16.mxu0 0
        %680 = vmatpush1.bf16.msra.mxu0 %v581
        %681 = vmatprep.subr.bf16.mxu0 0
        %682 = vmatpush1.bf16.msra.mxu0 %v582
        %683 = vmatprep.subr.bf16.mxu0 0
        %684 = vmatpush1.bf16.msra.mxu0 %v583
        %685 = vmatprep.subr.bf16.mxu0 0
        %686 = vmatpush1.bf16.msra.mxu0 %v584
        %687 = vmatprep.subr.bf16.mxu0 0
        %688 = vmatpush1.bf16.msra.mxu0 %v585
        %689 = vmatprep.subr.bf16.mxu0 0
        %690 = vmatpush1.bf16.msra.mxu0 %v586
        %691 = vmatprep.subr.bf16.mxu0 0
        %692 = vmatpush1.bf16.msra.mxu0 %v587
        %693 = vmatprep.subr.bf16.mxu0 0
        %694 = vmatpush1.bf16.msra.mxu0 %v588
        %695 = vmatprep.subr.bf16.mxu0 0
        %696 = vmatpush1.bf16.msra.mxu0 %v589
        %697 = vmatprep.subr.bf16.mxu0 0
        %698 = vmatpush1.bf16.msra.mxu0 %v590
        %699 = vmatprep.subr.bf16.mxu0 0
        %700 = vmatpush1.bf16.msra.mxu0 %v591
        %701 = vmatprep.subr.bf16.mxu0 0
        %702 = vmatpush1.bf16.msra.mxu0 %v592
        %703 = vmatprep.subr.bf16.mxu0 0
        %704 = vmatpush1.bf16.msra.mxu0 %v593
        %705 = vmatprep.subr.bf16.mxu0 0
        %706 = vmatpush1.bf16.msra.mxu0 %v594
        %707 = vmatprep.mubr.bf16.mxu0 %v422
        %708 = vmatmul.mubr.bf16.gmra.mrb[0].mxu0 %v421
        %v709 = vpop.f32.mrb[0].mxu0
        %v710 = vadd.f32 %v662, %v709
        %v711 = vpop.f32.mrb[0].mxu0
        %v712 = vpop.f32.mrb[0].mxu0
        %v713 = vadd.f32 %v665, %v712
        %v714 = vpop.f32.mrb[0].mxu0
        %715 = vmatprep.mubr.bf16.mxu0 %v426
        %716 = vmatmul.mubr.bf16.gmra.mrb[0].mxu0 %v425
        %v717 = vpop.f32.mrb[0].mxu0
        %v718 = vadd.f32 %v670, %v717
        %v719 = vpop.f32.mrb[0].mxu0
        %v720 = vpop.f32.mrb[0].mxu0
        %v721 = vpop.f32.mrb[0].mxu0
        %722 = vdwg.mxu0
        %v723 = vadd.f32 %v328, %v710
        %v724 = vadd.f32 %v329, %v713
        %v725 = vadd.f32 %v330, %v718
        %726 = vst [vmem:[#allocation2] sm:$0xff] %v723
        %727 = vst [vmem:[#allocation2 + $0x8] sm:$0xff] %v724
        %728 = vst [vmem:[#allocation2 + $0x10] sm:$0xff] %v725
        %p729 = scmp.eq.s32.totalorder %s23, 1
        // Predicated region
        $region60: #{nlayer_discriminator_forward.13} parent=46 // pred_check
          %p730 = pneg %p729
        $region61: #{nlayer_discriminator_forward.13} parent=46 // pred_check_branch
          %732 = sbr.rel (%p730) target = $region63
        $region62: #{nlayer_discriminator_forward.13} parent=46 // pred_region
          %v733 = vld [vmem:[#allocation2] sm:$0xff]
          %v734 = vld [vmem:[#allocation2 + $0x8] sm:$0xff]
          %v735 = vld [vmem:[#allocation2 + $0x10] sm:$0xff]
          %736 = vst [vmem:[%s305] sm:$0xff] %v733
          %737 = vst [vmem:[%s305 + $0x8] sm:$0xff] %v734
          %738 = vst [vmem:[%s305 + $0x10] sm:$0xff] %v735
          %v739 = vld [vmem:[%s309] sm:$0x1]
          %v740 = vadd.f32 %v733, %v734
          %v741 = vadd.f32 %v740, %v735
          %v742 = vrot.slane %v741, 4
          %v743 = vadd.f32 %v741, %v742
          %v744 = vrot.slane %v743, 2
          %v745 = vadd.f32 %v743, %v744
          %v746 = vrot.slane %v745, 1
          %v747 = vadd.f32 %v745, %v746
          %v748 = vadd.f32 %v739, %v747
          %749 = vst [vmem:[%s309] sm:$0x1] %v748
          %v750 = vld [vmem:[%s312] sm:$0x1]
          %v751 = vmul.f32 %v733, %v733
          %v752 = vmul.f32 %v734, %v734
          %v753 = vmul.f32 %v735, %v735
          %v754 = vadd.f32 %v751, %v752
          %v755 = vadd.f32 %v754, %v753
          %v756 = vrot.slane %v755, 4
          %v757 = vadd.f32 %v755, %v756
          %v758 = vrot.slane %v757, 2
          %v759 = vadd.f32 %v757, %v758
          %v760 = vrot.slane %v759, 1
          %v761 = vadd.f32 %v759, %v760
          %v762 = vadd.f32 %v750, %v761
          %763 = vst [vmem:[%s312] sm:$0x1] %v762
        $region63: #{nlayer_discriminator_forward.13} parent=46 // pred_fallthru
          _
        %s764 = smul.u32 3, %s22
        %p765 = scmp.lt.s32.totalorder %s764, 2
        %s766 = scalar_select %p765, %s764, 2
        %p767 = scmp.lt.s32.totalorder %s21, 0
        %s768 = scalar_select %p767, %s21, 0
        %s769 = sadd.s32 %s768, %s766
        %s770 = smul.addr %s769, 8
        %s771 = scalar_lea.vmem %s2, %s770
        %p772 = scmp.lt.s32.totalorder %s21, 0
        %s773 = scalar_select %p772, %s21, 0
        %s774 = scalar_lea.vmem %s3, %s773
        %p775 = scmp.lt.s32.totalorder %s21, 0
        %s776 = scalar_select %p775, %s21, 0
        %s777 = scalar_lea.vmem %s4, %s776
        // Predicated region
        $region64: #{nlayer_discriminator_forward.13} parent=46 // pred_check
          %p778 = pneg %p111
        $region65: #{nlayer_discriminator_forward.13} parent=46 // pred_check_branch
          %780 = sbr.rel (%p778) target = $region67
        $region66: #{nlayer_discriminator_forward.13} parent=46 // pred_region
          %s781 = smul.u32 3, %s22
        $region67: #{nlayer_discriminator_forward.13} parent=46 // pred_fallthru
          _
        // Predicated region
        $region68: #{nlayer_discriminator_forward.13} parent=46 // pred_check
          %p782 = pneg %p137
        $region69: #{nlayer_discriminator_forward.13} parent=46 // pred_check_branch
          %784 = sbr.rel (%p782) target = $region71
        $region70: #{nlayer_discriminator_forward.13} parent=46 // pred_region
          _
        $region71: #{nlayer_discriminator_forward.13} parent=46 // pred_fallthru
          _
        // Predicated region
        $region72: #{nlayer_discriminator_forward.13} parent=46 // pred_check
          %p785 = pneg %p163
        $region73: #{nlayer_discriminator_forward.13} parent=46 // pred_check_branch
          %787 = sbr.rel (%p785) target = $region75
        $region74: #{nlayer_discriminator_forward.13} parent=46 // pred_region
          _
        $region75: #{nlayer_discriminator_forward.13} parent=46 // pred_fallthru
          _
        // Predicated region
        $region76: #{nlayer_discriminator_forward.13} parent=46 // pred_check
          %p788 = pneg %p111
        $region77: #{nlayer_discriminator_forward.13} parent=46 // pred_check_branch
          %790 = sbr.rel (%p788) target = $region79
        $region78: #{nlayer_discriminator_forward.13} parent=46 // pred_region
          %s791 = smul.u32 3, %s22
          %p792 = scmp.lt.s32.totalorder %s791, 2
          %s793 = scalar_select %p792, %s791, 2
          %p794 = scmp.lt.s32.totalorder %s21, 0
          %s795 = scalar_select %p794, %s21, 0
          %s796 = sadd.s32 %s795, %s793
          %s797 = smul.addr %s796, 8
          %s798 = scalar_lea.vmem %s2, %s797
        $region79: #{nlayer_discriminator_forward.13} parent=46 // pred_fallthru
          _
        // Predicated region
        $region80: #{nlayer_discriminator_forward.13} parent=46 // pred_check
          %p799 = pneg %p137
        $region81: #{nlayer_discriminator_forward.13} parent=46 // pred_check_branch
          %801 = sbr.rel (%p799) target = $region83
        $region82: #{nlayer_discriminator_forward.13} parent=46 // pred_region
          %p802 = scmp.lt.s32.totalorder %s21, 0
          %s803 = scalar_select %p802, %s21, 0
          %s804 = scalar_lea.vmem %s3, %s803
        $region83: #{nlayer_discriminator_forward.13} parent=46 // pred_fallthru
          _
        // Predicated region
        $region84: #{nlayer_discriminator_forward.13} parent=46 // pred_check
          %p805 = pneg %p163
        $region85: #{nlayer_discriminator_forward.13} parent=46 // pred_check_branch
          %807 = sbr.rel (%p805) target = $region87
        $region86: #{nlayer_discriminator_forward.13} parent=46 // pred_region
          %p808 = scmp.lt.s32.totalorder %s21, 0
          %s809 = scalar_select %p808, %s21, 0
          %s810 = scalar_lea.vmem %s4, %s809
        $region87: #{nlayer_discriminator_forward.13} parent=46 // pred_fallthru
          _
      $region47: #{nlayer_discriminator_forward.13} parent=5 // pred_fallthru
        _
      %p811 = scmp.le.s32.totalorder 2, %s11
      // Predicated region
      $region88: #{nlayer_discriminator_forward.13} parent=5 // pred_check
        %p812 = pneg %p811
      $region89: #{nlayer_discriminator_forward.13} parent=5 // pred_check_branch
        %814 = sbr.rel (%p812) target = $region91
      $region90: #{nlayer_discriminator_forward.13} parent=5 // pred_region
        %s815 = ssub.s32 %s11, 2
      $region91: #{nlayer_discriminator_forward.13} parent=5 // pred_fallthru
        _
    $region6: #{nlayer_discriminator_forward.13} parent=1 // loop_footer
      %s15 = sadd.s32 1, %s11
    $region7: #{nlayer_discriminator_forward.13} parent=1 // loop_footer_branch
      %10 = sbr.rel target = $region3
    $region8: #{nlayer_discriminator_forward.13} parent=1 // loop_exit
      _

// kernel: nlayer_discriminator_forward.15
$region0: #{nlayer_discriminator_forward.15}
  #allocation0 [shape = 'u32[]', space=smem, size = 0x4, offset = 0x4, fixed_abs, tag = 'smem constant byte address 0x4 - core index']
  #allocation1 [shape = 'u32[144,128]{1,0:T(1,128)}', space=vmem, size = 0x12000, scoped, tag = 'internal scratch']
  #allocation2 [shape = 'f32[8,128]{1,0:T(8,128)}', space=vmem, size = 0x1000, scoped, tag = 'scratch operand']
  %s0 = inlined_call_operand.vmem [shape: bf16[8,2048], index: 0, kind: input, shape index: {}]
  %s1 = inlined_call_operand.vmem [shape: bf16[2048,128], index: 1, kind: input, shape index: {}]
  %s2 = inlined_call_operand.vmem [shape: f32[1,128], index: 2, kind: input, shape index: {}]
  %s3 = inlined_call_operand.vmem [shape: f32[8,128], index: 3, kind: output, shape index: {}]
  %s4 = sld [smem:[#allocation0]]
  $region53: #{nlayer_discriminator_forward.15} parent=0
    _
  %s6 = ssub.s32 1, %s4
  %s7 = scalar_select 0, %s6, %s4
  loop: start=0, step=1, limit=6
  $region2: #{nlayer_discriminator_forward.15} parent=0 // loop_pre_header
    _
  $region3: #{nlayer_discriminator_forward.15} parent=0 // loop_header
    %s9 = sphi 0, %s13
    %p10 = scmp.ge.s32.totalorder %s9, 6
    %s16 = sphi 0, %s35
    %s17 = sphi 0, %s31
    %s18 = sphi 0, %s27
    %s19 = sphi 0, %s16
    %s20 = sphi 0, %s17
    %s21 = sphi 0, %s18
    %s22 = sphi 0, %s19
    %s23 = sphi 0, %s20
    %s24 = sphi 0, %s21
    %s40 = sphi 0, %s42
    %s43 = sphi 0, %s40
    %s44 = sphi 0, %s43
    %s60 = sphi 0, %s44
    %s68 = sphi 0, %s70
    %s71 = sphi 0, %s68
    %s72 = sphi 0, %s71
    %s88 = sphi 0, %s72
    %s94 = sphi 0, %s96
    %s97 = sphi 0, %s94
    %s98 = sphi 0, %s97
    %s114 = sphi 0, %s98
    %s122 = sphi 0, %s124
    %s125 = sphi 0, %s122
    %s126 = sphi 0, %s125
    %s142 = sphi 0, %s126
  $region4: #{nlayer_discriminator_forward.15} parent=0 // loop_header_branch
    %12 = sbr.rel (%p10) target = $region8
  $region5: #{nlayer_discriminator_forward.15} parent=0 // loop_body
    %s14 = ssub.s32 %s9, 1
    %s15 = ssub.s32 %s9, 2
    %s25 = sadd.s32 1, %s18
    %p26 = scmp.ge.s32.totalorder %s25, 4
    %s27 = scalar_select %p26, 0, %s25
    %s28 = sadd.s32 1, %s17
    %s29 = scalar_select %p26, %s28, %s17
    %p30 = scmp.ge.s32.totalorder %s29, 1
    %s31 = scalar_select %p30, 0, %s29
    %s32 = sadd.s32 1, %s16
    %s33 = scalar_select %p30, %s32, %s16
    %p34 = scmp.ge.s32.totalorder %s33, 1
    %s35 = scalar_select %p34, 0, %s33
    %s36 = ssub.s32 %s16, %s35
    %s37 = ssub.s32 %s18, %s27
    %s38 = sor.u32 %s36, %s37
    %p39 = scmp.eq.s32.totalorder %s38, 0
    %s41 = sadd.s32 %s40, 1
    %s42 = scalar_select %p39, %s40, %s41
    %p45 = pneg %p39
    %p46 = scmp.eq.s32.totalorder %s9, 3
    %p47 = por %p45, %p46
    %p48 = scmp.ne.s32.totalorder %s40, %s43
    %p49 = scmp.eq.s32.totalorder %s9, 0
    %p50 = por %p48, %p49
    %p51 = scmp.ne.s32.totalorder %s40, %s43
    %p52 = scmp.eq.s32.totalorder %s14, 3
    %p53 = por %p51, %p52
    %p54 = scmp.ne.s32.totalorder %s43, %s44
    %p55 = scmp.eq.s32.totalorder %s14, 0
    %p56 = por %p54, %p55
    %p57 = scmp.ne.s32.totalorder %s43, %s44
    %p58 = scmp.eq.s32.totalorder %s15, 3
    %p59 = por %p57, %p58
    %p61 = scmp.ne.s32.totalorder %s44, %s60
    %p62 = scmp.eq.s32.totalorder %s15, 0
    %p63 = por %p61, %p62
    %s64 = ssub.s32 %s18, %s27
    %s65 = ssub.s32 %s17, %s31
    %s66 = sor.u32 %s64, %s65
    %p67 = scmp.eq.s32.totalorder %s66, 0
    %s69 = sadd.s32 %s68, 1
    %s70 = scalar_select %p67, %s68, %s69
    %p73 = pneg %p67
    %p74 = scmp.eq.s32.totalorder %s9, 3
    %p75 = por %p73, %p74
    %p76 = scmp.ne.s32.totalorder %s68, %s71
    %p77 = scmp.eq.s32.totalorder %s9, 0
    %p78 = por %p76, %p77
    %p79 = scmp.ne.s32.totalorder %s68, %s71
    %p80 = scmp.eq.s32.totalorder %s14, 3
    %p81 = por %p79, %p80
    %p82 = scmp.ne.s32.totalorder %s71, %s72
    %p83 = scmp.eq.s32.totalorder %s14, 0
    %p84 = por %p82, %p83
    %p85 = scmp.ne.s32.totalorder %s71, %s72
    %p86 = scmp.eq.s32.totalorder %s15, 3
    %p87 = por %p85, %p86
    %p89 = scmp.ne.s32.totalorder %s72, %s88
    %p90 = scmp.eq.s32.totalorder %s15, 0
    %p91 = por %p89, %p90
    %s92 = ssub.s32 %s17, %s31
    %p93 = scmp.eq.s32.totalorder %s92, 0
    %s95 = sadd.s32 %s94, 1
    %s96 = scalar_select %p93, %s94, %s95
    %p99 = pneg %p93
    %p100 = scmp.eq.s32.totalorder %s9, 3
    %p101 = por %p99, %p100
    %p102 = scmp.ne.s32.totalorder %s94, %s97
    %p103 = scmp.eq.s32.totalorder %s9, 0
    %p104 = por %p102, %p103
    %p105 = scmp.ne.s32.totalorder %s94, %s97
    %p106 = scmp.eq.s32.totalorder %s14, 3
    %p107 = por %p105, %p106
    %p108 = scmp.ne.s32.totalorder %s97, %s98
    %p109 = scmp.eq.s32.totalorder %s14, 0
    %p110 = por %p108, %p109
    %p111 = scmp.ne.s32.totalorder %s97, %s98
    %p112 = scmp.eq.s32.totalorder %s15, 3
    %p113 = por %p111, %p112
    %p115 = scmp.ne.s32.totalorder %s98, %s114
    %p116 = scmp.eq.s32.totalorder %s15, 0
    %p117 = por %p115, %p116
    %s118 = ssub.s32 %s16, %s35
    %s119 = ssub.s32 %s17, %s31
    %s120 = sor.u32 %s118, %s119
    %p121 = scmp.eq.s32.totalorder %s120, 0
    %s123 = sadd.s32 %s122, 1
    %s124 = scalar_select %p121, %s122, %s123
    %p127 = pneg %p121
    %p128 = scmp.eq.s32.totalorder %s9, 3
    %p129 = por %p127, %p128
    %p130 = scmp.ne.s32.totalorder %s122, %s125
    %p131 = scmp.eq.s32.totalorder %s9, 0
    %p132 = por %p130, %p131
    %p133 = scmp.ne.s32.totalorder %s122, %s125
    %p134 = scmp.eq.s32.totalorder %s14, 3
    %p135 = por %p133, %p134
    %p136 = scmp.ne.s32.totalorder %s125, %s126
    %p137 = scmp.eq.s32.totalorder %s14, 0
    %p138 = por %p136, %p137
    %p139 = scmp.ne.s32.totalorder %s125, %s126
    %p140 = scmp.eq.s32.totalorder %s15, 3
    %p141 = por %p139, %p140
    %p143 = scmp.ne.s32.totalorder %s126, %s142
    %p144 = scmp.eq.s32.totalorder %s15, 0
    %p145 = por %p143, %p144
    %p146 = scmp.le.s32.totalorder 1, %s9
    %p147 = scmp.lt.s32.totalorder %s9, 5
    %p148 = pnand %p146, %p147
    %p149 = pneg %p148
    // Predicated region
    $region9: #{nlayer_discriminator_forward.15} parent=5 // pred_check
      _
    $region10: #{nlayer_discriminator_forward.15} parent=5 // pred_check_branch
      %151 = sbr.rel (%p148) target = $region12
    $region11: #{nlayer_discriminator_forward.15} parent=5 // pred_region
      %s152 = ssub.s32 %s9, 1
      // Predicated region
      $region13: #{nlayer_discriminator_forward.15} parent=11 // pred_check
        %p153 = pneg %p110
      $region14: #{nlayer_discriminator_forward.15} parent=11 // pred_check_branch
        %155 = sbr.rel (%p153) target = $region16
      $region15: #{nlayer_discriminator_forward.15} parent=11 // pred_region
        %p156 = scmp.lt.s32.totalorder %s20, 0
        %s157 = scalar_select %p156, %s20, 0
        %s158 = scalar_lea.vmem %s2, %s157
      $region16: #{nlayer_discriminator_forward.15} parent=11 // pred_fallthru
        _
    $region12: #{nlayer_discriminator_forward.15} parent=5 // pred_fallthru
      _
    %p159 = scmp.lt.s32.totalorder %s9, 4
    // Predicated region
    $region17: #{nlayer_discriminator_forward.15} parent=5 // pred_check
      %p160 = pneg %p159
    $region18: #{nlayer_discriminator_forward.15} parent=5 // pred_check_branch
      %162 = sbr.rel (%p160) target = $region20
    $region19: #{nlayer_discriminator_forward.15} parent=5 // pred_region
      // Predicated region
      $region21: #{nlayer_discriminator_forward.15} parent=19 // pred_check
        %p163 = pneg %p50
      $region22: #{nlayer_discriminator_forward.15} parent=19 // pred_check_branch
        %165 = sbr.rel (%p163) target = $region24
      $region23: #{nlayer_discriminator_forward.15} parent=19 // pred_region
        %s166 = smul.u32 4, %s18
        %p167 = scmp.lt.s32.totalorder %s16, 0
        %s168 = scalar_select %p167, %s16, 0
        %p169 = scmp.lt.s32.totalorder %s166, 15
        %s170 = scalar_select %p169, %s166, 15
        %s171 = smul.addr %s168, 16
        %s172 = sadd.s32 %s170, %s171
        %s173 = smul.addr %s172, 4
        %s174 = scalar_lea.vmem %s0, %s173
        %s175 = smul.u32 4, %s18
      $region24: #{nlayer_discriminator_forward.15} parent=19 // pred_fallthru
        _
      // Predicated region
      $region25: #{nlayer_discriminator_forward.15} parent=19 // pred_check
        %p176 = pneg %p78
      $region26: #{nlayer_discriminator_forward.15} parent=19 // pred_check_branch
        %178 = sbr.rel (%p176) target = $region28
      $region27: #{nlayer_discriminator_forward.15} parent=19 // pred_region
        %s179 = smul.u32 64, %s18
        %p180 = scmp.lt.s32.totalorder %s179, 255
        %s181 = scalar_select %p180, %s179, 255
        %p182 = scmp.lt.s32.totalorder %s17, 0
        %s183 = scalar_select %p182, %s17, 0
        %s184 = sadd.s32 %s183, %s181
        %s185 = smul.addr %s184, 4
        %s186 = scalar_lea.vmem %s1, %s185
        %s187 = smul.u32 64, %s18
      $region28: #{nlayer_discriminator_forward.15} parent=19 // pred_fallthru
        _
    $region20: #{nlayer_discriminator_forward.15} parent=5 // pred_fallthru
      _
    %p188 = scmp.le.s32.totalorder 1, %s9
    %p189 = scmp.lt.s32.totalorder %s9, 5
    %p190 = pnand %p188, %p189
    %p191 = pneg %p190
    // Predicated region
    $region29: #{nlayer_discriminator_forward.15} parent=5 // pred_check
      _
    $region30: #{nlayer_discriminator_forward.15} parent=5 // pred_check_branch
      %193 = sbr.rel (%p190) target = $region32
    $region31: #{nlayer_discriminator_forward.15} parent=5 // pred_region
      %s194 = ssub.s32 %s9, 1
      %s195 = smul.u32 4, %s21
      %p196 = scmp.lt.s32.totalorder %s19, 0
      %s197 = scalar_select %p196, %s19, 0
      %p198 = scmp.lt.s32.totalorder %s195, 15
      %s199 = scalar_select %p198, %s195, 15
      %s200 = smul.addr %s197, 16
      %s201 = sadd.s32 %s199, %s200
      %s202 = smul.addr %s201, 4
      %s203 = scalar_lea.vmem %s0, %s202
      %p204 = pneg %p56
      %p205 = pneg %p53
      %s206 = smul.u32 64, %s21
      %p207 = scmp.lt.s32.totalorder %s206, 255
      %s208 = scalar_select %p207, %s206, 255
      %p209 = scmp.lt.s32.totalorder %s20, 0
      %s210 = scalar_select %p209, %s20, 0
      %s211 = sadd.s32 %s210, %s208
      %s212 = smul.addr %s211, 4
      %s213 = scalar_lea.vmem %s1, %s212
      %p214 = pneg %p84
      %p215 = pneg %p81
      %p216 = scmp.lt.s32.totalorder %s20, 0
      %s217 = scalar_select %p216, %s20, 0
      %s218 = scalar_lea.vmem %s2, %s217
      %p219 = pneg %p110
      %p220 = pneg %p107
      %p221 = pneg %p138
      %p222 = pneg %p135
      %p223 = scmp.lt.s32.totalorder %s19, 0
      %s224 = scalar_select %p223, %s19, 0
      %p225 = scmp.lt.s32.totalorder %s20, 0
      %s226 = scalar_select %p225, %s20, 0
      %s227 = sadd.s32 %s226, %s224
      %s228 = smul.addr %s227, 8
      %s229 = scalar_lea.vmem %s3, %s228
      %s230 = smul.u32 4, %s21
      %p231 = scmp.lt.s32.totalorder %s19, 0
      %s232 = scalar_select %p231, %s19, 0
      %p233 = scmp.lt.s32.totalorder %s230, 15
      %s234 = scalar_select %p233, %s230, 15
      %s235 = smul.addr %s232, 16
      %s236 = sadd.s32 %s234, %s235
      %s237 = smul.addr %s236, 4
      %s238 = scalar_lea.vmem %s0, %s237
      %s239 = smul.u32 4, %s21
      %s240 = smul.u32 64, %s21
      %p241 = scmp.lt.s32.totalorder %s240, 255
      %s242 = scalar_select %p241, %s240, 255
      %p243 = scmp.lt.s32.totalorder %s20, 0
      %s244 = scalar_select %p243, %s20, 0
      %s245 = sadd.s32 %s244, %s242
      %s246 = smul.addr %s245, 4
      %s247 = scalar_lea.vmem %s1, %s246
      %s248 = smul.u32 64, %s21
      %p249 = scmp.lt.s32.totalorder %s20, 0
      %s250 = scalar_select %p249, %s20, 0
      %s251 = scalar_lea.vmem %s2, %s250
      %p252 = scmp.lt.s32.totalorder %s19, 0
      %s253 = scalar_select %p252, %s19, 0
      %p254 = scmp.lt.s32.totalorder %s20, 0
      %s255 = scalar_select %p254, %s20, 0
      %s256 = sadd.s32 %s255, %s253
      %s257 = smul.addr %s256, 8
      %s258 = scalar_lea.vmem %s3, %s257
      %p260 = scmp.eq.s32.totalorder %s21, 0
      // Predicated region
      $region33: #{nlayer_discriminator_forward.15} parent=31 // pred_check
        %p261 = pneg %p260
      $region34: #{nlayer_discriminator_forward.15} parent=31 // pred_check_branch
        %263 = sbr.rel (%p261) target = $region36
      $region35: #{nlayer_discriminator_forward.15} parent=31 // pred_region
        %264 = vst [vmem:[#allocation2] sm:$0xff] 0.0
      $region36: #{nlayer_discriminator_forward.15} parent=31 // pred_fallthru
        _
      %v265 = vld [vmem:[#allocation2] sm:$0xff]
      %v266 = vld [vmem:[%s238] sm:$0xff]
      %v267 = vld [vmem:[%s238 + $0x8] sm:$0xff]
      %v268 = vld [vmem:[%s247] sm:$0xf]
      %v269 = vld [vmem:[%s247 + $0x4] sm:$0xf]
      %v270 = vld [vmem:[%s247 + $0x8] sm:$0xf]
      %v271 = vld [vmem:[%s247 + $0xc] sm:$0xf]
      %v272 = vld [vmem:[%s247 + $0x10] sm:$0xf]
      %v273 = vld [vmem:[%s247 + $0x14] sm:$0xf]
      %v274 = vld [vmem:[%s247 + $0x18] sm:$0xf]
      %v275 = vld [vmem:[%s247 + $0x1c] sm:$0xf]
      %v276 = vld [vmem:[%s247 + $0x20] sm:$0xf]
      %v277 = vld [vmem:[%s247 + $0x24] sm:$0xf]
      %v278 = vld [vmem:[%s247 + $0x28] sm:$0xf]
      %v279 = vld [vmem:[%s247 + $0x2c] sm:$0xf]
      %v280 = vld [vmem:[%s247 + $0x30] sm:$0xf]
      %v281 = vld [vmem:[%s247 + $0x34] sm:$0xf]
      %v282 = vld [vmem:[%s247 + $0x38] sm:$0xf]
      %v283 = vld [vmem:[%s247 + $0x3c] sm:$0xf]
      %v284 = vld [vmem:[%s247 + $0x40] sm:$0xf]
      %v285 = vld [vmem:[%s247 + $0x44] sm:$0xf]
      %v286 = vld [vmem:[%s247 + $0x48] sm:$0xf]
      %v287 = vld [vmem:[%s247 + $0x4c] sm:$0xf]
      %v288 = vld [vmem:[%s247 + $0x50] sm:$0xf]
      %v289 = vld [vmem:[%s247 + $0x54] sm:$0xf]
      %v290 = vld [vmem:[%s247 + $0x58] sm:$0xf]
      %v291 = vld [vmem:[%s247 + $0x5c] sm:$0xf]
      %v292 = vld [vmem:[%s247 + $0x60] sm:$0xf]
      %v293 = vld [vmem:[%s247 + $0x64] sm:$0xf]
      %v294 = vld [vmem:[%s247 + $0x68] sm:$0xf]
      %v295 = vld [vmem:[%s247 + $0x6c] sm:$0xf]
      %v296 = vld [vmem:[%s247 + $0x70] sm:$0xf]
      %v297 = vld [vmem:[%s247 + $0x74] sm:$0xf]
      %v298 = vld [vmem:[%s247 + $0x78] sm:$0xf]
      %v299 = vld [vmem:[%s247 + $0x7c] sm:$0xf]
      %v300 = vld [vmem:[%s247 + $0x80] sm:$0xf]
      %v301 = vld [vmem:[%s247 + $0x84] sm:$0xf]
      %v302 = vld [vmem:[%s247 + $0x88] sm:$0xf]
      %v303 = vld [vmem:[%s247 + $0x8c] sm:$0xf]
      %v304 = vld [vmem:[%s247 + $0x90] sm:$0xf]
      %v305 = vld [vmem:[%s247 + $0x94] sm:$0xf]
      %v306 = vld [vmem:[%s247 + $0x98] sm:$0xf]
      %v307 = vld [vmem:[%s247 + $0x9c] sm:$0xf]
      %v308 = vld [vmem:[%s247 + $0xa0] sm:$0xf]
      %v309 = vld [vmem:[%s247 + $0xa4] sm:$0xf]
      %v310 = vld [vmem:[%s247 + $0xa8] sm:$0xf]
      %v311 = vld [vmem:[%s247 + $0xac] sm:$0xf]
      %v312 = vld [vmem:[%s247 + $0xb0] sm:$0xf]
      %v313 = vld [vmem:[%s247 + $0xb4] sm:$0xf]
      %v314 = vld [vmem:[%s247 + $0xb8] sm:$0xf]
      %v315 = vld [vmem:[%s247 + $0xbc] sm:$0xf]
      %v316 = vld [vmem:[%s247 + $0xc0] sm:$0xf]
      %v317 = vld [vmem:[%s247 + $0xc4] sm:$0xf]
      %v318 = vld [vmem:[%s247 + $0xc8] sm:$0xf]
      %v319 = vld [vmem:[%s247 + $0xcc] sm:$0xf]
      %v320 = vld [vmem:[%s247 + $0xd0] sm:$0xf]
      %v321 = vld [vmem:[%s247 + $0xd4] sm:$0xf]
      %v322 = vld [vmem:[%s247 + $0xd8] sm:$0xf]
      %v323 = vld [vmem:[%s247 + $0xdc] sm:$0xf]
      %v324 = vld [vmem:[%s247 + $0xe0] sm:$0xf]
      %v325 = vld [vmem:[%s247 + $0xe4] sm:$0xf]
      %v326 = vld [vmem:[%s247 + $0xe8] sm:$0xf]
      %v327 = vld [vmem:[%s247 + $0xec] sm:$0xf]
      %v328 = vld [vmem:[%s247 + $0xf0] sm:$0xf]
      %v329 = vld [vmem:[%s247 + $0xf4] sm:$0xf]
      %v330 = vld [vmem:[%s247 + $0xf8] sm:$0xf]
      %v331 = vld [vmem:[%s247 + $0xfc] sm:$0xf]
      %v334 = vunpack.c.l.b16 %v266
      %v335 = vunpack.c.h.b16 %v266
      %v336 = vunpack.c.l.b16 %v267
      %v337 = vunpack.c.h.b16 %v267
      %v338 = vpack.c.b16 %v334, %v334
      %v339 = vpack.c.b16 %v335, %v335
      %v340 = vpack.c.b16 %v336, %v336
      %v341 = vpack.c.b16 %v337, %v337
      %v410 = vunpack.c.l.b16 %v268
      %v411 = vunpack.c.l.b16 %v269
      %v412 = vunpack.c.l.b16 %v270
      %v413 = vunpack.c.l.b16 %v271
      %v414 = vunpack.c.l.b16 %v272
      %v415 = vunpack.c.l.b16 %v273
      %v416 = vunpack.c.l.b16 %v274
      %v417 = vunpack.c.l.b16 %v275
      %v418 = vunpack.c.l.b16 %v276
      %v419 = vunpack.c.l.b16 %v277
      %v420 = vunpack.c.l.b16 %v278
      %v421 = vunpack.c.l.b16 %v279
      %v422 = vunpack.c.l.b16 %v280
      %v423 = vunpack.c.l.b16 %v281
      %v424 = vunpack.c.l.b16 %v282
      %v425 = vunpack.c.l.b16 %v283
      %v426 = vunpack.c.l.b16 %v284
      %v427 = vunpack.c.l.b16 %v285
      %v428 = vunpack.c.l.b16 %v286
      %v429 = vunpack.c.l.b16 %v287
      %v430 = vunpack.c.l.b16 %v288
      %v431 = vunpack.c.l.b16 %v289
      %v432 = vunpack.c.l.b16 %v290
      %v433 = vunpack.c.l.b16 %v291
      %v434 = vunpack.c.l.b16 %v292
      %v435 = vunpack.c.l.b16 %v293
      %v436 = vunpack.c.l.b16 %v294
      %v437 = vunpack.c.l.b16 %v295
      %v438 = vunpack.c.l.b16 %v296
      %v439 = vunpack.c.l.b16 %v297
      %v440 = vunpack.c.l.b16 %v298
      %v441 = vunpack.c.l.b16 %v299
      %v442 = vunpack.c.l.b16 %v300
      %v443 = vunpack.c.l.b16 %v301
      %v444 = vunpack.c.l.b16 %v302
      %v445 = vunpack.c.l.b16 %v303
      %v446 = vunpack.c.l.b16 %v304
      %v447 = vunpack.c.l.b16 %v305
      %v448 = vunpack.c.l.b16 %v306
      %v449 = vunpack.c.l.b16 %v307
      %v450 = vunpack.c.l.b16 %v308
      %v451 = vunpack.c.l.b16 %v309
      %v452 = vunpack.c.l.b16 %v310
      %v453 = vunpack.c.l.b16 %v311
      %v454 = vunpack.c.l.b16 %v312
      %v455 = vunpack.c.l.b16 %v313
      %v456 = vunpack.c.l.b16 %v314
      %v457 = vunpack.c.l.b16 %v315
      %v458 = vunpack.c.l.b16 %v316
      %v459 = vunpack.c.l.b16 %v317
      %v460 = vunpack.c.l.b16 %v318
      %v461 = vunpack.c.l.b16 %v319
      %v462 = vunpack.c.l.b16 %v320
      %v463 = vunpack.c.l.b16 %v321
      %v464 = vunpack.c.l.b16 %v322
      %v465 = vunpack.c.l.b16 %v323
      %v466 = vunpack.c.l.b16 %v324
      %v467 = vunpack.c.l.b16 %v325
      %v468 = vunpack.c.l.b16 %v326
      %v469 = vunpack.c.l.b16 %v327
      %v470 = vunpack.c.l.b16 %v328
      %v471 = vunpack.c.l.b16 %v329
      %v472 = vunpack.c.l.b16 %v330
      %v473 = vunpack.c.l.b16 %v331
      %v474 = vpack.c.b16 %v411, %v410
      %v475 = vpack.c.b16 %v413, %v412
      %v476 = vpack.c.b16 %v415, %v414
      %v477 = vpack.c.b16 %v417, %v416
      %v478 = vpack.c.b16 %v419, %v418
      %v479 = vpack.c.b16 %v421, %v420
      %v480 = vpack.c.b16 %v423, %v422
      %v481 = vpack.c.b16 %v425, %v424
      %v482 = vpack.c.b16 %v427, %v426
      %v483 = vpack.c.b16 %v429, %v428
      %v484 = vpack.c.b16 %v431, %v430
      %v485 = vpack.c.b16 %v433, %v432
      %v486 = vpack.c.b16 %v435, %v434
      %v487 = vpack.c.b16 %v437, %v436
      %v488 = vpack.c.b16 %v439, %v438
      %v489 = vpack.c.b16 %v441, %v440
      %v490 = vpack.c.b16 %v443, %v442
      %v491 = vpack.c.b16 %v445, %v444
      %v492 = vpack.c.b16 %v447, %v446
      %v493 = vpack.c.b16 %v449, %v448
      %v494 = vpack.c.b16 %v451, %v450
      %v495 = vpack.c.b16 %v453, %v452
      %v496 = vpack.c.b16 %v455, %v454
      %v497 = vpack.c.b16 %v457, %v456
      %v498 = vpack.c.b16 %v459, %v458
      %v499 = vpack.c.b16 %v461, %v460
      %v500 = vpack.c.b16 %v463, %v462
      %v501 = vpack.c.b16 %v465, %v464
      %v502 = vpack.c.b16 %v467, %v466
      %v503 = vpack.c.b16 %v469, %v468
      %v504 = vpack.c.b16 %v471, %v470
      %v505 = vpack.c.b16 %v473, %v472
      %538 = vmatprep.subr.bf16.mxu0 0
      %539 = vmatpush1.bf16.msra.mxu0 %v474
      %540 = vmatprep.subr.bf16.mxu0 0
      %541 = vmatpush1.bf16.msra.mxu0 %v475
      %542 = vmatprep.subr.bf16.mxu0 0
      %543 = vmatpush1.bf16.msra.mxu0 %v476
      %544 = vmatprep.subr.bf16.mxu0 0
      %545 = vmatpush1.bf16.msra.mxu0 %v477
      %546 = vmatprep.subr.bf16.mxu0 0
      %547 = vmatpush1.bf16.msra.mxu0 %v478
      %548 = vmatprep.subr.bf16.mxu0 0
      %549 = vmatpush1.bf16.msra.mxu0 %v479
      %550 = vmatprep.subr.bf16.mxu0 0
      %551 = vmatpush1.bf16.msra.mxu0 %v480
      %552 = vmatprep.subr.bf16.mxu0 0
      %553 = vmatpush1.bf16.msra.mxu0 %v481
      %554 = vmatprep.subr.bf16.mxu0 0
      %555 = vmatpush1.bf16.msra.mxu0 %v482
      %556 = vmatprep.subr.bf16.mxu0 0
      %557 = vmatpush1.bf16.msra.mxu0 %v483
      %558 = vmatprep.subr.bf16.mxu0 0
      %559 = vmatpush1.bf16.msra.mxu0 %v484
      %560 = vmatprep.subr.bf16.mxu0 0
      %561 = vmatpush1.bf16.msra.mxu0 %v485
      %562 = vmatprep.subr.bf16.mxu0 0
      %563 = vmatpush1.bf16.msra.mxu0 %v486
      %564 = vmatprep.subr.bf16.mxu0 0
      %565 = vmatpush1.bf16.msra.mxu0 %v487
      %566 = vmatprep.subr.bf16.mxu0 0
      %567 = vmatpush1.bf16.msra.mxu0 %v488
      %568 = vmatprep.subr.bf16.mxu0 0
      %569 = vmatpush1.bf16.msra.mxu0 %v489
      %570 = vmatprep.mubr.bf16.mxu0 %v339
      %571 = vmatmul.mubr.bf16.gmra.mrb[0].mxu0 %v338
      %v572 = vpop.f32.mrb[0].mxu0
      %v573 = vadd.f32 0.0, %v572
      %v574 = vpop.f32.mrb[0].mxu0
      %v575 = vpop.f32.mrb[0].mxu0
      %v576 = vpop.f32.mrb[0].mxu0
      %577 = vdwg.mxu0
      %578 = vmatprep.subr.bf16.mxu0 0
      %579 = vmatpush1.bf16.msra.mxu0 %v490
      %580 = vmatprep.subr.bf16.mxu0 0
      %581 = vmatpush1.bf16.msra.mxu0 %v491
      %582 = vmatprep.subr.bf16.mxu0 0
      %583 = vmatpush1.bf16.msra.mxu0 %v492
      %584 = vmatprep.subr.bf16.mxu0 0
      %585 = vmatpush1.bf16.msra.mxu0 %v493
      %586 = vmatprep.subr.bf16.mxu0 0
      %587 = vmatpush1.bf16.msra.mxu0 %v494
      %588 = vmatprep.subr.bf16.mxu0 0
      %589 = vmatpush1.bf16.msra.mxu0 %v495
      %590 = vmatprep.subr.bf16.mxu0 0
      %591 = vmatpush1.bf16.msra.mxu0 %v496
      %592 = vmatprep.subr.bf16.mxu0 0
      %593 = vmatpush1.bf16.msra.mxu0 %v497
      %594 = vmatprep.subr.bf16.mxu0 0
      %595 = vmatpush1.bf16.msra.mxu0 %v498
      %596 = vmatprep.subr.bf16.mxu0 0
      %597 = vmatpush1.bf16.msra.mxu0 %v499
      %598 = vmatprep.subr.bf16.mxu0 0
      %599 = vmatpush1.bf16.msra.mxu0 %v500
      %600 = vmatprep.subr.bf16.mxu0 0
      %601 = vmatpush1.bf16.msra.mxu0 %v501
      %602 = vmatprep.subr.bf16.mxu0 0
      %603 = vmatpush1.bf16.msra.mxu0 %v502
      %604 = vmatprep.subr.bf16.mxu0 0
      %605 = vmatpush1.bf16.msra.mxu0 %v503
      %606 = vmatprep.subr.bf16.mxu0 0
      %607 = vmatpush1.bf16.msra.mxu0 %v504
      %608 = vmatprep.subr.bf16.mxu0 0
      %609 = vmatpush1.bf16.msra.mxu0 %v505
      %610 = vmatprep.mubr.bf16.mxu0 %v341
      %611 = vmatmul.mubr.bf16.gmra.mrb[0].mxu0 %v340
      %v612 = vpop.f32.mrb[0].mxu0
      %v613 = vadd.f32 %v573, %v612
      %v614 = vpop.f32.mrb[0].mxu0
      %v615 = vpop.f32.mrb[0].mxu0
      %v616 = vpop.f32.mrb[0].mxu0
      %617 = vdwg.mxu0
      %v618 = vadd.f32 %v265, %v613
      %619 = vst [vmem:[#allocation2] sm:$0xff] %v618
      %p620 = scmp.eq.s32.totalorder %s21, 3
      // Predicated region
      $region37: #{nlayer_discriminator_forward.15} parent=31 // pred_check
        %p621 = pneg %p620
      $region38: #{nlayer_discriminator_forward.15} parent=31 // pred_check_branch
        %623 = sbr.rel (%p621) target = $region40
      $region39: #{nlayer_discriminator_forward.15} parent=31 // pred_region
        %v624 = vld [vmem:[#allocation2] sm:$0xff]
        %v625 = vld [vmem:[%s251] sm:$0x1]
        %v627 = vlaneseq
        %v628 = vshrl.u32 %v627, 7
        %v629 = vsub.s32 0, %v628
        %v630 = vrot.slane %v625, %v629
        %v632 = vadd.f32 %v624, %v630
        %633 = vst [vmem:[%s258] sm:$0xff] %v632
      $region40: #{nlayer_discriminator_forward.15} parent=31 // pred_fallthru
        _
      %p634 = scmp.lt.s32.totalorder %s19, 0
      %s635 = scalar_select %p634, %s19, 0
      %p636 = scmp.lt.s32.totalorder %s20, 0
      %s637 = scalar_select %p636, %s20, 0
      %s638 = sadd.s32 %s637, %s635
      %s639 = smul.addr %s638, 8
      %s640 = scalar_lea.vmem %s3, %s639
      // Predicated region
      $region41: #{nlayer_discriminator_forward.15} parent=31 // pred_check
        %p641 = pneg %p135
      $region42: #{nlayer_discriminator_forward.15} parent=31 // pred_check_branch
        %643 = sbr.rel (%p641) target = $region44
      $region43: #{nlayer_discriminator_forward.15} parent=31 // pred_region
        _
      $region44: #{nlayer_discriminator_forward.15} parent=31 // pred_fallthru
        _
      // Predicated region
      $region45: #{nlayer_discriminator_forward.15} parent=31 // pred_check
        %p644 = pneg %p135
      $region46: #{nlayer_discriminator_forward.15} parent=31 // pred_check_branch
        %646 = sbr.rel (%p644) target = $region48
      $region47: #{nlayer_discriminator_forward.15} parent=31 // pred_region
        %p647 = scmp.lt.s32.totalorder %s19, 0
        %s648 = scalar_select %p647, %s19, 0
        %p649 = scmp.lt.s32.totalorder %s20, 0
        %s650 = scalar_select %p649, %s20, 0
        %s651 = sadd.s32 %s650, %s648
        %s652 = smul.addr %s651, 8
        %s653 = scalar_lea.vmem %s3, %s652
      $region48: #{nlayer_discriminator_forward.15} parent=31 // pred_fallthru
        _
    $region32: #{nlayer_discriminator_forward.15} parent=5 // pred_fallthru
      _
    %p654 = scmp.le.s32.totalorder 2, %s9
    // Predicated region
    $region49: #{nlayer_discriminator_forward.15} parent=5 // pred_check
      %p655 = pneg %p654
    $region50: #{nlayer_discriminator_forward.15} parent=5 // pred_check_branch
      %657 = sbr.rel (%p655) target = $region52
    $region51: #{nlayer_discriminator_forward.15} parent=5 // pred_region
      %s658 = ssub.s32 %s9, 2
    $region52: #{nlayer_discriminator_forward.15} parent=5 // pred_fallthru
      _
  $region6: #{nlayer_discriminator_forward.15} parent=0 // loop_footer
    %s13 = sadd.s32 1, %s9
  $region7: #{nlayer_discriminator_forward.15} parent=0 // loop_footer_branch
    %8 = sbr.rel target = $region3
  $region8: #{nlayer_discriminator_forward.15} parent=0 // loop_exit
    _

</llo_original>
